<compile_context>
chip_gen: v7x
topology: tpu7x:2x2x1
jax: 0.10.0
libtpu: 0.0.40
codegen_flags: <defaults>
</compile_context>

<pallas_src>
import jax
import jax.numpy as jnp
from jax.experimental import pallas as pl
from jax.experimental.pallas import tpu as pltpu

LEAKY_SLOPE = 0.01   # torch.nn.LeakyReLU default negative_slope
LANE = 128           # TPU lane width (last-dim tile)
SUB = 8              # f32 sublane tile
WROW_ALIGN = 16      # bf16 packs 16 rows per (16,128) tile; keep weight row offsets aligned


def _round_up(x, m):
    return ((x + m - 1) // m) * m


def layer_dims(state_dim, hidden_dim, out_dim):
    """(in, out) dims of the 7 Linear layers of StateClassifierModel.

    The PyTorch Sequential as written declares Linear(2H,4H) and Linear(8H,16H) at
    positions where the incoming activation is 4H wide, so the module cannot run.
    # TODO(synk): input dims of layers 4 and 5 are chained to the previous layer's
    # output (4H->4H, 4H->16H) to make the forward well-defined while preserving
    # every declared output width.
    """
    h = hidden_dim
    outs = [h, 2 * h, 4 * h, 4 * h, 16 * h, 2 * h, out_dim]
    ins = [state_dim] + outs[:-1]
    return list(zip(ins, outs))


def make_layout(state_dim, hidden_dim, out_dim):
    """Static packing layout: per layer (row_offset, padded_in, padded_out)."""
    dims = layer_dims(state_dim, hidden_dim, out_dim)
    sdp = _round_up(state_dim, WROW_ALIGN)     # padded width of the input s (bf16-tile aligned)
    layout, row, pin = [], 0, sdp
    for (_, dout) in dims:
        pout = _round_up(dout, LANE)
        layout.append((row, pin, pout))
        row += _round_up(pin, WROW_ALIGN)
        pin = pout
    total_rows = row
    max_cols = max(p for (_, _, p) in layout)
    return dims, layout, sdp, total_rows, max_cols


def init_params(key, state_dim, hidden_dim, out_dim):
    """torch.nn.Linear-style init (uniform +-1/sqrt(fan_in)); weights stored
    transposed, i.e. shape (in_dim, out_dim), so y = x @ W + b."""
    weights, biases = [], []
    for (fan_in, fan_out) in layer_dims(state_dim, hidden_dim, out_dim):
        key, kw, kb = jax.random.split(key, 3)
        bound = float(fan_in) ** -0.5
        weights.append(jax.random.uniform(kw, (fan_in, fan_out), jnp.float32, -bound, bound))
        biases.append(jax.random.uniform(kb, (fan_out,), jnp.float32, -bound, bound))
    return weights, biases


def pack_params(weights, biases, state_dim, hidden_dim, out_dim):
    """Pack all 7 weights into one zero-padded bf16 slab (total_rows, max_cols) and
    all 7 biases into one f32 slab (8, max_cols).  Zero padding keeps the padded
    activation lanes exactly zero through the whole network."""
    dims, layout, sdp, total_rows, max_cols = make_layout(state_dim, hidden_dim, out_dim)
    wp = jnp.zeros((total_rows, max_cols), jnp.bfloat16)
    bp = jnp.zeros((_round_up(len(dims), SUB), max_cols), jnp.float32)
    for l, ((din, dout), (roff, _, _)) in enumerate(zip(dims, layout)):
        wp = wp.at[roff:roff + din, :dout].set(weights[l].astype(jnp.bfloat16))
        bp = bp.at[l, :dout].set(biases[l].astype(jnp.float32))
    return wp, bp, layout, sdp


def _make_kernel(layout):
    n_layers = len(layout)

    def kernel(s_ref, wp_ref, bp_ref, o_ref):
        h = s_ref[...]                                      # (TB, SDP) f32
        for l, (roff, pin, pout) in enumerate(layout):      # unrolled at trace time
            w = wp_ref[roff:roff + pin, :pout]              # (pin, pout) bf16, static tile-aligned view
            b = bp_ref[l:l + 1, :pout]                      # (1, pout)  f32
            h = jnp.dot(h.astype(jnp.bfloat16), w,          # bf16 MXU, f32 accumulate
                        preferred_element_type=jnp.float32) + b
            if l < n_layers - 1:
                h = jnp.where(h > 0, h, LEAKY_SLOPE * h)    # LeakyReLU in f32 (VPU)
        o_ref[...] = h.astype(o_ref.dtype)                  # (TB, 128): lane-dense unmasked store

    return kernel


def state_classifier_forward(s, wp, bp, layout, sdp, out_dim, *, block_batch=256):
    batch, state_dim = s.shape
    pout_last = layout[-1][2]

    tb = min(block_batch, _round_up(batch, SUB))            # batch tile (multiple of 8)
    batch_p = _round_up(batch, tb)
    s_p = jnp.zeros((batch_p, sdp), jnp.float32).at[:batch, :state_dim].set(
        s.astype(jnp.float32))

    flops = 2 * batch_p * sum(pin * pout for (_, pin, pout) in layout)
    bytes_accessed = (s_p.size * 4 + wp.size * 2 + bp.size * 4
                      + batch_p * pout_last * 4)

    out = pl.pallas_call(
        _make_kernel(layout),
        out_shape=jax.ShapeDtypeStruct((batch_p, pout_last), jnp.float32),
        grid_spec=pl.GridSpec(
            grid=(batch_p // tb,),
            in_specs=[
                pl.BlockSpec((tb, sdp), lambda i: (i, 0)),       # stream activations
                pl.BlockSpec(wp.shape, lambda i: (0, 0)),        # weights resident (fetched once)
                pl.BlockSpec(bp.shape, lambda i: (0, 0)),        # biases resident
            ],
            out_specs=pl.BlockSpec((tb, pout_last), lambda i: (i, 0)),
        ),
        compiler_params=pltpu.CompilerParams(
            dimension_semantics=("parallel",)),                  # megacore batch split on v7x
        cost_estimate=pl.CostEstimate(
            flops=flops, transcendentals=0, bytes_accessed=bytes_accessed),
    )(s_p, wp, bp)
    return out[:batch, :out_dim]


def reference_forward(s, wp, bp, layout, sdp, out_dim):
    """Pure-JAX mirror of the kernel math (same padded slabs, same casts)."""
    batch, state_dim = s.shape
    h = jnp.zeros((batch, sdp), jnp.float32).at[:, :state_dim].set(s.astype(jnp.float32))
    n_layers = len(layout)
    for l, (roff, pin, pout) in enumerate(layout):
        w = wp[roff:roff + pin, :pout]
        b = bp[l:l + 1, :pout]
        h = jnp.dot(h.astype(jnp.bfloat16), w, preferred_element_type=jnp.float32) + b
        if l < n_layers - 1:
            h = jnp.where(h > 0, h, LEAKY_SLOPE * h)
    return h[:, :out_dim]


if __name__ == "__main__":
    key = jax.random.PRNGKey(0)
    batch, state_dim, hidden_dim, out_dim = 512, 4, 32, 2

    key, ks = jax.random.split(key)
    s = jax.random.normal(ks, (batch, state_dim), jnp.float32)

    weights, biases = init_params(key, state_dim, hidden_dim, out_dim)
    wp, bp, layout, sdp = pack_params(weights, biases, state_dim, hidden_dim, out_dim)

    out = state_classifier_forward(s, wp, bp, layout, sdp, out_dim)
    out = jax.block_until_ready(out)

    ref = reference_forward(s, wp, bp, layout, sdp, out_dim)
    assert out.shape == (batch, out_dim), out.shape
    max_err = float(jnp.max(jnp.abs(out - ref)))
    assert jnp.allclose(out, ref, atol=3e-2, rtol=3e-2), max_err

    print("KERNEL_OK")
</pallas_src>

<mosaic_0001>
module attributes {stable_mosaic.version = 11 : i64} {
  func.func @kernel(%arg0: i32, %arg1: memref<256x16xf32, #tpu.memory_space<vmem>>, %arg2: memref<1168x512xbf16, #tpu.memory_space<vmem>>, %arg3: memref<8x512xf32, #tpu.memory_space<vmem>>, %arg4: memref<256x128xf32, #tpu.memory_space<vmem>>) attributes {dimension_semantics = [#tpu.dimension_semantics<parallel>], iteration_bounds = array<i64: 2>, scalar_prefetch = 0 : i64, scratch_operands = 0 : i64, tpu.core_type = #tpu.core_type<tc>, window_params = [{transform_indices = @transform_0, window_bounds = array<i64: 256, 16>}, {pipeline_mode = #tpu.pipeline_mode<synchronous>, transform_indices = @transform_1, window_bounds = array<i64: 1168, 512>}, {pipeline_mode = #tpu.pipeline_mode<synchronous>, transform_indices = @transform_2, window_bounds = array<i64: 8, 512>}, {transform_indices = @transform_3, window_bounds = array<i64: 256, 128>}]} {
    %c0 = arith.constant 0 : index
    %c0_0 = arith.constant 0 : index
    %0 = vector.load %arg1[%c0, %c0_0] : memref<256x16xf32, #tpu.memory_space<vmem>>, vector<256x16xf32>
    %c0_1 = arith.constant 0 : index
    %c0_2 = arith.constant 0 : index
    %1 = vector.load %arg2[%c0_1, %c0_2] : memref<1168x512xbf16, #tpu.memory_space<vmem>>, vector<16x128xbf16>
    %c0_3 = arith.constant 0 : index
    %c0_4 = arith.constant 0 : index
    %2 = vector.load %arg3[%c0_3, %c0_4] : memref<8x512xf32, #tpu.memory_space<vmem>>, vector<1x128xf32>
    %3 = arith.truncf %0 : vector<256x16xf32> to vector<256x16xbf16>
    %cst = arith.constant dense<0.000000e+00> : vector<256x128xf32>
    %4 = tpu.matmul %3, %1, %cst {dimension_numbers = #tpu.dot_dimension_numbers<[1], [0], [0], [1], [0, 0, 1, 1], [], []>} : vector<256x16xbf16>, vector<16x128xbf16>, vector<256x128xf32> -> vector<256x128xf32>
    %5 = vector.broadcast %2 : vector<1x128xf32> to vector<256x128xf32>
    %6 = arith.addf %4, %5 : vector<256x128xf32>
    %cst_5 = arith.constant 0.000000e+00 : f32
    %7 = vector.broadcast %cst_5 : f32 to vector<256x128xf32>
    %8 = arith.cmpf ogt, %6, %7 : vector<256x128xf32>
    %cst_6 = arith.constant 0.00999999977 : f32
    %9 = vector.broadcast %cst_6 : f32 to vector<256x128xf32>
    %10 = arith.mulf %9, %6 : vector<256x128xf32>
    %11 = arith.select %8, %6, %10 : vector<256x128xi1>, vector<256x128xf32>
    %c16 = arith.constant 16 : index
    %c0_7 = arith.constant 0 : index
    %12 = vector.load %arg2[%c16, %c0_7] : memref<1168x512xbf16, #tpu.memory_space<vmem>>, vector<128x128xbf16>
    %c1 = arith.constant 1 : index
    %c0_8 = arith.constant 0 : index
    %13 = vector.load %arg3[%c1, %c0_8] : memref<8x512xf32, #tpu.memory_space<vmem>>, vector<1x128xf32>
    %14 = arith.truncf %11 : vector<256x128xf32> to vector<256x128xbf16>
    %cst_9 = arith.constant dense<0.000000e+00> : vector<256x128xf32>
    %15 = tpu.matmul %14, %12, %cst_9 {dimension_numbers = #tpu.dot_dimension_numbers<[1], [0], [0], [1], [0, 0, 1, 1], [], []>} : vector<256x128xbf16>, vector<128x128xbf16>, vector<256x128xf32> -> vector<256x128xf32>
    %16 = vector.broadcast %13 : vector<1x128xf32> to vector<256x128xf32>
    %17 = arith.addf %15, %16 : vector<256x128xf32>
    %cst_10 = arith.constant 0.000000e+00 : f32
    %18 = vector.broadcast %cst_10 : f32 to vector<256x128xf32>
    %19 = arith.cmpf ogt, %17, %18 : vector<256x128xf32>
    %cst_11 = arith.constant 0.00999999977 : f32
    %20 = vector.broadcast %cst_11 : f32 to vector<256x128xf32>
    %21 = arith.mulf %20, %17 : vector<256x128xf32>
    %22 = arith.select %19, %17, %21 : vector<256x128xi1>, vector<256x128xf32>
    %c144 = arith.constant 144 : index
    %c0_12 = arith.constant 0 : index
    %23 = vector.load %arg2[%c144, %c0_12] : memref<1168x512xbf16, #tpu.memory_space<vmem>>, vector<128x128xbf16>
    %c2 = arith.constant 2 : index
    %c0_13 = arith.constant 0 : index
    %24 = vector.load %arg3[%c2, %c0_13] : memref<8x512xf32, #tpu.memory_space<vmem>>, vector<1x128xf32>
    %25 = arith.truncf %22 : vector<256x128xf32> to vector<256x128xbf16>
    %cst_14 = arith.constant dense<0.000000e+00> : vector<256x128xf32>
    %26 = tpu.matmul %25, %23, %cst_14 {dimension_numbers = #tpu.dot_dimension_numbers<[1], [0], [0], [1], [0, 0, 1, 1], [], []>} : vector<256x128xbf16>, vector<128x128xbf16>, vector<256x128xf32> -> vector<256x128xf32>
    %27 = vector.broadcast %24 : vector<1x128xf32> to vector<256x128xf32>
    %28 = arith.addf %26, %27 : vector<256x128xf32>
    %cst_15 = arith.constant 0.000000e+00 : f32
    %29 = vector.broadcast %cst_15 : f32 to vector<256x128xf32>
    %30 = arith.cmpf ogt, %28, %29 : vector<256x128xf32>
    %cst_16 = arith.constant 0.00999999977 : f32
    %31 = vector.broadcast %cst_16 : f32 to vector<256x128xf32>
    %32 = arith.mulf %31, %28 : vector<256x128xf32>
    %33 = arith.select %30, %28, %32 : vector<256x128xi1>, vector<256x128xf32>
    %c272 = arith.constant 272 : index
    %c0_17 = arith.constant 0 : index
    %34 = vector.load %arg2[%c272, %c0_17] : memref<1168x512xbf16, #tpu.memory_space<vmem>>, vector<128x128xbf16>
    %c3 = arith.constant 3 : index
    %c0_18 = arith.constant 0 : index
    %35 = vector.load %arg3[%c3, %c0_18] : memref<8x512xf32, #tpu.memory_space<vmem>>, vector<1x128xf32>
    %36 = arith.truncf %33 : vector<256x128xf32> to vector<256x128xbf16>
    %cst_19 = arith.constant dense<0.000000e+00> : vector<256x128xf32>
    %37 = tpu.matmul %36, %34, %cst_19 {dimension_numbers = #tpu.dot_dimension_numbers<[1], [0], [0], [1], [0, 0, 1, 1], [], []>} : vector<256x128xbf16>, vector<128x128xbf16>, vector<256x128xf32> -> vector<256x128xf32>
    %38 = vector.broadcast %35 : vector<1x128xf32> to vector<256x128xf32>
    %39 = arith.addf %37, %38 : vector<256x128xf32>
    %cst_20 = arith.constant 0.000000e+00 : f32
    %40 = vector.broadcast %cst_20 : f32 to vector<256x128xf32>
    %41 = arith.cmpf ogt, %39, %40 : vector<256x128xf32>
    %cst_21 = arith.constant 0.00999999977 : f32
    %42 = vector.broadcast %cst_21 : f32 to vector<256x128xf32>
    %43 = arith.mulf %42, %39 : vector<256x128xf32>
    %44 = arith.select %41, %39, %43 : vector<256x128xi1>, vector<256x128xf32>
    %c400 = arith.constant 400 : index
    %c0_22 = arith.constant 0 : index
    %45 = vector.load %arg2[%c400, %c0_22] : memref<1168x512xbf16, #tpu.memory_space<vmem>>, vector<128x512xbf16>
    %c4 = arith.constant 4 : index
    %c0_23 = arith.constant 0 : index
    %46 = vector.load %arg3[%c4, %c0_23] : memref<8x512xf32, #tpu.memory_space<vmem>>, vector<1x512xf32>
    %47 = arith.truncf %44 : vector<256x128xf32> to vector<256x128xbf16>
    %cst_24 = arith.constant dense<0.000000e+00> : vector<256x512xf32>
    %48 = tpu.matmul %47, %45, %cst_24 {dimension_numbers = #tpu.dot_dimension_numbers<[1], [0], [0], [1], [0, 0, 1, 1], [], []>} : vector<256x128xbf16>, vector<128x512xbf16>, vector<256x512xf32> -> vector<256x512xf32>
    %49 = vector.broadcast %46 : vector<1x512xf32> to vector<256x512xf32>
    %50 = arith.addf %48, %49 : vector<256x512xf32>
    %cst_25 = arith.constant 0.000000e+00 : f32
    %51 = vector.broadcast %cst_25 : f32 to vector<256x512xf32>
    %52 = arith.cmpf ogt, %50, %51 : vector<256x512xf32>
    %cst_26 = arith.constant 0.00999999977 : f32
    %53 = vector.broadcast %cst_26 : f32 to vector<256x512xf32>
    %54 = arith.mulf %53, %50 : vector<256x512xf32>
    %55 = arith.select %52, %50, %54 : vector<256x512xi1>, vector<256x512xf32>
    %c528 = arith.constant 528 : index
    %c0_27 = arith.constant 0 : index
    %56 = vector.load %arg2[%c528, %c0_27] : memref<1168x512xbf16, #tpu.memory_space<vmem>>, vector<512x128xbf16>
    %c5 = arith.constant 5 : index
    %c0_28 = arith.constant 0 : index
    %57 = vector.load %arg3[%c5, %c0_28] : memref<8x512xf32, #tpu.memory_space<vmem>>, vector<1x128xf32>
    %58 = arith.truncf %55 : vector<256x512xf32> to vector<256x512xbf16>
    %cst_29 = arith.constant dense<0.000000e+00> : vector<256x128xf32>
    %59 = tpu.matmul %58, %56, %cst_29 {dimension_numbers = #tpu.dot_dimension_numbers<[1], [0], [0], [1], [0, 0, 1, 1], [], []>} : vector<256x512xbf16>, vector<512x128xbf16>, vector<256x128xf32> -> vector<256x128xf32>
    %60 = vector.broadcast %57 : vector<1x128xf32> to vector<256x128xf32>
    %61 = arith.addf %59, %60 : vector<256x128xf32>
    %cst_30 = arith.constant 0.000000e+00 : f32
    %62 = vector.broadcast %cst_30 : f32 to vector<256x128xf32>
    %63 = arith.cmpf ogt, %61, %62 : vector<256x128xf32>
    %cst_31 = arith.constant 0.00999999977 : f32
    %64 = vector.broadcast %cst_31 : f32 to vector<256x128xf32>
    %65 = arith.mulf %64, %61 : vector<256x128xf32>
    %66 = arith.select %63, %61, %65 : vector<256x128xi1>, vector<256x128xf32>
    %c1040 = arith.constant 1040 : index
    %c0_32 = arith.constant 0 : index
    %67 = vector.load %arg2[%c1040, %c0_32] : memref<1168x512xbf16, #tpu.memory_space<vmem>>, vector<128x128xbf16>
    %c6 = arith.constant 6 : index
    %c0_33 = arith.constant 0 : index
    %68 = vector.load %arg3[%c6, %c0_33] : memref<8x512xf32, #tpu.memory_space<vmem>>, vector<1x128xf32>
    %69 = arith.truncf %66 : vector<256x128xf32> to vector<256x128xbf16>
    %cst_34 = arith.constant dense<0.000000e+00> : vector<256x128xf32>
    %70 = tpu.matmul %69, %67, %cst_34 {dimension_numbers = #tpu.dot_dimension_numbers<[1], [0], [0], [1], [0, 0, 1, 1], [], []>} : vector<256x128xbf16>, vector<128x128xbf16>, vector<256x128xf32> -> vector<256x128xf32>
    %71 = vector.broadcast %68 : vector<1x128xf32> to vector<256x128xf32>
    %72 = arith.addf %70, %71 : vector<256x128xf32>
    %c0_35 = arith.constant 0 : index
    %c0_36 = arith.constant 0 : index
    %73 = vector.load %arg4[%c0_35, %c0_36] : memref<256x128xf32, #tpu.memory_space<vmem>>, vector<256x128xf32>
    tpu.vector_store %arg4[%c0_35, %c0_36], %72 {strides = array<i32>} : memref<256x128xf32, #tpu.memory_space<vmem>>, vector<256x128xf32>,
    return
  }
  func.func @transform_0(%arg0: i32) -> (i32, i32) {
    %c0_i32 = arith.constant 0 : i32
    %c0_i32_0 = arith.constant 0 : i32
    return %arg0, %c0_i32 : i32, i32
  }
  func.func @transform_1(%arg0: i32) -> (i32, i32) {
    %c0_i32 = arith.constant 0 : i32
    %c0_i32_0 = arith.constant 0 : i32
    %c0_i32_1 = arith.constant 0 : i32
    return %c0_i32, %c0_i32_0 : i32, i32
  }
  func.func @transform_2(%arg0: i32) -> (i32, i32) {
    %c0_i32 = arith.constant 0 : i32
    %c0_i32_0 = arith.constant 0 : i32
    %c0_i32_1 = arith.constant 0 : i32
    return %c0_i32, %c0_i32_0 : i32, i32
  }
  func.func @transform_3(%arg0: i32) -> (i32, i32) {
    %c0_i32 = arith.constant 0 : i32
    %c0_i32_0 = arith.constant 0 : i32
    return %arg0, %c0_i32 : i32, i32
  }
}

</mosaic_0001>

<llo_original>
// kernel: tpu_custom_call.1
$region0: #{tpu_custom_call.1}
  #allocation0 [shape = 'u32[]', space=smem, size = 0x4, offset = 0x4, fixed_abs, tag = 'smem constant byte address 0x4 - core index']
  #allocation1 [shape = 'u32[144,128]{1,0:T(1,128)}', space=vmem, size = 0x12000, scoped, tag = 'internal scratch']
  %s0 = inlined_call_operand.vmem [shape: f32[512,16], index: 0, kind: input, shape index: {}]
  %s1 = inlined_call_operand.hbm [shape: bf16[1168,512], index: 1, kind: input, shape index: {}]
  %s2 = inlined_call_operand.hbm [shape: f32[8,512], index: 2, kind: input, shape index: {}]
  %s3 = inlined_call_operand.hbm [shape: f32[512,128], index: 3, kind: output, shape index: {}]
  %s4 = sld [smem:[#allocation0]]
  $region53: #{tpu_custom_call.1} parent=0
    _
  %s6 = ssub.s32 1, %s4
  %s7 = scalar_select 0, %s6, %s4
  $region1: #{tpu_custom_call.1} parent=0
    #allocation2 [shape = 'u8[1196032]{0}', space=vmem, size = 0x124000, scoped, tag = 'input window, operand 1, single buffered']
    #allocation3 [shape = 's32[2]{0}', space=sflag, size = 0x8, scoped, tag = 'scoped memory for tpu_custom_call.1']
    #allocation4 [shape = 's32[2]{0}', space=sflag, size = 0x8, scoped, tag = 'scoped memory for tpu_custom_call.1']
    #allocation5 [shape = 'u8[16384]{0}', space=vmem, size = 0x4000, scoped, tag = 'input window, operand 2, single buffered']
    #allocation6 [shape = 's32[1]{0}', space=sflag, size = 0x4, scoped, tag = 'scoped memory for tpu_custom_call.1']
    #allocation7 [shape = 'u8[262144]{0}', space=vmem, size = 0x40000, scoped, tag = 'output window, operand 0']
    %8 = vsyncpa [#allocation3], 0
    %9 = vsyncpa [#allocation6], 0
    %10 = vsyncpa [#allocation4], 0
    %s11 = scalar_lea.sflag [#allocation4], 1
    %12 = vsyncpa %s11, 0
    loop: start=0, step=1, limit=4
    $region2: #{tpu_custom_call.1} parent=1 // loop_pre_header
      _
    $region3: #{tpu_custom_call.1} parent=1 // loop_header
      %s14 = sphi 0, %s18
      %p15 = scmp.ge.s32.totalorder %s14, 4
      %s24 = sphi 0, %s26
      %s27 = sphi 0, %s24
      %s28 = sphi 0, %s27
      %s44 = sphi 0, %s28
      %s48 = sphi 0, %s48
      %s50 = sphi 0, %s48
      %s51 = sphi 0, %s50
      %s65 = sphi 0, %s51
      %s69 = sphi 0, %s69
      %s71 = sphi 0, %s69
      %s72 = sphi 0, %s71
      %s86 = sphi 0, %s72
      %s92 = sphi 0, %s94
      %s95 = sphi 0, %s92
      %s96 = sphi 0, %s95
      %s112 = sphi 0, %s96
    $region4: #{tpu_custom_call.1} parent=1 // loop_header_branch
      %17 = sbr.rel (%p15) target = $region8
    $region5: #{tpu_custom_call.1} parent=1 // loop_body
      %s19 = ssub.s32 %s14, 1
      %s20 = ssub.s32 %s14, 2
      %s21 = sadd.s32 %s14, 1
      %s22 = ssub.s32 %s14, %s21
      %p23 = scmp.eq.s32.totalorder %s22, 0
      %s25 = sadd.s32 %s24, 1
      %s26 = scalar_select %p23, %s24, %s25
      %p29 = pneg %p23
      %p30 = scmp.eq.s32.totalorder %s14, 1
      %p31 = por %p29, %p30
      %p32 = scmp.ne.s32.totalorder %s24, %s27
      %p33 = scmp.eq.s32.totalorder %s14, 0
      %p34 = por %p32, %p33
      %p35 = scmp.ne.s32.totalorder %s24, %s27
      %p36 = scmp.eq.s32.totalorder %s19, 1
      %p37 = por %p35, %p36
      %p38 = scmp.ne.s32.totalorder %s27, %s28
      %p39 = scmp.eq.s32.totalorder %s19, 0
      %p40 = por %p38, %p39
      %p41 = scmp.ne.s32.totalorder %s27, %s28
      %p42 = scmp.eq.s32.totalorder %s20, 1
      %p43 = por %p41, %p42
      %p45 = scmp.ne.s32.totalorder %s28, %s44
      %p46 = scmp.eq.s32.totalorder %s20, 0
      %p47 = por %p45, %p46
      %s49 = sadd.s32 %s48, 1
      %p52 = scmp.eq.s32.totalorder %s14, 1
      %p53 = scmp.ne.s32.totalorder %s48, %s50
      %p54 = scmp.eq.s32.totalorder %s14, 0
      %p55 = por %p53, %p54
      %p56 = scmp.ne.s32.totalorder %s48, %s50
      %p57 = scmp.eq.s32.totalorder %s19, 1
      %p58 = por %p56, %p57
      %p59 = scmp.ne.s32.totalorder %s50, %s51
      %p60 = scmp.eq.s32.totalorder %s19, 0
      %p61 = por %p59, %p60
      %p62 = scmp.ne.s32.totalorder %s50, %s51
      %p63 = scmp.eq.s32.totalorder %s20, 1
      %p64 = por %p62, %p63
      %p66 = scmp.ne.s32.totalorder %s51, %s65
      %p67 = scmp.eq.s32.totalorder %s20, 0
      %p68 = por %p66, %p67
      %s70 = sadd.s32 %s69, 1
      %p73 = scmp.eq.s32.totalorder %s14, 1
      %p74 = scmp.ne.s32.totalorder %s69, %s71
      %p75 = scmp.eq.s32.totalorder %s14, 0
      %p76 = por %p74, %p75
      %p77 = scmp.ne.s32.totalorder %s69, %s71
      %p78 = scmp.eq.s32.totalorder %s19, 1
      %p79 = por %p77, %p78
      %p80 = scmp.ne.s32.totalorder %s71, %s72
      %p81 = scmp.eq.s32.totalorder %s19, 0
      %p82 = por %p80, %p81
      %p83 = scmp.ne.s32.totalorder %s71, %s72
      %p84 = scmp.eq.s32.totalorder %s20, 1
      %p85 = por %p83, %p84
      %p87 = scmp.ne.s32.totalorder %s72, %s86
      %p88 = scmp.eq.s32.totalorder %s20, 0
      %p89 = por %p87, %p88
      %s90 = ssub.s32 %s14, %s21
      %p91 = scmp.eq.s32.totalorder %s90, 0
      %s93 = sadd.s32 %s92, 1
      %s94 = scalar_select %p91, %s92, %s93
      %p97 = pneg %p91
      %p98 = scmp.eq.s32.totalorder %s14, 1
      %p99 = por %p97, %p98
      %p100 = scmp.ne.s32.totalorder %s92, %s95
      %p101 = scmp.eq.s32.totalorder %s14, 0
      %p102 = por %p100, %p101
      %p103 = scmp.ne.s32.totalorder %s92, %s95
      %p104 = scmp.eq.s32.totalorder %s19, 1
      %p105 = por %p103, %p104
      %p106 = scmp.ne.s32.totalorder %s95, %s96
      %p107 = scmp.eq.s32.totalorder %s19, 0
      %p108 = por %p106, %p107
      %p109 = scmp.ne.s32.totalorder %s95, %s96
      %p110 = scmp.eq.s32.totalorder %s20, 1
      %p111 = por %p109, %p110
      %p113 = scmp.ne.s32.totalorder %s96, %s112
      %p114 = scmp.eq.s32.totalorder %s20, 0
      %p115 = por %p113, %p114
      %p116 = scmp.le.s32.totalorder 1, %s14
      %p117 = scmp.lt.s32.totalorder %s14, 3
      %p118 = pnand %p116, %p117
      %p119 = pneg %p118
      // Predicated region
      $region9: #{tpu_custom_call.1} parent=5 // pred_check
        _
      $region10: #{tpu_custom_call.1} parent=5 // pred_check_branch
        %121 = sbr.rel (%p118) target = $region12
      $region11: #{tpu_custom_call.1} parent=5 // pred_region
        %s122 = ssub.s32 %s14, 1
        // Predicated region
        $region13: #{tpu_custom_call.1} parent=11 // pred_check
          %p123 = pneg %p61
        $region14: #{tpu_custom_call.1} parent=11 // pred_check_branch
          %125 = sbr.rel (%p123) target = $region16
        $region15: #{tpu_custom_call.1} parent=11 // pred_region
          %s127 = ssub.s32 37376, 37376
          %128 = vsyncadd [#allocation3], %s127
          %s129 = sshll.u32 [#allocation2], 4
          %s130 = int_to_ptr.vmem [resolvable:$true] %s129
          %135 = dma.hbm_to_vmem [thread:$0]  %s1, 37376, %s130, [#allocation3], 256, 256, 16
        $region16: #{tpu_custom_call.1} parent=11 // pred_fallthru
          _
        // Predicated region
        $region17: #{tpu_custom_call.1} parent=11 // pred_check
          %p136 = pneg %p82
        $region18: #{tpu_custom_call.1} parent=11 // pred_check_branch
          %138 = sbr.rel (%p136) target = $region20
        $region19: #{tpu_custom_call.1} parent=11 // pred_region
          %s140 = ssub.s32 512, 512
          %141 = vsyncadd [#allocation6], %s140
          %s143 = sshll.u32 [#allocation5], 4
          %s144 = int_to_ptr.vmem [resolvable:$true] %s143
          %146 = dma.hbm_to_vmem [thread:$0]  %s2, 512, %s144, [#allocation6]
        $region20: #{tpu_custom_call.1} parent=11 // pred_fallthru
          _
      $region12: #{tpu_custom_call.1} parent=5 // pred_fallthru
        _
      %p147 = scmp.lt.s32.totalorder %s14, 2
      // Predicated region
      $region21: #{tpu_custom_call.1} parent=5 // pred_check
        %p148 = pneg %p147
      $region22: #{tpu_custom_call.1} parent=5 // pred_check_branch
        %150 = sbr.rel (%p148) target = $region24
      $region23: #{tpu_custom_call.1} parent=5 // pred_region
        // Predicated region
        $region25: #{tpu_custom_call.1} parent=23 // pred_check
          %p151 = pneg %p34
        $region26: #{tpu_custom_call.1} parent=23 // pred_check_branch
          %153 = sbr.rel (%p151) target = $region28
        $region27: #{tpu_custom_call.1} parent=23 // pred_region
          %s154 = smul.u32 32, %s14
          %p155 = scmp.lt.s32.totalorder %s154, 63
          %s156 = scalar_select %p155, %s154, 63
          %s157 = smul.addr %s156, 8
          %s158 = scalar_lea.vmem %s0, %s157
          %s159 = smul.u32 32, %s14
        $region28: #{tpu_custom_call.1} parent=23 // pred_fallthru
          _
      $region24: #{tpu_custom_call.1} parent=5 // pred_fallthru
        _
      %p160 = scmp.le.s32.totalorder 1, %s14
      %p161 = scmp.lt.s32.totalorder %s14, 3
      %p162 = pnand %p160, %p161
      %p163 = pneg %p162
      // Predicated region
      $region29: #{tpu_custom_call.1} parent=5 // pred_check
        _
      $region30: #{tpu_custom_call.1} parent=5 // pred_check_branch
        %165 = sbr.rel (%p162) target = $region32
      $region31: #{tpu_custom_call.1} parent=5 // pred_region
        %s166 = ssub.s32 %s14, 1
        // Predicated region
        $region33: #{tpu_custom_call.1} parent=31 // pred_check
          %p167 = pneg %p61
        $region34: #{tpu_custom_call.1} parent=31 // pred_check_branch
          %169 = sbr.rel (%p167) target = $region36
        $region35: #{tpu_custom_call.1} parent=31 // pred_region
          %170 = dma.done [#allocation3], 37376
        $region36: #{tpu_custom_call.1} parent=31 // pred_fallthru
          _
        // Predicated region
        $region37: #{tpu_custom_call.1} parent=31 // pred_check
          %p171 = pneg %p82
        $region38: #{tpu_custom_call.1} parent=31 // pred_check_branch
          %173 = sbr.rel (%p171) target = $region40
        $region39: #{tpu_custom_call.1} parent=31 // pred_region
          %174 = dma.done [#allocation6], 512
        $region40: #{tpu_custom_call.1} parent=31 // pred_fallthru
          _
        %s175 = smul.u32 32, %s19
        %p176 = scmp.lt.s32.totalorder %s175, 63
        %s177 = scalar_select %p176, %s175, 63
        %s178 = smul.addr %s177, 8
        %s179 = scalar_lea.vmem %s0, %s178
        %p180 = pneg %p40
        %p181 = pneg %p37
        %p182 = pneg %p61
        %p183 = pneg %p58
        %p184 = pneg %p82
        %p185 = pneg %p79
        %p186 = pneg %p108
        %p187 = pneg %p105
        %s188 = sand.u32 %s95, 1
        %s189 = scalar_lea.sflag [#allocation4], %s188
        %s190 = sand.u32 %s95, 1
        %s191 = smul.addr %s190, 256
        %s192 = scalar_lea.vmem [#allocation7], %s191
        %s193 = smul.u32 32, %s19
        %p194 = scmp.lt.s32.totalorder %s193, 63
        %s195 = scalar_select %p194, %s193, 63
        %s196 = smul.addr %s195, 8
        %s197 = scalar_lea.vmem %s0, %s196
        %s198 = smul.u32 32, %s19
        %s199 = smul.u32 32, %s19
        %v201 = vld [vmem:[%s197] sm:$0xff]
        %v202 = vld [vmem:[%s197 + $0x8] sm:$0xff]
        %v203 = vld [vmem:[%s197 + $0x10] sm:$0xff]
        %v204 = vld [vmem:[%s197 + $0x18] sm:$0xff]
        %v205 = vld [vmem:[%s197 + $0x20] sm:$0xff]
        %v206 = vld [vmem:[%s197 + $0x28] sm:$0xff]
        %v207 = vld [vmem:[%s197 + $0x30] sm:$0xff]
        %v208 = vld [vmem:[%s197 + $0x38] sm:$0xff]
        %v209 = vld [vmem:[%s197 + $0x40] sm:$0xff]
        %v210 = vld [vmem:[%s197 + $0x48] sm:$0xff]
        %v211 = vld [vmem:[%s197 + $0x50] sm:$0xff]
        %v212 = vld [vmem:[%s197 + $0x58] sm:$0xff]
        %v213 = vld [vmem:[%s197 + $0x60] sm:$0xff]
        %v214 = vld [vmem:[%s197 + $0x68] sm:$0xff]
        %v215 = vld [vmem:[%s197 + $0x70] sm:$0xff]
        %v216 = vld [vmem:[%s197 + $0x78] sm:$0xff]
        %v217 = vld [vmem:[%s197 + $0x80] sm:$0xff]
        %v218 = vld [vmem:[%s197 + $0x88] sm:$0xff]
        %v219 = vld [vmem:[%s197 + $0x90] sm:$0xff]
        %v220 = vld [vmem:[%s197 + $0x98] sm:$0xff]
        %v221 = vld [vmem:[%s197 + $0xa0] sm:$0xff]
        %v222 = vld [vmem:[%s197 + $0xa8] sm:$0xff]
        %v223 = vld [vmem:[%s197 + $0xb0] sm:$0xff]
        %v224 = vld [vmem:[%s197 + $0xb8] sm:$0xff]
        %v225 = vld [vmem:[%s197 + $0xc0] sm:$0xff]
        %v226 = vld [vmem:[%s197 + $0xc8] sm:$0xff]
        %v227 = vld [vmem:[%s197 + $0xd0] sm:$0xff]
        %v228 = vld [vmem:[%s197 + $0xd8] sm:$0xff]
        %v229 = vld [vmem:[%s197 + $0xe0] sm:$0xff]
        %v230 = vld [vmem:[%s197 + $0xe8] sm:$0xff]
        %v231 = vld [vmem:[%s197 + $0xf0] sm:$0xff]
        %v232 = vld [vmem:[%s197 + $0xf8] sm:$0xff]
        %v233 = vld [vmem:[#allocation2] sm:$0xf]
        %v234 = vld [vmem:[#allocation2 + $0x10] sm:$0xf]
        %v235 = vld [vmem:[#allocation5] ss:$0 sm:$0xff]
        %v236 = vpack.c.bf16 %v202, %v201
        %v237 = vpack.c.bf16 %v204, %v203
        %v238 = vpack.c.bf16 %v206, %v205
        %v239 = vpack.c.bf16 %v208, %v207
        %v240 = vpack.c.bf16 %v210, %v209
        %v241 = vpack.c.bf16 %v212, %v211
        %v242 = vpack.c.bf16 %v214, %v213
        %v243 = vpack.c.bf16 %v216, %v215
        %v244 = vpack.c.bf16 %v218, %v217
        %v245 = vpack.c.bf16 %v220, %v219
        %v246 = vpack.c.bf16 %v222, %v221
        %v247 = vpack.c.bf16 %v224, %v223
        %v248 = vpack.c.bf16 %v226, %v225
        %v249 = vpack.c.bf16 %v228, %v227
        %v250 = vpack.c.bf16 %v230, %v229
        %v251 = vpack.c.bf16 %v232, %v231
        %v254 = vunpack.c.l.b16 %v233
        %v255 = vunpack.c.l.b16 %v234
        %v256 = vpack.c.b16 %v255, %v254
        %vm258 = vcmask 130048
        %v260 = vsel %vm258, %v236, 0
        %v263 = vsel %vm258, %v237, 0
        %v266 = vsel %vm258, %v238, 0
        %v269 = vsel %vm258, %v239, 0
        %v272 = vsel %vm258, %v240, 0
        %v275 = vsel %vm258, %v241, 0
        %v278 = vsel %vm258, %v242, 0
        %v281 = vsel %vm258, %v243, 0
        %v284 = vsel %vm258, %v244, 0
        %v287 = vsel %vm258, %v245, 0
        %v290 = vsel %vm258, %v246, 0
        %v293 = vsel %vm258, %v247, 0
        %v296 = vsel %vm258, %v248, 0
        %v299 = vsel %vm258, %v249, 0
        %v302 = vsel %vm258, %v250, 0
        %v305 = vsel %vm258, %v251, 0
        %307 = vmatprep.subr.bf16.mxu0 0
        %308 = vmatpush1.bf16.msra.mxu0 %v256
        %309 = vmatprep.subr.bf16.mxu0 0
        %310 = vmatpush1.bf16.msra.mxu0 0
        %311 = vmatprep.subr.bf16.mxu0 0
        %312 = vmatpush1.bf16.msra.mxu0 0
        %313 = vmatprep.subr.bf16.mxu0 0
        %314 = vmatpush1.bf16.msra.mxu0 0
        %315 = vmatprep.subr.bf16.mxu0 0
        %316 = vmatpush1.bf16.msra.mxu0 0
        %317 = vmatprep.subr.bf16.mxu0 0
        %318 = vmatpush1.bf16.msra.mxu0 0
        %319 = vmatprep.subr.bf16.mxu0 0
        %320 = vmatpush1.bf16.msra.mxu0 0
        %321 = vmatprep.subr.bf16.mxu0 0
        %322 = vmatpush1.bf16.msra.mxu0 0
        %323 = vmatprep.subr.bf16.mxu0 0
        %324 = vmatpush1.bf16.msra.mxu0 0
        %325 = vmatprep.subr.bf16.mxu0 0
        %326 = vmatpush1.bf16.msra.mxu0 0
        %327 = vmatprep.subr.bf16.mxu0 0
        %328 = vmatpush1.bf16.msra.mxu0 0
        %329 = vmatprep.subr.bf16.mxu0 0
        %330 = vmatpush1.bf16.msra.mxu0 0
        %331 = vmatprep.subr.bf16.mxu0 0
        %332 = vmatpush1.bf16.msra.mxu0 0
        %333 = vmatprep.subr.bf16.mxu0 0
        %334 = vmatpush1.bf16.msra.mxu0 0
        %335 = vmatprep.subr.bf16.mxu0 0
        %336 = vmatpush1.bf16.msra.mxu0 0
        %337 = vmatprep.subr.bf16.mxu0 0
        %338 = vmatpush1.bf16.msra.mxu0 0
        %339 = vmatprep.mubr.bf16.mxu0 0
        %340 = vmatmul.mubr.bf16.gmra.mrb[0].mxu0 %v260
        %v341 = vpop.f32.mrb[0].mxu0
        %v342 = vadd.f32 %v235, %v341
        %v343 = vpop.f32.mrb[0].mxu0
        %v344 = vpop.f32.mrb[0].mxu0
        %v345 = vadd.f32 %v235, %v344
        %v346 = vpop.f32.mrb[0].mxu0
        %347 = vmatprep.mubr.bf16.mxu0 0
        %348 = vmatmul.mubr.bf16.gmra.mrb[0].mxu0 %v263
        %v349 = vpop.f32.mrb[0].mxu0
        %v350 = vadd.f32 %v235, %v349
        %v351 = vpop.f32.mrb[0].mxu0
        %v352 = vpop.f32.mrb[0].mxu0
        %v353 = vadd.f32 %v235, %v352
        %v354 = vpop.f32.mrb[0].mxu0
        %355 = vmatprep.mubr.bf16.mxu0 0
        %356 = vmatmul.mubr.bf16.gmra.mrb[0].mxu0 %v266
        %v357 = vpop.f32.mrb[0].mxu0
        %v358 = vadd.f32 %v235, %v357
        %v359 = vpop.f32.mrb[0].mxu0
        %v360 = vpop.f32.mrb[0].mxu0
        %v361 = vadd.f32 %v235, %v360
        %v362 = vpop.f32.mrb[0].mxu0
        %363 = vmatprep.mubr.bf16.mxu0 0
        %364 = vmatmul.mubr.bf16.gmra.mrb[0].mxu0 %v269
        %v365 = vpop.f32.mrb[0].mxu0
        %v366 = vadd.f32 %v235, %v365
        %v367 = vpop.f32.mrb[0].mxu0
        %v368 = vpop.f32.mrb[0].mxu0
        %v369 = vadd.f32 %v235, %v368
        %v370 = vpop.f32.mrb[0].mxu0
        %371 = vmatprep.mubr.bf16.mxu0 0
        %372 = vmatmul.mubr.bf16.gmra.mrb[0].mxu0 %v272
        %v373 = vpop.f32.mrb[0].mxu0
        %v374 = vadd.f32 %v235, %v373
        %v375 = vpop.f32.mrb[0].mxu0
        %v376 = vpop.f32.mrb[0].mxu0
        %v377 = vadd.f32 %v235, %v376
        %v378 = vpop.f32.mrb[0].mxu0
        %379 = vmatprep.mubr.bf16.mxu0 0
        %380 = vmatmul.mubr.bf16.gmra.mrb[0].mxu0 %v275
        %v381 = vpop.f32.mrb[0].mxu0
        %v382 = vadd.f32 %v235, %v381
        %v383 = vpop.f32.mrb[0].mxu0
        %v384 = vpop.f32.mrb[0].mxu0
        %v385 = vadd.f32 %v235, %v384
        %v386 = vpop.f32.mrb[0].mxu0
        %387 = vmatprep.mubr.bf16.mxu0 0
        %388 = vmatmul.mubr.bf16.gmra.mrb[0].mxu0 %v278
        %v389 = vpop.f32.mrb[0].mxu0
        %v390 = vadd.f32 %v235, %v389
        %v391 = vpop.f32.mrb[0].mxu0
        %v392 = vpop.f32.mrb[0].mxu0
        %v393 = vadd.f32 %v235, %v392
        %v394 = vpop.f32.mrb[0].mxu0
        %395 = vmatprep.mubr.bf16.mxu0 0
        %396 = vmatmul.mubr.bf16.gmra.mrb[0].mxu0 %v281
        %v397 = vpop.f32.mrb[0].mxu0
        %v398 = vadd.f32 %v235, %v397
        %v399 = vpop.f32.mrb[0].mxu0
        %v400 = vpop.f32.mrb[0].mxu0
        %v401 = vadd.f32 %v235, %v400
        %v402 = vpop.f32.mrb[0].mxu0
        %403 = vmatprep.mubr.bf16.mxu0 0
        %404 = vmatmul.mubr.bf16.gmra.mrb[0].mxu0 %v284
        %v405 = vpop.f32.mrb[0].mxu0
        %v406 = vadd.f32 %v235, %v405
        %v407 = vpop.f32.mrb[0].mxu0
        %v408 = vpop.f32.mrb[0].mxu0
        %v409 = vadd.f32 %v235, %v408
        %v410 = vpop.f32.mrb[0].mxu0
        %411 = vmatprep.mubr.bf16.mxu0 0
        %412 = vmatmul.mubr.bf16.gmra.mrb[0].mxu0 %v287
        %v413 = vpop.f32.mrb[0].mxu0
        %v414 = vadd.f32 %v235, %v413
        %v415 = vpop.f32.mrb[0].mxu0
        %v416 = vpop.f32.mrb[0].mxu0
        %v417 = vadd.f32 %v235, %v416
        %v418 = vpop.f32.mrb[0].mxu0
        %419 = vmatprep.mubr.bf16.mxu0 0
        %420 = vmatmul.mubr.bf16.gmra.mrb[0].mxu0 %v290
        %v421 = vpop.f32.mrb[0].mxu0
        %v422 = vadd.f32 %v235, %v421
        %v423 = vpop.f32.mrb[0].mxu0
        %v424 = vpop.f32.mrb[0].mxu0
        %v425 = vadd.f32 %v235, %v424
        %v426 = vpop.f32.mrb[0].mxu0
        %427 = vmatprep.mubr.bf16.mxu0 0
        %428 = vmatmul.mubr.bf16.gmra.mrb[0].mxu0 %v293
        %v429 = vpop.f32.mrb[0].mxu0
        %v430 = vadd.f32 %v235, %v429
        %v431 = vpop.f32.mrb[0].mxu0
        %v432 = vpop.f32.mrb[0].mxu0
        %v433 = vadd.f32 %v235, %v432
        %v434 = vpop.f32.mrb[0].mxu0
        %435 = vmatprep.mubr.bf16.mxu0 0
        %436 = vmatmul.mubr.bf16.gmra.mrb[0].mxu0 %v296
        %v437 = vpop.f32.mrb[0].mxu0
        %v438 = vadd.f32 %v235, %v437
        %v439 = vpop.f32.mrb[0].mxu0
        %v440 = vpop.f32.mrb[0].mxu0
        %v441 = vadd.f32 %v235, %v440
        %v442 = vpop.f32.mrb[0].mxu0
        %443 = vmatprep.mubr.bf16.mxu0 0
        %444 = vmatmul.mubr.bf16.gmra.mrb[0].mxu0 %v299
        %v445 = vpop.f32.mrb[0].mxu0
        %v446 = vadd.f32 %v235, %v445
        %v447 = vpop.f32.mrb[0].mxu0
        %v448 = vpop.f32.mrb[0].mxu0
        %v449 = vadd.f32 %v235, %v448
        %v450 = vpop.f32.mrb[0].mxu0
        %451 = vmatprep.mubr.bf16.mxu0 0
        %452 = vmatmul.mubr.bf16.gmra.mrb[0].mxu0 %v302
        %v453 = vpop.f32.mrb[0].mxu0
        %v454 = vadd.f32 %v235, %v453
        %v455 = vpop.f32.mrb[0].mxu0
        %v456 = vpop.f32.mrb[0].mxu0
        %v457 = vadd.f32 %v235, %v456
        %v458 = vpop.f32.mrb[0].mxu0
        %459 = vmatprep.mubr.bf16.mxu0 0
        %460 = vmatmul.mubr.bf16.gmra.mrb[0].mxu0 %v305
        %v461 = vpop.f32.mrb[0].mxu0
        %v462 = vadd.f32 %v235, %v461
        %v463 = vpop.f32.mrb[0].mxu0
        %v464 = vpop.f32.mrb[0].mxu0
        %v465 = vadd.f32 %v235, %v464
        %v466 = vpop.f32.mrb[0].mxu0
        %467 = vdwg.mxu0
        %vm468 = vcmp.gt.f32.partialorder %v342, 0.0
        %vm469 = vcmp.gt.f32.partialorder %v345, 0.0
        %vm470 = vcmp.gt.f32.partialorder %v350, 0.0
        %vm471 = vcmp.gt.f32.partialorder %v353, 0.0
        %vm472 = vcmp.gt.f32.partialorder %v358, 0.0
        %vm473 = vcmp.gt.f32.partialorder %v361, 0.0
        %vm474 = vcmp.gt.f32.partialorder %v366, 0.0
        %vm475 = vcmp.gt.f32.partialorder %v369, 0.0
        %vm476 = vcmp.gt.f32.partialorder %v374, 0.0
        %vm477 = vcmp.gt.f32.partialorder %v377, 0.0
        %vm478 = vcmp.gt.f32.partialorder %v382, 0.0
        %vm479 = vcmp.gt.f32.partialorder %v385, 0.0
        %vm480 = vcmp.gt.f32.partialorder %v390, 0.0
        %vm481 = vcmp.gt.f32.partialorder %v393, 0.0
        %vm482 = vcmp.gt.f32.partialorder %v398, 0.0
        %vm483 = vcmp.gt.f32.partialorder %v401, 0.0
        %vm484 = vcmp.gt.f32.partialorder %v406, 0.0
        %vm485 = vcmp.gt.f32.partialorder %v409, 0.0
        %vm486 = vcmp.gt.f32.partialorder %v414, 0.0
        %vm487 = vcmp.gt.f32.partialorder %v417, 0.0
        %vm488 = vcmp.gt.f32.partialorder %v422, 0.0
        %vm489 = vcmp.gt.f32.partialorder %v425, 0.0
        %vm490 = vcmp.gt.f32.partialorder %v430, 0.0
        %vm491 = vcmp.gt.f32.partialorder %v433, 0.0
        %vm492 = vcmp.gt.f32.partialorder %v438, 0.0
        %vm493 = vcmp.gt.f32.partialorder %v441, 0.0
        %vm494 = vcmp.gt.f32.partialorder %v446, 0.0
        %vm495 = vcmp.gt.f32.partialorder %v449, 0.0
        %vm496 = vcmp.gt.f32.partialorder %v454, 0.0
        %vm497 = vcmp.gt.f32.partialorder %v457, 0.0
        %vm498 = vcmp.gt.f32.partialorder %v462, 0.0
        %vm499 = vcmp.gt.f32.partialorder %v465, 0.0
        %v500 = vmul.f32 %v342, 0.01
        %v501 = vmul.f32 %v345, 0.01
        %v502 = vmul.f32 %v350, 0.01
        %v503 = vmul.f32 %v353, 0.01
        %v504 = vmul.f32 %v358, 0.01
        %v505 = vmul.f32 %v361, 0.01
        %v506 = vmul.f32 %v366, 0.01
        %v507 = vmul.f32 %v369, 0.01
        %v508 = vmul.f32 %v374, 0.01
        %v509 = vmul.f32 %v377, 0.01
        %v510 = vmul.f32 %v382, 0.01
        %v511 = vmul.f32 %v385, 0.01
        %v512 = vmul.f32 %v390, 0.01
        %v513 = vmul.f32 %v393, 0.01
        %v514 = vmul.f32 %v398, 0.01
        %v515 = vmul.f32 %v401, 0.01
        %v516 = vmul.f32 %v406, 0.01
        %v517 = vmul.f32 %v409, 0.01
        %v518 = vmul.f32 %v414, 0.01
        %v519 = vmul.f32 %v417, 0.01
        %v520 = vmul.f32 %v422, 0.01
        %v521 = vmul.f32 %v425, 0.01
        %v522 = vmul.f32 %v430, 0.01
        %v523 = vmul.f32 %v433, 0.01
        %v524 = vmul.f32 %v438, 0.01
        %v525 = vmul.f32 %v441, 0.01
        %v526 = vmul.f32 %v446, 0.01
        %v527 = vmul.f32 %v449, 0.01
        %v528 = vmul.f32 %v454, 0.01
        %v529 = vmul.f32 %v457, 0.01
        %v530 = vmul.f32 %v462, 0.01
        %v531 = vmul.f32 %v465, 0.01
        %v532 = vsel %vm468, %v342, %v500
        %v533 = vsel %vm469, %v345, %v501
        %v534 = vsel %vm470, %v350, %v502
        %v535 = vsel %vm471, %v353, %v503
        %v536 = vsel %vm472, %v358, %v504
        %v537 = vsel %vm473, %v361, %v505
        %v538 = vsel %vm474, %v366, %v506
        %v539 = vsel %vm475, %v369, %v507
        %v540 = vsel %vm476, %v374, %v508
        %v541 = vsel %vm477, %v377, %v509
        %v542 = vsel %vm478, %v382, %v510
        %v543 = vsel %vm479, %v385, %v511
        %v544 = vsel %vm480, %v390, %v512
        %v545 = vsel %vm481, %v393, %v513
        %v546 = vsel %vm482, %v398, %v514
        %v547 = vsel %vm483, %v401, %v515
        %v548 = vsel %vm484, %v406, %v516
        %v549 = vsel %vm485, %v409, %v517
        %v550 = vsel %vm486, %v414, %v518
        %v551 = vsel %vm487, %v417, %v519
        %v552 = vsel %vm488, %v422, %v520
        %v553 = vsel %vm489, %v425, %v521
        %v554 = vsel %vm490, %v430, %v522
        %v555 = vsel %vm491, %v433, %v523
        %v556 = vsel %vm492, %v438, %v524
        %v557 = vsel %vm493, %v441, %v525
        %v558 = vsel %vm494, %v446, %v526
        %v559 = vsel %vm495, %v449, %v527
        %v560 = vsel %vm496, %v454, %v528
        %v561 = vsel %vm497, %v457, %v529
        %v562 = vsel %vm498, %v462, %v530
        %v563 = vsel %vm499, %v465, %v531
        %v564 = vld [vmem:[#allocation2 + $0x20] sm:$0xf]
        %v565 = vld [vmem:[#allocation2 + $0x30] sm:$0xf]
        %v566 = vld [vmem:[#allocation2 + $0x40] sm:$0xf]
        %v567 = vld [vmem:[#allocation2 + $0x50] sm:$0xf]
        %v568 = vld [vmem:[#allocation2 + $0x60] sm:$0xf]
        %v569 = vld [vmem:[#allocation2 + $0x70] sm:$0xf]
        %v570 = vld [vmem:[#allocation2 + $0x80] sm:$0xf]
        %v571 = vld [vmem:[#allocation2 + $0x90] sm:$0xf]
        %v572 = vld [vmem:[#allocation2 + $0xa0] sm:$0xf]
        %v573 = vld [vmem:[#allocation2 + $0xb0] sm:$0xf]
        %v574 = vld [vmem:[#allocation2 + $0xc0] sm:$0xf]
        %v575 = vld [vmem:[#allocation2 + $0xd0] sm:$0xf]
        %v576 = vld [vmem:[#allocation2 + $0xe0] sm:$0xf]
        %v577 = vld [vmem:[#allocation2 + $0xf0] sm:$0xf]
        %v578 = vld [vmem:[#allocation2 + $0x100] sm:$0xf]
        %v579 = vld [vmem:[#allocation2 + $0x110] sm:$0xf]
        %v580 = vld [vmem:[#allocation5 + $0x1] ss:$0 sm:$0xff]
        %v581 = vpack.c.bf16 %v533, %v532
        %v582 = vpack.c.bf16 %v535, %v534
        %v583 = vpack.c.bf16 %v537, %v536
        %v584 = vpack.c.bf16 %v539, %v538
        %v585 = vpack.c.bf16 %v541, %v540
        %v586 = vpack.c.bf16 %v543, %v542
        %v587 = vpack.c.bf16 %v545, %v544
        %v588 = vpack.c.bf16 %v547, %v546
        %v589 = vpack.c.bf16 %v549, %v548
        %v590 = vpack.c.bf16 %v551, %v550
        %v591 = vpack.c.bf16 %v553, %v552
        %v592 = vpack.c.bf16 %v555, %v554
        %v593 = vpack.c.bf16 %v557, %v556
        %v594 = vpack.c.bf16 %v559, %v558
        %v595 = vpack.c.bf16 %v561, %v560
        %v596 = vpack.c.bf16 %v563, %v562
        %v613 = vunpack.c.l.b16 %v564
        %v614 = vunpack.c.l.b16 %v565
        %v615 = vunpack.c.l.b16 %v566
        %v616 = vunpack.c.l.b16 %v567
        %v617 = vunpack.c.l.b16 %v568
        %v618 = vunpack.c.l.b16 %v569
        %v619 = vunpack.c.l.b16 %v570
        %v620 = vunpack.c.l.b16 %v571
        %v621 = vunpack.c.l.b16 %v572
        %v622 = vunpack.c.l.b16 %v573
        %v623 = vunpack.c.l.b16 %v574
        %v624 = vunpack.c.l.b16 %v575
        %v625 = vunpack.c.l.b16 %v576
        %v626 = vunpack.c.l.b16 %v577
        %v627 = vunpack.c.l.b16 %v578
        %v628 = vunpack.c.l.b16 %v579
        %v629 = vpack.c.b16 %v614, %v613
        %v630 = vpack.c.b16 %v616, %v615
        %v631 = vpack.c.b16 %v618, %v617
        %v632 = vpack.c.b16 %v620, %v619
        %v633 = vpack.c.b16 %v622, %v621
        %v634 = vpack.c.b16 %v624, %v623
        %v635 = vpack.c.b16 %v626, %v625
        %v636 = vpack.c.b16 %v628, %v627
        %645 = vmatprep.subr.bf16.mxu0 0
        %646 = vmatpush1.bf16.msra.mxu0 %v629
        %647 = vmatprep.subr.bf16.mxu0 0
        %648 = vmatpush1.bf16.msra.mxu0 %v630
        %649 = vmatprep.subr.bf16.mxu0 0
        %650 = vmatpush1.bf16.msra.mxu0 %v631
        %651 = vmatprep.subr.bf16.mxu0 0
        %652 = vmatpush1.bf16.msra.mxu0 %v632
        %653 = vmatprep.subr.bf16.mxu0 0
        %654 = vmatpush1.bf16.msra.mxu0 %v633
        %655 = vmatprep.subr.bf16.mxu0 0
        %656 = vmatpush1.bf16.msra.mxu0 %v634
        %657 = vmatprep.subr.bf16.mxu0 0
        %658 = vmatpush1.bf16.msra.mxu0 %v635
        %659 = vmatprep.subr.bf16.mxu0 0
        %660 = vmatpush1.bf16.msra.mxu0 %v636
        %661 = vmatprep.subr.bf16.mxu0 0
        %662 = vmatpush1.bf16.msra.mxu0 0
        %663 = vmatprep.subr.bf16.mxu0 0
        %664 = vmatpush1.bf16.msra.mxu0 0
        %665 = vmatprep.subr.bf16.mxu0 0
        %666 = vmatpush1.bf16.msra.mxu0 0
        %667 = vmatprep.subr.bf16.mxu0 0
        %668 = vmatpush1.bf16.msra.mxu0 0
        %669 = vmatprep.subr.bf16.mxu0 0
        %670 = vmatpush1.bf16.msra.mxu0 0
        %671 = vmatprep.subr.bf16.mxu0 0
        %672 = vmatpush1.bf16.msra.mxu0 0
        %673 = vmatprep.subr.bf16.mxu0 0
        %674 = vmatpush1.bf16.msra.mxu0 0
        %675 = vmatprep.subr.bf16.mxu0 0
        %676 = vmatpush1.bf16.msra.mxu0 0
        %677 = vmatprep.mubr.bf16.mxu0 0
        %678 = vmatmul.mubr.bf16.gmra.mrb[0].mxu0 %v581
        %v679 = vpop.f32.mrb[0].mxu0
        %v680 = vadd.f32 %v580, %v679
        %v681 = vpop.f32.mrb[0].mxu0
        %v682 = vpop.f32.mrb[0].mxu0
        %v683 = vadd.f32 %v580, %v682
        %v684 = vpop.f32.mrb[0].mxu0
        %685 = vmatprep.mubr.bf16.mxu0 0
        %686 = vmatmul.mubr.bf16.gmra.mrb[0].mxu0 %v582
        %v687 = vpop.f32.mrb[0].mxu0
        %v688 = vadd.f32 %v580, %v687
        %v689 = vpop.f32.mrb[0].mxu0
        %v690 = vpop.f32.mrb[0].mxu0
        %v691 = vadd.f32 %v580, %v690
        %v692 = vpop.f32.mrb[0].mxu0
        %693 = vmatprep.mubr.bf16.mxu0 0
        %694 = vmatmul.mubr.bf16.gmra.mrb[0].mxu0 %v583
        %v695 = vpop.f32.mrb[0].mxu0
        %v696 = vadd.f32 %v580, %v695
        %v697 = vpop.f32.mrb[0].mxu0
        %v698 = vpop.f32.mrb[0].mxu0
        %v699 = vadd.f32 %v580, %v698
        %v700 = vpop.f32.mrb[0].mxu0
        %701 = vmatprep.mubr.bf16.mxu0 0
        %702 = vmatmul.mubr.bf16.gmra.mrb[0].mxu0 %v584
        %v703 = vpop.f32.mrb[0].mxu0
        %v704 = vadd.f32 %v580, %v703
        %v705 = vpop.f32.mrb[0].mxu0
        %v706 = vpop.f32.mrb[0].mxu0
        %v707 = vadd.f32 %v580, %v706
        %v708 = vpop.f32.mrb[0].mxu0
        %709 = vmatprep.mubr.bf16.mxu0 0
        %710 = vmatmul.mubr.bf16.gmra.mrb[0].mxu0 %v585
        %v711 = vpop.f32.mrb[0].mxu0
        %v712 = vadd.f32 %v580, %v711
        %v713 = vpop.f32.mrb[0].mxu0
        %v714 = vpop.f32.mrb[0].mxu0
        %v715 = vadd.f32 %v580, %v714
        %v716 = vpop.f32.mrb[0].mxu0
        %717 = vmatprep.mubr.bf16.mxu0 0
        %718 = vmatmul.mubr.bf16.gmra.mrb[0].mxu0 %v586
        %v719 = vpop.f32.mrb[0].mxu0
        %v720 = vadd.f32 %v580, %v719
        %v721 = vpop.f32.mrb[0].mxu0
        %v722 = vpop.f32.mrb[0].mxu0
        %v723 = vadd.f32 %v580, %v722
        %v724 = vpop.f32.mrb[0].mxu0
        %725 = vmatprep.mubr.bf16.mxu0 0
        %726 = vmatmul.mubr.bf16.gmra.mrb[0].mxu0 %v587
        %v727 = vpop.f32.mrb[0].mxu0
        %v728 = vadd.f32 %v580, %v727
        %v729 = vpop.f32.mrb[0].mxu0
        %v730 = vpop.f32.mrb[0].mxu0
        %v731 = vadd.f32 %v580, %v730
        %v732 = vpop.f32.mrb[0].mxu0
        %733 = vmatprep.mubr.bf16.mxu0 0
        %734 = vmatmul.mubr.bf16.gmra.mrb[0].mxu0 %v588
        %v735 = vpop.f32.mrb[0].mxu0
        %v736 = vadd.f32 %v580, %v735
        %v737 = vpop.f32.mrb[0].mxu0
        %v738 = vpop.f32.mrb[0].mxu0
        %v739 = vadd.f32 %v580, %v738
        %v740 = vpop.f32.mrb[0].mxu0
        %741 = vmatprep.mubr.bf16.mxu0 0
        %742 = vmatmul.mubr.bf16.gmra.mrb[0].mxu0 %v589
        %v743 = vpop.f32.mrb[0].mxu0
        %v744 = vadd.f32 %v580, %v743
        %v745 = vpop.f32.mrb[0].mxu0
        %v746 = vpop.f32.mrb[0].mxu0
        %v747 = vadd.f32 %v580, %v746
        %v748 = vpop.f32.mrb[0].mxu0
        %749 = vmatprep.mubr.bf16.mxu0 0
        %750 = vmatmul.mubr.bf16.gmra.mrb[0].mxu0 %v590
        %v751 = vpop.f32.mrb[0].mxu0
        %v752 = vadd.f32 %v580, %v751
        %v753 = vpop.f32.mrb[0].mxu0
        %v754 = vpop.f32.mrb[0].mxu0
        %v755 = vadd.f32 %v580, %v754
        %v756 = vpop.f32.mrb[0].mxu0
        %757 = vmatprep.mubr.bf16.mxu0 0
        %758 = vmatmul.mubr.bf16.gmra.mrb[0].mxu0 %v591
        %v759 = vpop.f32.mrb[0].mxu0
        %v760 = vadd.f32 %v580, %v759
        %v761 = vpop.f32.mrb[0].mxu0
        %v762 = vpop.f32.mrb[0].mxu0
        %v763 = vadd.f32 %v580, %v762
        %v764 = vpop.f32.mrb[0].mxu0
        %765 = vmatprep.mubr.bf16.mxu0 0
        %766 = vmatmul.mubr.bf16.gmra.mrb[0].mxu0 %v592
        %v767 = vpop.f32.mrb[0].mxu0
        %v768 = vadd.f32 %v580, %v767
        %v769 = vpop.f32.mrb[0].mxu0
        %v770 = vpop.f32.mrb[0].mxu0
        %v771 = vadd.f32 %v580, %v770
        %v772 = vpop.f32.mrb[0].mxu0
        %773 = vmatprep.mubr.bf16.mxu0 0
        %774 = vmatmul.mubr.bf16.gmra.mrb[0].mxu0 %v593
        %v775 = vpop.f32.mrb[0].mxu0
        %v776 = vadd.f32 %v580, %v775
        %v777 = vpop.f32.mrb[0].mxu0
        %v778 = vpop.f32.mrb[0].mxu0
        %v779 = vadd.f32 %v580, %v778
        %v780 = vpop.f32.mrb[0].mxu0
        %781 = vmatprep.mubr.bf16.mxu0 0
        %782 = vmatmul.mubr.bf16.gmra.mrb[0].mxu0 %v594
        %v783 = vpop.f32.mrb[0].mxu0
        %v784 = vadd.f32 %v580, %v783
        %v785 = vpop.f32.mrb[0].mxu0
        %v786 = vpop.f32.mrb[0].mxu0
        %v787 = vadd.f32 %v580, %v786
        %v788 = vpop.f32.mrb[0].mxu0
        %789 = vmatprep.mubr.bf16.mxu0 0
        %790 = vmatmul.mubr.bf16.gmra.mrb[0].mxu0 %v595
        %v791 = vpop.f32.mrb[0].mxu0
        %v792 = vadd.f32 %v580, %v791
        %v793 = vpop.f32.mrb[0].mxu0
        %v794 = vpop.f32.mrb[0].mxu0
        %v795 = vadd.f32 %v580, %v794
        %v796 = vpop.f32.mrb[0].mxu0
        %797 = vmatprep.mubr.bf16.mxu0 0
        %798 = vmatmul.mubr.bf16.gmra.mrb[0].mxu0 %v596
        %v799 = vpop.f32.mrb[0].mxu0
        %v800 = vadd.f32 %v580, %v799
        %v801 = vpop.f32.mrb[0].mxu0
        %v802 = vpop.f32.mrb[0].mxu0
        %v803 = vadd.f32 %v580, %v802
        %v804 = vpop.f32.mrb[0].mxu0
        %805 = vdwg.mxu0
        %vm806 = vcmp.gt.f32.partialorder %v680, 0.0
        %vm807 = vcmp.gt.f32.partialorder %v683, 0.0
        %vm808 = vcmp.gt.f32.partialorder %v688, 0.0
        %vm809 = vcmp.gt.f32.partialorder %v691, 0.0
        %vm810 = vcmp.gt.f32.partialorder %v696, 0.0
        %vm811 = vcmp.gt.f32.partialorder %v699, 0.0
        %vm812 = vcmp.gt.f32.partialorder %v704, 0.0
        %vm813 = vcmp.gt.f32.partialorder %v707, 0.0
        %vm814 = vcmp.gt.f32.partialorder %v712, 0.0
        %vm815 = vcmp.gt.f32.partialorder %v715, 0.0
        %vm816 = vcmp.gt.f32.partialorder %v720, 0.0
        %vm817 = vcmp.gt.f32.partialorder %v723, 0.0
        %vm818 = vcmp.gt.f32.partialorder %v728, 0.0
        %vm819 = vcmp.gt.f32.partialorder %v731, 0.0
        %vm820 = vcmp.gt.f32.partialorder %v736, 0.0
        %vm821 = vcmp.gt.f32.partialorder %v739, 0.0
        %vm822 = vcmp.gt.f32.partialorder %v744, 0.0
        %vm823 = vcmp.gt.f32.partialorder %v747, 0.0
        %vm824 = vcmp.gt.f32.partialorder %v752, 0.0
        %vm825 = vcmp.gt.f32.partialorder %v755, 0.0
        %vm826 = vcmp.gt.f32.partialorder %v760, 0.0
        %vm827 = vcmp.gt.f32.partialorder %v763, 0.0
        %vm828 = vcmp.gt.f32.partialorder %v768, 0.0
        %vm829 = vcmp.gt.f32.partialorder %v771, 0.0
        %vm830 = vcmp.gt.f32.partialorder %v776, 0.0
        %vm831 = vcmp.gt.f32.partialorder %v779, 0.0
        %vm832 = vcmp.gt.f32.partialorder %v784, 0.0
        %vm833 = vcmp.gt.f32.partialorder %v787, 0.0
        %vm834 = vcmp.gt.f32.partialorder %v792, 0.0
        %vm835 = vcmp.gt.f32.partialorder %v795, 0.0
        %vm836 = vcmp.gt.f32.partialorder %v800, 0.0
        %vm837 = vcmp.gt.f32.partialorder %v803, 0.0
        %v838 = vmul.f32 %v680, 0.01
        %v839 = vmul.f32 %v683, 0.01
        %v840 = vmul.f32 %v688, 0.01
        %v841 = vmul.f32 %v691, 0.01
        %v842 = vmul.f32 %v696, 0.01
        %v843 = vmul.f32 %v699, 0.01
        %v844 = vmul.f32 %v704, 0.01
        %v845 = vmul.f32 %v707, 0.01
        %v846 = vmul.f32 %v712, 0.01
        %v847 = vmul.f32 %v715, 0.01
        %v848 = vmul.f32 %v720, 0.01
        %v849 = vmul.f32 %v723, 0.01
        %v850 = vmul.f32 %v728, 0.01
        %v851 = vmul.f32 %v731, 0.01
        %v852 = vmul.f32 %v736, 0.01
        %v853 = vmul.f32 %v739, 0.01
        %v854 = vmul.f32 %v744, 0.01
        %v855 = vmul.f32 %v747, 0.01
        %v856 = vmul.f32 %v752, 0.01
        %v857 = vmul.f32 %v755, 0.01
        %v858 = vmul.f32 %v760, 0.01
        %v859 = vmul.f32 %v763, 0.01
        %v860 = vmul.f32 %v768, 0.01
        %v861 = vmul.f32 %v771, 0.01
        %v862 = vmul.f32 %v776, 0.01
        %v863 = vmul.f32 %v779, 0.01
        %v864 = vmul.f32 %v784, 0.01
        %v865 = vmul.f32 %v787, 0.01
        %v866 = vmul.f32 %v792, 0.01
        %v867 = vmul.f32 %v795, 0.01
        %v868 = vmul.f32 %v800, 0.01
        %v869 = vmul.f32 %v803, 0.01
        %v870 = vsel %vm806, %v680, %v838
        %v871 = vsel %vm807, %v683, %v839
        %v872 = vsel %vm808, %v688, %v840
        %v873 = vsel %vm809, %v691, %v841
        %v874 = vsel %vm810, %v696, %v842
        %v875 = vsel %vm811, %v699, %v843
        %v876 = vsel %vm812, %v704, %v844
        %v877 = vsel %vm813, %v707, %v845
        %v878 = vsel %vm814, %v712, %v846
        %v879 = vsel %vm815, %v715, %v847
        %v880 = vsel %vm816, %v720, %v848
        %v881 = vsel %vm817, %v723, %v849
        %v882 = vsel %vm818, %v728, %v850
        %v883 = vsel %vm819, %v731, %v851
        %v884 = vsel %vm820, %v736, %v852
        %v885 = vsel %vm821, %v739, %v853
        %v886 = vsel %vm822, %v744, %v854
        %v887 = vsel %vm823, %v747, %v855
        %v888 = vsel %vm824, %v752, %v856
        %v889 = vsel %vm825, %v755, %v857
        %v890 = vsel %vm826, %v760, %v858
        %v891 = vsel %vm827, %v763, %v859
        %v892 = vsel %vm828, %v768, %v860
        %v893 = vsel %vm829, %v771, %v861
        %v894 = vsel %vm830, %v776, %v862
        %v895 = vsel %vm831, %v779, %v863
        %v896 = vsel %vm832, %v784, %v864
        %v897 = vsel %vm833, %v787, %v865
        %v898 = vsel %vm834, %v792, %v866
        %v899 = vsel %vm835, %v795, %v867
        %v900 = vsel %vm836, %v800, %v868
        %v901 = vsel %vm837, %v803, %v869
        %v902 = vld [vmem:[#allocation2 + $0x120] sm:$0xf]
        %v903 = vld [vmem:[#allocation2 + $0x130] sm:$0xf]
        %v904 = vld [vmem:[#allocation2 + $0x140] sm:$0xf]
        %v905 = vld [vmem:[#allocation2 + $0x150] sm:$0xf]
        %v906 = vld [vmem:[#allocation2 + $0x160] sm:$0xf]
        %v907 = vld [vmem:[#allocation2 + $0x170] sm:$0xf]
        %v908 = vld [vmem:[#allocation2 + $0x180] sm:$0xf]
        %v909 = vld [vmem:[#allocation2 + $0x190] sm:$0xf]
        %v910 = vld [vmem:[#allocation2 + $0x1a0] sm:$0xf]
        %v911 = vld [vmem:[#allocation2 + $0x1b0] sm:$0xf]
        %v912 = vld [vmem:[#allocation2 + $0x1c0] sm:$0xf]
        %v913 = vld [vmem:[#allocation2 + $0x1d0] sm:$0xf]
        %v914 = vld [vmem:[#allocation2 + $0x1e0] sm:$0xf]
        %v915 = vld [vmem:[#allocation2 + $0x1f0] sm:$0xf]
        %v916 = vld [vmem:[#allocation2 + $0x200] sm:$0xf]
        %v917 = vld [vmem:[#allocation2 + $0x210] sm:$0xf]
        %v918 = vld [vmem:[#allocation5 + $0x2] ss:$0 sm:$0xff]
        %v919 = vpack.c.bf16 %v871, %v870
        %v920 = vpack.c.bf16 %v873, %v872
        %v921 = vpack.c.bf16 %v875, %v874
        %v922 = vpack.c.bf16 %v877, %v876
        %v923 = vpack.c.bf16 %v879, %v878
        %v924 = vpack.c.bf16 %v881, %v880
        %v925 = vpack.c.bf16 %v883, %v882
        %v926 = vpack.c.bf16 %v885, %v884
        %v927 = vpack.c.bf16 %v887, %v886
        %v928 = vpack.c.bf16 %v889, %v888
        %v929 = vpack.c.bf16 %v891, %v890
        %v930 = vpack.c.bf16 %v893, %v892
        %v931 = vpack.c.bf16 %v895, %v894
        %v932 = vpack.c.bf16 %v897, %v896
        %v933 = vpack.c.bf16 %v899, %v898
        %v934 = vpack.c.bf16 %v901, %v900
        %v951 = vunpack.c.l.b16 %v902
        %v952 = vunpack.c.l.b16 %v903
        %v953 = vunpack.c.l.b16 %v904
        %v954 = vunpack.c.l.b16 %v905
        %v955 = vunpack.c.l.b16 %v906
        %v956 = vunpack.c.l.b16 %v907
        %v957 = vunpack.c.l.b16 %v908
        %v958 = vunpack.c.l.b16 %v909
        %v959 = vunpack.c.l.b16 %v910
        %v960 = vunpack.c.l.b16 %v911
        %v961 = vunpack.c.l.b16 %v912
        %v962 = vunpack.c.l.b16 %v913
        %v963 = vunpack.c.l.b16 %v914
        %v964 = vunpack.c.l.b16 %v915
        %v965 = vunpack.c.l.b16 %v916
        %v966 = vunpack.c.l.b16 %v917
        %v967 = vpack.c.b16 %v952, %v951
        %v968 = vpack.c.b16 %v954, %v953
        %v969 = vpack.c.b16 %v956, %v955
        %v970 = vpack.c.b16 %v958, %v957
        %v971 = vpack.c.b16 %v960, %v959
        %v972 = vpack.c.b16 %v962, %v961
        %v973 = vpack.c.b16 %v964, %v963
        %v974 = vpack.c.b16 %v966, %v965
        %983 = vmatprep.subr.bf16.mxu0 0
        %984 = vmatpush1.bf16.msra.mxu0 %v967
        %985 = vmatprep.subr.bf16.mxu0 0
        %986 = vmatpush1.bf16.msra.mxu0 %v968
        %987 = vmatprep.subr.bf16.mxu0 0
        %988 = vmatpush1.bf16.msra.mxu0 %v969
        %989 = vmatprep.subr.bf16.mxu0 0
        %990 = vmatpush1.bf16.msra.mxu0 %v970
        %991 = vmatprep.subr.bf16.mxu0 0
        %992 = vmatpush1.bf16.msra.mxu0 %v971
        %993 = vmatprep.subr.bf16.mxu0 0
        %994 = vmatpush1.bf16.msra.mxu0 %v972
        %995 = vmatprep.subr.bf16.mxu0 0
        %996 = vmatpush1.bf16.msra.mxu0 %v973
        %997 = vmatprep.subr.bf16.mxu0 0
        %998 = vmatpush1.bf16.msra.mxu0 %v974
        %999 = vmatprep.subr.bf16.mxu0 0
        %1000 = vmatpush1.bf16.msra.mxu0 0
        %1001 = vmatprep.subr.bf16.mxu0 0
        %1002 = vmatpush1.bf16.msra.mxu0 0
        %1003 = vmatprep.subr.bf16.mxu0 0
        %1004 = vmatpush1.bf16.msra.mxu0 0
        %1005 = vmatprep.subr.bf16.mxu0 0
        %1006 = vmatpush1.bf16.msra.mxu0 0
        %1007 = vmatprep.subr.bf16.mxu0 0
        %1008 = vmatpush1.bf16.msra.mxu0 0
        %1009 = vmatprep.subr.bf16.mxu0 0
        %1010 = vmatpush1.bf16.msra.mxu0 0
        %1011 = vmatprep.subr.bf16.mxu0 0
        %1012 = vmatpush1.bf16.msra.mxu0 0
        %1013 = vmatprep.subr.bf16.mxu0 0
        %1014 = vmatpush1.bf16.msra.mxu0 0
        %1015 = vmatprep.mubr.bf16.mxu0 0
        %1016 = vmatmul.mubr.bf16.gmra.mrb[0].mxu0 %v919
        %v1017 = vpop.f32.mrb[0].mxu0
        %v1018 = vadd.f32 %v918, %v1017
        %v1019 = vpop.f32.mrb[0].mxu0
        %v1020 = vpop.f32.mrb[0].mxu0
        %v1021 = vadd.f32 %v918, %v1020
        %v1022 = vpop.f32.mrb[0].mxu0
        %1023 = vmatprep.mubr.bf16.mxu0 0
        %1024 = vmatmul.mubr.bf16.gmra.mrb[0].mxu0 %v920
        %v1025 = vpop.f32.mrb[0].mxu0
        %v1026 = vadd.f32 %v918, %v1025
        %v1027 = vpop.f32.mrb[0].mxu0
        %v1028 = vpop.f32.mrb[0].mxu0
        %v1029 = vadd.f32 %v918, %v1028
        %v1030 = vpop.f32.mrb[0].mxu0
        %1031 = vmatprep.mubr.bf16.mxu0 0
        %1032 = vmatmul.mubr.bf16.gmra.mrb[0].mxu0 %v921
        %v1033 = vpop.f32.mrb[0].mxu0
        %v1034 = vadd.f32 %v918, %v1033
        %v1035 = vpop.f32.mrb[0].mxu0
        %v1036 = vpop.f32.mrb[0].mxu0
        %v1037 = vadd.f32 %v918, %v1036
        %v1038 = vpop.f32.mrb[0].mxu0
        %1039 = vmatprep.mubr.bf16.mxu0 0
        %1040 = vmatmul.mubr.bf16.gmra.mrb[0].mxu0 %v922
        %v1041 = vpop.f32.mrb[0].mxu0
        %v1042 = vadd.f32 %v918, %v1041
        %v1043 = vpop.f32.mrb[0].mxu0
        %v1044 = vpop.f32.mrb[0].mxu0
        %v1045 = vadd.f32 %v918, %v1044
        %v1046 = vpop.f32.mrb[0].mxu0
        %1047 = vmatprep.mubr.bf16.mxu0 0
        %1048 = vmatmul.mubr.bf16.gmra.mrb[0].mxu0 %v923
        %v1049 = vpop.f32.mrb[0].mxu0
        %v1050 = vadd.f32 %v918, %v1049
        %v1051 = vpop.f32.mrb[0].mxu0
        %v1052 = vpop.f32.mrb[0].mxu0
        %v1053 = vadd.f32 %v918, %v1052
        %v1054 = vpop.f32.mrb[0].mxu0
        %1055 = vmatprep.mubr.bf16.mxu0 0
        %1056 = vmatmul.mubr.bf16.gmra.mrb[0].mxu0 %v924
        %v1057 = vpop.f32.mrb[0].mxu0
        %v1058 = vadd.f32 %v918, %v1057
        %v1059 = vpop.f32.mrb[0].mxu0
        %v1060 = vpop.f32.mrb[0].mxu0
        %v1061 = vadd.f32 %v918, %v1060
        %v1062 = vpop.f32.mrb[0].mxu0
        %1063 = vmatprep.mubr.bf16.mxu0 0
        %1064 = vmatmul.mubr.bf16.gmra.mrb[0].mxu0 %v925
        %v1065 = vpop.f32.mrb[0].mxu0
        %v1066 = vadd.f32 %v918, %v1065
        %v1067 = vpop.f32.mrb[0].mxu0
        %v1068 = vpop.f32.mrb[0].mxu0
        %v1069 = vadd.f32 %v918, %v1068
        %v1070 = vpop.f32.mrb[0].mxu0
        %1071 = vmatprep.mubr.bf16.mxu0 0
        %1072 = vmatmul.mubr.bf16.gmra.mrb[0].mxu0 %v926
        %v1073 = vpop.f32.mrb[0].mxu0
        %v1074 = vadd.f32 %v918, %v1073
        %v1075 = vpop.f32.mrb[0].mxu0
        %v1076 = vpop.f32.mrb[0].mxu0
        %v1077 = vadd.f32 %v918, %v1076
        %v1078 = vpop.f32.mrb[0].mxu0
        %1079 = vmatprep.mubr.bf16.mxu0 0
        %1080 = vmatmul.mubr.bf16.gmra.mrb[0].mxu0 %v927
        %v1081 = vpop.f32.mrb[0].mxu0
        %v1082 = vadd.f32 %v918, %v1081
        %v1083 = vpop.f32.mrb[0].mxu0
        %v1084 = vpop.f32.mrb[0].mxu0
        %v1085 = vadd.f32 %v918, %v1084
        %v1086 = vpop.f32.mrb[0].mxu0
        %1087 = vmatprep.mubr.bf16.mxu0 0
        %1088 = vmatmul.mubr.bf16.gmra.mrb[0].mxu0 %v928
        %v1089 = vpop.f32.mrb[0].mxu0
        %v1090 = vadd.f32 %v918, %v1089
        %v1091 = vpop.f32.mrb[0].mxu0
        %v1092 = vpop.f32.mrb[0].mxu0
        %v1093 = vadd.f32 %v918, %v1092
        %v1094 = vpop.f32.mrb[0].mxu0
        %1095 = vmatprep.mubr.bf16.mxu0 0
        %1096 = vmatmul.mubr.bf16.gmra.mrb[0].mxu0 %v929
        %v1097 = vpop.f32.mrb[0].mxu0
        %v1098 = vadd.f32 %v918, %v1097
        %v1099 = vpop.f32.mrb[0].mxu0
        %v1100 = vpop.f32.mrb[0].mxu0
        %v1101 = vadd.f32 %v918, %v1100
        %v1102 = vpop.f32.mrb[0].mxu0
        %1103 = vmatprep.mubr.bf16.mxu0 0
        %1104 = vmatmul.mubr.bf16.gmra.mrb[0].mxu0 %v930
        %v1105 = vpop.f32.mrb[0].mxu0
        %v1106 = vadd.f32 %v918, %v1105
        %v1107 = vpop.f32.mrb[0].mxu0
        %v1108 = vpop.f32.mrb[0].mxu0
        %v1109 = vadd.f32 %v918, %v1108
        %v1110 = vpop.f32.mrb[0].mxu0
        %1111 = vmatprep.mubr.bf16.mxu0 0
        %1112 = vmatmul.mubr.bf16.gmra.mrb[0].mxu0 %v931
        %v1113 = vpop.f32.mrb[0].mxu0
        %v1114 = vadd.f32 %v918, %v1113
        %v1115 = vpop.f32.mrb[0].mxu0
        %v1116 = vpop.f32.mrb[0].mxu0
        %v1117 = vadd.f32 %v918, %v1116
        %v1118 = vpop.f32.mrb[0].mxu0
        %1119 = vmatprep.mubr.bf16.mxu0 0
        %1120 = vmatmul.mubr.bf16.gmra.mrb[0].mxu0 %v932
        %v1121 = vpop.f32.mrb[0].mxu0
        %v1122 = vadd.f32 %v918, %v1121
        %v1123 = vpop.f32.mrb[0].mxu0
        %v1124 = vpop.f32.mrb[0].mxu0
        %v1125 = vadd.f32 %v918, %v1124
        %v1126 = vpop.f32.mrb[0].mxu0
        %1127 = vmatprep.mubr.bf16.mxu0 0
        %1128 = vmatmul.mubr.bf16.gmra.mrb[0].mxu0 %v933
        %v1129 = vpop.f32.mrb[0].mxu0
        %v1130 = vadd.f32 %v918, %v1129
        %v1131 = vpop.f32.mrb[0].mxu0
        %v1132 = vpop.f32.mrb[0].mxu0
        %v1133 = vadd.f32 %v918, %v1132
        %v1134 = vpop.f32.mrb[0].mxu0
        %1135 = vmatprep.mubr.bf16.mxu0 0
        %1136 = vmatmul.mubr.bf16.gmra.mrb[0].mxu0 %v934
        %v1137 = vpop.f32.mrb[0].mxu0
        %v1138 = vadd.f32 %v918, %v1137
        %v1139 = vpop.f32.mrb[0].mxu0
        %v1140 = vpop.f32.mrb[0].mxu0
        %v1141 = vadd.f32 %v918, %v1140
        %v1142 = vpop.f32.mrb[0].mxu0
        %1143 = vdwg.mxu0
        %vm1144 = vcmp.gt.f32.partialorder %v1018, 0.0
        %vm1145 = vcmp.gt.f32.partialorder %v1021, 0.0
        %vm1146 = vcmp.gt.f32.partialorder %v1026, 0.0
        %vm1147 = vcmp.gt.f32.partialorder %v1029, 0.0
        %vm1148 = vcmp.gt.f32.partialorder %v1034, 0.0
        %vm1149 = vcmp.gt.f32.partialorder %v1037, 0.0
        %vm1150 = vcmp.gt.f32.partialorder %v1042, 0.0
        %vm1151 = vcmp.gt.f32.partialorder %v1045, 0.0
        %vm1152 = vcmp.gt.f32.partialorder %v1050, 0.0
        %vm1153 = vcmp.gt.f32.partialorder %v1053, 0.0
        %vm1154 = vcmp.gt.f32.partialorder %v1058, 0.0
        %vm1155 = vcmp.gt.f32.partialorder %v1061, 0.0
        %vm1156 = vcmp.gt.f32.partialorder %v1066, 0.0
        %vm1157 = vcmp.gt.f32.partialorder %v1069, 0.0
        %vm1158 = vcmp.gt.f32.partialorder %v1074, 0.0
        %vm1159 = vcmp.gt.f32.partialorder %v1077, 0.0
        %vm1160 = vcmp.gt.f32.partialorder %v1082, 0.0
        %vm1161 = vcmp.gt.f32.partialorder %v1085, 0.0
        %vm1162 = vcmp.gt.f32.partialorder %v1090, 0.0
        %vm1163 = vcmp.gt.f32.partialorder %v1093, 0.0
        %vm1164 = vcmp.gt.f32.partialorder %v1098, 0.0
        %vm1165 = vcmp.gt.f32.partialorder %v1101, 0.0
        %vm1166 = vcmp.gt.f32.partialorder %v1106, 0.0
        %vm1167 = vcmp.gt.f32.partialorder %v1109, 0.0
        %vm1168 = vcmp.gt.f32.partialorder %v1114, 0.0
        %vm1169 = vcmp.gt.f32.partialorder %v1117, 0.0
        %vm1170 = vcmp.gt.f32.partialorder %v1122, 0.0
        %vm1171 = vcmp.gt.f32.partialorder %v1125, 0.0
        %vm1172 = vcmp.gt.f32.partialorder %v1130, 0.0
        %vm1173 = vcmp.gt.f32.partialorder %v1133, 0.0
        %vm1174 = vcmp.gt.f32.partialorder %v1138, 0.0
        %vm1175 = vcmp.gt.f32.partialorder %v1141, 0.0
        %v1176 = vmul.f32 %v1018, 0.01
        %v1177 = vmul.f32 %v1021, 0.01
        %v1178 = vmul.f32 %v1026, 0.01
        %v1179 = vmul.f32 %v1029, 0.01
        %v1180 = vmul.f32 %v1034, 0.01
        %v1181 = vmul.f32 %v1037, 0.01
        %v1182 = vmul.f32 %v1042, 0.01
        %v1183 = vmul.f32 %v1045, 0.01
        %v1184 = vmul.f32 %v1050, 0.01
        %v1185 = vmul.f32 %v1053, 0.01
        %v1186 = vmul.f32 %v1058, 0.01
        %v1187 = vmul.f32 %v1061, 0.01
        %v1188 = vmul.f32 %v1066, 0.01
        %v1189 = vmul.f32 %v1069, 0.01
        %v1190 = vmul.f32 %v1074, 0.01
        %v1191 = vmul.f32 %v1077, 0.01
        %v1192 = vmul.f32 %v1082, 0.01
        %v1193 = vmul.f32 %v1085, 0.01
        %v1194 = vmul.f32 %v1090, 0.01
        %v1195 = vmul.f32 %v1093, 0.01
        %v1196 = vmul.f32 %v1098, 0.01
        %v1197 = vmul.f32 %v1101, 0.01
        %v1198 = vmul.f32 %v1106, 0.01
        %v1199 = vmul.f32 %v1109, 0.01
        %v1200 = vmul.f32 %v1114, 0.01
        %v1201 = vmul.f32 %v1117, 0.01
        %v1202 = vmul.f32 %v1122, 0.01
        %v1203 = vmul.f32 %v1125, 0.01
        %v1204 = vmul.f32 %v1130, 0.01
        %v1205 = vmul.f32 %v1133, 0.01
        %v1206 = vmul.f32 %v1138, 0.01
        %v1207 = vmul.f32 %v1141, 0.01
        %v1208 = vsel %vm1144, %v1018, %v1176
        %v1209 = vsel %vm1145, %v1021, %v1177
        %v1210 = vsel %vm1146, %v1026, %v1178
        %v1211 = vsel %vm1147, %v1029, %v1179
        %v1212 = vsel %vm1148, %v1034, %v1180
        %v1213 = vsel %vm1149, %v1037, %v1181
        %v1214 = vsel %vm1150, %v1042, %v1182
        %v1215 = vsel %vm1151, %v1045, %v1183
        %v1216 = vsel %vm1152, %v1050, %v1184
        %v1217 = vsel %vm1153, %v1053, %v1185
        %v1218 = vsel %vm1154, %v1058, %v1186
        %v1219 = vsel %vm1155, %v1061, %v1187
        %v1220 = vsel %vm1156, %v1066, %v1188
        %v1221 = vsel %vm1157, %v1069, %v1189
        %v1222 = vsel %vm1158, %v1074, %v1190
        %v1223 = vsel %vm1159, %v1077, %v1191
        %v1224 = vsel %vm1160, %v1082, %v1192
        %v1225 = vsel %vm1161, %v1085, %v1193
        %v1226 = vsel %vm1162, %v1090, %v1194
        %v1227 = vsel %vm1163, %v1093, %v1195
        %v1228 = vsel %vm1164, %v1098, %v1196
        %v1229 = vsel %vm1165, %v1101, %v1197
        %v1230 = vsel %vm1166, %v1106, %v1198
        %v1231 = vsel %vm1167, %v1109, %v1199
        %v1232 = vsel %vm1168, %v1114, %v1200
        %v1233 = vsel %vm1169, %v1117, %v1201
        %v1234 = vsel %vm1170, %v1122, %v1202
        %v1235 = vsel %vm1171, %v1125, %v1203
        %v1236 = vsel %vm1172, %v1130, %v1204
        %v1237 = vsel %vm1173, %v1133, %v1205
        %v1238 = vsel %vm1174, %v1138, %v1206
        %v1239 = vsel %vm1175, %v1141, %v1207
        %v1240 = vld [vmem:[#allocation2 + $0x220] sm:$0xf]
        %v1241 = vld [vmem:[#allocation2 + $0x230] sm:$0xf]
        %v1242 = vld [vmem:[#allocation2 + $0x240] sm:$0xf]
        %v1243 = vld [vmem:[#allocation2 + $0x250] sm:$0xf]
        %v1244 = vld [vmem:[#allocation2 + $0x260] sm:$0xf]
        %v1245 = vld [vmem:[#allocation2 + $0x270] sm:$0xf]
        %v1246 = vld [vmem:[#allocation2 + $0x280] sm:$0xf]
        %v1247 = vld [vmem:[#allocation2 + $0x290] sm:$0xf]
        %v1248 = vld [vmem:[#allocation2 + $0x2a0] sm:$0xf]
        %v1249 = vld [vmem:[#allocation2 + $0x2b0] sm:$0xf]
        %v1250 = vld [vmem:[#allocation2 + $0x2c0] sm:$0xf]
        %v1251 = vld [vmem:[#allocation2 + $0x2d0] sm:$0xf]
        %v1252 = vld [vmem:[#allocation2 + $0x2e0] sm:$0xf]
        %v1253 = vld [vmem:[#allocation2 + $0x2f0] sm:$0xf]
        %v1254 = vld [vmem:[#allocation2 + $0x300] sm:$0xf]
        %v1255 = vld [vmem:[#allocation2 + $0x310] sm:$0xf]
        %v1256 = vld [vmem:[#allocation5 + $0x3] ss:$0 sm:$0xff]
        %v1257 = vpack.c.bf16 %v1209, %v1208
        %v1258 = vpack.c.bf16 %v1211, %v1210
        %v1259 = vpack.c.bf16 %v1213, %v1212
        %v1260 = vpack.c.bf16 %v1215, %v1214
        %v1261 = vpack.c.bf16 %v1217, %v1216
        %v1262 = vpack.c.bf16 %v1219, %v1218
        %v1263 = vpack.c.bf16 %v1221, %v1220
        %v1264 = vpack.c.bf16 %v1223, %v1222
        %v1265 = vpack.c.bf16 %v1225, %v1224
        %v1266 = vpack.c.bf16 %v1227, %v1226
        %v1267 = vpack.c.bf16 %v1229, %v1228
        %v1268 = vpack.c.bf16 %v1231, %v1230
        %v1269 = vpack.c.bf16 %v1233, %v1232
        %v1270 = vpack.c.bf16 %v1235, %v1234
        %v1271 = vpack.c.bf16 %v1237, %v1236
        %v1272 = vpack.c.bf16 %v1239, %v1238
        %v1289 = vunpack.c.l.b16 %v1240
        %v1290 = vunpack.c.l.b16 %v1241
        %v1291 = vunpack.c.l.b16 %v1242
        %v1292 = vunpack.c.l.b16 %v1243
        %v1293 = vunpack.c.l.b16 %v1244
        %v1294 = vunpack.c.l.b16 %v1245
        %v1295 = vunpack.c.l.b16 %v1246
        %v1296 = vunpack.c.l.b16 %v1247
        %v1297 = vunpack.c.l.b16 %v1248
        %v1298 = vunpack.c.l.b16 %v1249
        %v1299 = vunpack.c.l.b16 %v1250
        %v1300 = vunpack.c.l.b16 %v1251
        %v1301 = vunpack.c.l.b16 %v1252
        %v1302 = vunpack.c.l.b16 %v1253
        %v1303 = vunpack.c.l.b16 %v1254
        %v1304 = vunpack.c.l.b16 %v1255
        %v1305 = vpack.c.b16 %v1290, %v1289
        %v1306 = vpack.c.b16 %v1292, %v1291
        %v1307 = vpack.c.b16 %v1294, %v1293
        %v1308 = vpack.c.b16 %v1296, %v1295
        %v1309 = vpack.c.b16 %v1298, %v1297
        %v1310 = vpack.c.b16 %v1300, %v1299
        %v1311 = vpack.c.b16 %v1302, %v1301
        %v1312 = vpack.c.b16 %v1304, %v1303
        %1321 = vmatprep.subr.bf16.mxu0 0
        %1322 = vmatpush1.bf16.msra.mxu0 %v1305
        %1323 = vmatprep.subr.bf16.mxu0 0
        %1324 = vmatpush1.bf16.msra.mxu0 %v1306
        %1325 = vmatprep.subr.bf16.mxu0 0
        %1326 = vmatpush1.bf16.msra.mxu0 %v1307
        %1327 = vmatprep.subr.bf16.mxu0 0
        %1328 = vmatpush1.bf16.msra.mxu0 %v1308
        %1329 = vmatprep.subr.bf16.mxu0 0
        %1330 = vmatpush1.bf16.msra.mxu0 %v1309
        %1331 = vmatprep.subr.bf16.mxu0 0
        %1332 = vmatpush1.bf16.msra.mxu0 %v1310
        %1333 = vmatprep.subr.bf16.mxu0 0
        %1334 = vmatpush1.bf16.msra.mxu0 %v1311
        %1335 = vmatprep.subr.bf16.mxu0 0
        %1336 = vmatpush1.bf16.msra.mxu0 %v1312
        %1337 = vmatprep.subr.bf16.mxu0 0
        %1338 = vmatpush1.bf16.msra.mxu0 0
        %1339 = vmatprep.subr.bf16.mxu0 0
        %1340 = vmatpush1.bf16.msra.mxu0 0
        %1341 = vmatprep.subr.bf16.mxu0 0
        %1342 = vmatpush1.bf16.msra.mxu0 0
        %1343 = vmatprep.subr.bf16.mxu0 0
        %1344 = vmatpush1.bf16.msra.mxu0 0
        %1345 = vmatprep.subr.bf16.mxu0 0
        %1346 = vmatpush1.bf16.msra.mxu0 0
        %1347 = vmatprep.subr.bf16.mxu0 0
        %1348 = vmatpush1.bf16.msra.mxu0 0
        %1349 = vmatprep.subr.bf16.mxu0 0
        %1350 = vmatpush1.bf16.msra.mxu0 0
        %1351 = vmatprep.subr.bf16.mxu0 0
        %1352 = vmatpush1.bf16.msra.mxu0 0
        %1353 = vmatprep.mubr.bf16.mxu0 0
        %1354 = vmatmul.mubr.bf16.gmra.mrb[0].mxu0 %v1257
        %v1355 = vpop.f32.mrb[0].mxu0
        %v1356 = vadd.f32 %v1256, %v1355
        %v1357 = vpop.f32.mrb[0].mxu0
        %v1358 = vpop.f32.mrb[0].mxu0
        %v1359 = vadd.f32 %v1256, %v1358
        %v1360 = vpop.f32.mrb[0].mxu0
        %1361 = vmatprep.mubr.bf16.mxu0 0
        %1362 = vmatmul.mubr.bf16.gmra.mrb[0].mxu0 %v1258
        %v1363 = vpop.f32.mrb[0].mxu0
        %v1364 = vadd.f32 %v1256, %v1363
        %v1365 = vpop.f32.mrb[0].mxu0
        %v1366 = vpop.f32.mrb[0].mxu0
        %v1367 = vadd.f32 %v1256, %v1366
        %v1368 = vpop.f32.mrb[0].mxu0
        %1369 = vmatprep.mubr.bf16.mxu0 0
        %1370 = vmatmul.mubr.bf16.gmra.mrb[0].mxu0 %v1259
        %v1371 = vpop.f32.mrb[0].mxu0
        %v1372 = vadd.f32 %v1256, %v1371
        %v1373 = vpop.f32.mrb[0].mxu0
        %v1374 = vpop.f32.mrb[0].mxu0
        %v1375 = vadd.f32 %v1256, %v1374
        %v1376 = vpop.f32.mrb[0].mxu0
        %1377 = vmatprep.mubr.bf16.mxu0 0
        %1378 = vmatmul.mubr.bf16.gmra.mrb[0].mxu0 %v1260
        %v1379 = vpop.f32.mrb[0].mxu0
        %v1380 = vadd.f32 %v1256, %v1379
        %v1381 = vpop.f32.mrb[0].mxu0
        %v1382 = vpop.f32.mrb[0].mxu0
        %v1383 = vadd.f32 %v1256, %v1382
        %v1384 = vpop.f32.mrb[0].mxu0
        %1385 = vmatprep.mubr.bf16.mxu0 0
        %1386 = vmatmul.mubr.bf16.gmra.mrb[0].mxu0 %v1261
        %v1387 = vpop.f32.mrb[0].mxu0
        %v1388 = vadd.f32 %v1256, %v1387
        %v1389 = vpop.f32.mrb[0].mxu0
        %v1390 = vpop.f32.mrb[0].mxu0
        %v1391 = vadd.f32 %v1256, %v1390
        %v1392 = vpop.f32.mrb[0].mxu0
        %1393 = vmatprep.mubr.bf16.mxu0 0
        %1394 = vmatmul.mubr.bf16.gmra.mrb[0].mxu0 %v1262
        %v1395 = vpop.f32.mrb[0].mxu0
        %v1396 = vadd.f32 %v1256, %v1395
        %v1397 = vpop.f32.mrb[0].mxu0
        %v1398 = vpop.f32.mrb[0].mxu0
        %v1399 = vadd.f32 %v1256, %v1398
        %v1400 = vpop.f32.mrb[0].mxu0
        %1401 = vmatprep.mubr.bf16.mxu0 0
        %1402 = vmatmul.mubr.bf16.gmra.mrb[0].mxu0 %v1263
        %v1403 = vpop.f32.mrb[0].mxu0
        %v1404 = vadd.f32 %v1256, %v1403
        %v1405 = vpop.f32.mrb[0].mxu0
        %v1406 = vpop.f32.mrb[0].mxu0
        %v1407 = vadd.f32 %v1256, %v1406
        %v1408 = vpop.f32.mrb[0].mxu0
        %1409 = vmatprep.mubr.bf16.mxu0 0
        %1410 = vmatmul.mubr.bf16.gmra.mrb[0].mxu0 %v1264
        %v1411 = vpop.f32.mrb[0].mxu0
        %v1412 = vadd.f32 %v1256, %v1411
        %v1413 = vpop.f32.mrb[0].mxu0
        %v1414 = vpop.f32.mrb[0].mxu0
        %v1415 = vadd.f32 %v1256, %v1414
        %v1416 = vpop.f32.mrb[0].mxu0
        %1417 = vmatprep.mubr.bf16.mxu0 0
        %1418 = vmatmul.mubr.bf16.gmra.mrb[0].mxu0 %v1265
        %v1419 = vpop.f32.mrb[0].mxu0
        %v1420 = vadd.f32 %v1256, %v1419
        %v1421 = vpop.f32.mrb[0].mxu0
        %v1422 = vpop.f32.mrb[0].mxu0
        %v1423 = vadd.f32 %v1256, %v1422
        %v1424 = vpop.f32.mrb[0].mxu0
        %1425 = vmatprep.mubr.bf16.mxu0 0
        %1426 = vmatmul.mubr.bf16.gmra.mrb[0].mxu0 %v1266
        %v1427 = vpop.f32.mrb[0].mxu0
        %v1428 = vadd.f32 %v1256, %v1427
        %v1429 = vpop.f32.mrb[0].mxu0
        %v1430 = vpop.f32.mrb[0].mxu0
        %v1431 = vadd.f32 %v1256, %v1430
        %v1432 = vpop.f32.mrb[0].mxu0
        %1433 = vmatprep.mubr.bf16.mxu0 0
        %1434 = vmatmul.mubr.bf16.gmra.mrb[0].mxu0 %v1267
        %v1435 = vpop.f32.mrb[0].mxu0
        %v1436 = vadd.f32 %v1256, %v1435
        %v1437 = vpop.f32.mrb[0].mxu0
        %v1438 = vpop.f32.mrb[0].mxu0
        %v1439 = vadd.f32 %v1256, %v1438
        %v1440 = vpop.f32.mrb[0].mxu0
        %1441 = vmatprep.mubr.bf16.mxu0 0
        %1442 = vmatmul.mubr.bf16.gmra.mrb[0].mxu0 %v1268
        %v1443 = vpop.f32.mrb[0].mxu0
        %v1444 = vadd.f32 %v1256, %v1443
        %v1445 = vpop.f32.mrb[0].mxu0
        %v1446 = vpop.f32.mrb[0].mxu0
        %v1447 = vadd.f32 %v1256, %v1446
        %v1448 = vpop.f32.mrb[0].mxu0
        %1449 = vmatprep.mubr.bf16.mxu0 0
        %1450 = vmatmul.mubr.bf16.gmra.mrb[0].mxu0 %v1269
        %v1451 = vpop.f32.mrb[0].mxu0
        %v1452 = vadd.f32 %v1256, %v1451
        %v1453 = vpop.f32.mrb[0].mxu0
        %v1454 = vpop.f32.mrb[0].mxu0
        %v1455 = vadd.f32 %v1256, %v1454
        %v1456 = vpop.f32.mrb[0].mxu0
        %1457 = vmatprep.mubr.bf16.mxu0 0
        %1458 = vmatmul.mubr.bf16.gmra.mrb[0].mxu0 %v1270
        %v1459 = vpop.f32.mrb[0].mxu0
        %v1460 = vadd.f32 %v1256, %v1459
        %v1461 = vpop.f32.mrb[0].mxu0
        %v1462 = vpop.f32.mrb[0].mxu0
        %v1463 = vadd.f32 %v1256, %v1462
        %v1464 = vpop.f32.mrb[0].mxu0
        %1465 = vmatprep.mubr.bf16.mxu0 0
        %1466 = vmatmul.mubr.bf16.gmra.mrb[0].mxu0 %v1271
        %v1467 = vpop.f32.mrb[0].mxu0
        %v1468 = vadd.f32 %v1256, %v1467
        %v1469 = vpop.f32.mrb[0].mxu0
        %v1470 = vpop.f32.mrb[0].mxu0
        %v1471 = vadd.f32 %v1256, %v1470
        %v1472 = vpop.f32.mrb[0].mxu0
        %1473 = vmatprep.mubr.bf16.mxu0 0
        %1474 = vmatmul.mubr.bf16.gmra.mrb[0].mxu0 %v1272
        %v1475 = vpop.f32.mrb[0].mxu0
        %v1476 = vadd.f32 %v1256, %v1475
        %v1477 = vpop.f32.mrb[0].mxu0
        %v1478 = vpop.f32.mrb[0].mxu0
        %v1479 = vadd.f32 %v1256, %v1478
        %v1480 = vpop.f32.mrb[0].mxu0
        %1481 = vdwg.mxu0
        %vm1482 = vcmp.gt.f32.partialorder %v1356, 0.0
        %vm1483 = vcmp.gt.f32.partialorder %v1359, 0.0
        %vm1484 = vcmp.gt.f32.partialorder %v1364, 0.0
        %vm1485 = vcmp.gt.f32.partialorder %v1367, 0.0
        %vm1486 = vcmp.gt.f32.partialorder %v1372, 0.0
        %vm1487 = vcmp.gt.f32.partialorder %v1375, 0.0
        %vm1488 = vcmp.gt.f32.partialorder %v1380, 0.0
        %vm1489 = vcmp.gt.f32.partialorder %v1383, 0.0
        %vm1490 = vcmp.gt.f32.partialorder %v1388, 0.0
        %vm1491 = vcmp.gt.f32.partialorder %v1391, 0.0
        %vm1492 = vcmp.gt.f32.partialorder %v1396, 0.0
        %vm1493 = vcmp.gt.f32.partialorder %v1399, 0.0
        %vm1494 = vcmp.gt.f32.partialorder %v1404, 0.0
        %vm1495 = vcmp.gt.f32.partialorder %v1407, 0.0
        %vm1496 = vcmp.gt.f32.partialorder %v1412, 0.0
        %vm1497 = vcmp.gt.f32.partialorder %v1415, 0.0
        %vm1498 = vcmp.gt.f32.partialorder %v1420, 0.0
        %vm1499 = vcmp.gt.f32.partialorder %v1423, 0.0
        %vm1500 = vcmp.gt.f32.partialorder %v1428, 0.0
        %vm1501 = vcmp.gt.f32.partialorder %v1431, 0.0
        %vm1502 = vcmp.gt.f32.partialorder %v1436, 0.0
        %vm1503 = vcmp.gt.f32.partialorder %v1439, 0.0
        %vm1504 = vcmp.gt.f32.partialorder %v1444, 0.0
        %vm1505 = vcmp.gt.f32.partialorder %v1447, 0.0
        %vm1506 = vcmp.gt.f32.partialorder %v1452, 0.0
        %vm1507 = vcmp.gt.f32.partialorder %v1455, 0.0
        %vm1508 = vcmp.gt.f32.partialorder %v1460, 0.0
        %vm1509 = vcmp.gt.f32.partialorder %v1463, 0.0
        %vm1510 = vcmp.gt.f32.partialorder %v1468, 0.0
        %vm1511 = vcmp.gt.f32.partialorder %v1471, 0.0
        %vm1512 = vcmp.gt.f32.partialorder %v1476, 0.0
        %vm1513 = vcmp.gt.f32.partialorder %v1479, 0.0
        %v1514 = vmul.f32 %v1356, 0.01
        %v1515 = vmul.f32 %v1359, 0.01
        %v1516 = vmul.f32 %v1364, 0.01
        %v1517 = vmul.f32 %v1367, 0.01
        %v1518 = vmul.f32 %v1372, 0.01
        %v1519 = vmul.f32 %v1375, 0.01
        %v1520 = vmul.f32 %v1380, 0.01
        %v1521 = vmul.f32 %v1383, 0.01
        %v1522 = vmul.f32 %v1388, 0.01
        %v1523 = vmul.f32 %v1391, 0.01
        %v1524 = vmul.f32 %v1396, 0.01
        %v1525 = vmul.f32 %v1399, 0.01
        %v1526 = vmul.f32 %v1404, 0.01
        %v1527 = vmul.f32 %v1407, 0.01
        %v1528 = vmul.f32 %v1412, 0.01
        %v1529 = vmul.f32 %v1415, 0.01
        %v1530 = vmul.f32 %v1420, 0.01
        %v1531 = vmul.f32 %v1423, 0.01
        %v1532 = vmul.f32 %v1428, 0.01
        %v1533 = vmul.f32 %v1431, 0.01
        %v1534 = vmul.f32 %v1436, 0.01
        %v1535 = vmul.f32 %v1439, 0.01
        %v1536 = vmul.f32 %v1444, 0.01
        %v1537 = vmul.f32 %v1447, 0.01
        %v1538 = vmul.f32 %v1452, 0.01
        %v1539 = vmul.f32 %v1455, 0.01
        %v1540 = vmul.f32 %v1460, 0.01
        %v1541 = vmul.f32 %v1463, 0.01
        %v1542 = vmul.f32 %v1468, 0.01
        %v1543 = vmul.f32 %v1471, 0.01
        %v1544 = vmul.f32 %v1476, 0.01
        %v1545 = vmul.f32 %v1479, 0.01
        %v1546 = vsel %vm1482, %v1356, %v1514
        %v1547 = vsel %vm1483, %v1359, %v1515
        %v1548 = vsel %vm1484, %v1364, %v1516
        %v1549 = vsel %vm1485, %v1367, %v1517
        %v1550 = vsel %vm1486, %v1372, %v1518
        %v1551 = vsel %vm1487, %v1375, %v1519
        %v1552 = vsel %vm1488, %v1380, %v1520
        %v1553 = vsel %vm1489, %v1383, %v1521
        %v1554 = vsel %vm1490, %v1388, %v1522
        %v1555 = vsel %vm1491, %v1391, %v1523
        %v1556 = vsel %vm1492, %v1396, %v1524
        %v1557 = vsel %vm1493, %v1399, %v1525
        %v1558 = vsel %vm1494, %v1404, %v1526
        %v1559 = vsel %vm1495, %v1407, %v1527
        %v1560 = vsel %vm1496, %v1412, %v1528
        %v1561 = vsel %vm1497, %v1415, %v1529
        %v1562 = vsel %vm1498, %v1420, %v1530
        %v1563 = vsel %vm1499, %v1423, %v1531
        %v1564 = vsel %vm1500, %v1428, %v1532
        %v1565 = vsel %vm1501, %v1431, %v1533
        %v1566 = vsel %vm1502, %v1436, %v1534
        %v1567 = vsel %vm1503, %v1439, %v1535
        %v1568 = vsel %vm1504, %v1444, %v1536
        %v1569 = vsel %vm1505, %v1447, %v1537
        %v1570 = vsel %vm1506, %v1452, %v1538
        %v1571 = vsel %vm1507, %v1455, %v1539
        %v1572 = vsel %vm1508, %v1460, %v1540
        %v1573 = vsel %vm1509, %v1463, %v1541
        %v1574 = vsel %vm1510, %v1468, %v1542
        %v1575 = vsel %vm1511, %v1471, %v1543
        %v1576 = vsel %vm1512, %v1476, %v1544
        %v1577 = vsel %vm1513, %v1479, %v1545
        %v1578 = vld [vmem:[#allocation2 + $0x320] sm:$0xff]
        %v1579 = vld [vmem:[#allocation2 + $0x328] sm:$0xff]
        %v1580 = vld [vmem:[#allocation2 + $0x330] sm:$0xff]
        %v1581 = vld [vmem:[#allocation2 + $0x338] sm:$0xff]
        %v1582 = vld [vmem:[#allocation2 + $0x340] sm:$0xff]
        %v1583 = vld [vmem:[#allocation2 + $0x348] sm:$0xff]
        %v1584 = vld [vmem:[#allocation2 + $0x350] sm:$0xff]
        %v1585 = vld [vmem:[#allocation2 + $0x358] sm:$0xff]
        %v1586 = vld [vmem:[#allocation2 + $0x360] sm:$0xff]
        %v1587 = vld [vmem:[#allocation2 + $0x368] sm:$0xff]
        %v1588 = vld [vmem:[#allocation2 + $0x370] sm:$0xff]
        %v1589 = vld [vmem:[#allocation2 + $0x378] sm:$0xff]
        %v1590 = vld [vmem:[#allocation2 + $0x380] sm:$0xff]
        %v1591 = vld [vmem:[#allocation2 + $0x388] sm:$0xff]
        %v1592 = vld [vmem:[#allocation2 + $0x390] sm:$0xff]
        %v1593 = vld [vmem:[#allocation2 + $0x398] sm:$0xff]
        %v1594 = vld [vmem:[#allocation2 + $0x3a0] sm:$0xff]
        %v1595 = vld [vmem:[#allocation2 + $0x3a8] sm:$0xff]
        %v1596 = vld [vmem:[#allocation2 + $0x3b0] sm:$0xff]
        %v1597 = vld [vmem:[#allocation2 + $0x3b8] sm:$0xff]
        %v1598 = vld [vmem:[#allocation2 + $0x3c0] sm:$0xff]
        %v1599 = vld [vmem:[#allocation2 + $0x3c8] sm:$0xff]
        %v1600 = vld [vmem:[#allocation2 + $0x3d0] sm:$0xff]
        %v1601 = vld [vmem:[#allocation2 + $0x3d8] sm:$0xff]
        %v1602 = vld [vmem:[#allocation2 + $0x3e0] sm:$0xff]
        %v1603 = vld [vmem:[#allocation2 + $0x3e8] sm:$0xff]
        %v1604 = vld [vmem:[#allocation2 + $0x3f0] sm:$0xff]
        %v1605 = vld [vmem:[#allocation2 + $0x3f8] sm:$0xff]
        %v1606 = vld [vmem:[#allocation2 + $0x400] sm:$0xff]
        %v1607 = vld [vmem:[#allocation2 + $0x408] sm:$0xff]
        %v1608 = vld [vmem:[#allocation2 + $0x410] sm:$0xff]
        %v1609 = vld [vmem:[#allocation2 + $0x418] sm:$0xff]
        %s1610 = scalar_lea.vmem [#allocation5], 4
        %v1611 = vld [vmem:[%s1610] ss:$8 sm:$0xf]
        %v1612 = vpack.c.bf16 %v1547, %v1546
        %v1613 = vpack.c.bf16 %v1549, %v1548
        %v1614 = vpack.c.bf16 %v1551, %v1550
        %v1615 = vpack.c.bf16 %v1553, %v1552
        %v1616 = vpack.c.bf16 %v1555, %v1554
        %v1617 = vpack.c.bf16 %v1557, %v1556
        %v1618 = vpack.c.bf16 %v1559, %v1558
        %v1619 = vpack.c.bf16 %v1561, %v1560
        %v1620 = vpack.c.bf16 %v1563, %v1562
        %v1621 = vpack.c.bf16 %v1565, %v1564
        %v1622 = vpack.c.bf16 %v1567, %v1566
        %v1623 = vpack.c.bf16 %v1569, %v1568
        %v1624 = vpack.c.bf16 %v1571, %v1570
        %v1625 = vpack.c.bf16 %v1573, %v1572
        %v1626 = vpack.c.bf16 %v1575, %v1574
        %v1627 = vpack.c.bf16 %v1577, %v1576
        %v1629 = vlaneseq
        %v1630 = vshrl.u32 %v1629, 7
        %v1631 = vsub.s32 0, %v1630
        %v1632 = vrot.slane %v1611, %v1631
        %v1633 = vlaneseq
        %v1634 = vshrl.u32 %v1633, 7
        %v1635 = vsub.s32 1, %v1634
        %v1636 = vrot.slane %v1611, %v1635
        %v1637 = vlaneseq
        %v1638 = vshrl.u32 %v1637, 7
        %v1639 = vsub.s32 2, %v1638
        %v1640 = vrot.slane %v1611, %v1639
        %v1641 = vlaneseq
        %v1642 = vshrl.u32 %v1641, 7
        %v1643 = vsub.s32 3, %v1642
        %v1644 = vrot.slane %v1611, %v1643
        %v1681 = vunpack.c.l.b16 %v1578
        %v1682 = vunpack.c.h.b16 %v1578
        %v1683 = vunpack.c.l.b16 %v1579
        %v1684 = vunpack.c.h.b16 %v1579
        %v1685 = vunpack.c.l.b16 %v1580
        %v1686 = vunpack.c.h.b16 %v1580
        %v1687 = vunpack.c.l.b16 %v1581
        %v1688 = vunpack.c.h.b16 %v1581
        %v1689 = vunpack.c.l.b16 %v1582
        %v1690 = vunpack.c.h.b16 %v1582
        %v1691 = vunpack.c.l.b16 %v1583
        %v1692 = vunpack.c.h.b16 %v1583
        %v1693 = vunpack.c.l.b16 %v1584
        %v1694 = vunpack.c.h.b16 %v1584
        %v1695 = vunpack.c.l.b16 %v1585
        %v1696 = vunpack.c.h.b16 %v1585
        %v1697 = vunpack.c.l.b16 %v1586
        %v1698 = vunpack.c.h.b16 %v1586
        %v1699 = vunpack.c.l.b16 %v1587
        %v1700 = vunpack.c.h.b16 %v1587
        %v1701 = vunpack.c.l.b16 %v1588
        %v1702 = vunpack.c.h.b16 %v1588
        %v1703 = vunpack.c.l.b16 %v1589
        %v1704 = vunpack.c.h.b16 %v1589
        %v1705 = vunpack.c.l.b16 %v1590
        %v1706 = vunpack.c.h.b16 %v1590
        %v1707 = vunpack.c.l.b16 %v1591
        %v1708 = vunpack.c.h.b16 %v1591
        %v1709 = vunpack.c.l.b16 %v1592
        %v1710 = vunpack.c.h.b16 %v1592
        %v1711 = vunpack.c.l.b16 %v1593
        %v1712 = vunpack.c.h.b16 %v1593
        %v1713 = vunpack.c.l.b16 %v1594
        %v1714 = vunpack.c.h.b16 %v1594
        %v1715 = vunpack.c.l.b16 %v1595
        %v1716 = vunpack.c.h.b16 %v1595
        %v1717 = vunpack.c.l.b16 %v1596
        %v1718 = vunpack.c.h.b16 %v1596
        %v1719 = vunpack.c.l.b16 %v1597
        %v1720 = vunpack.c.h.b16 %v1597
        %v1721 = vunpack.c.l.b16 %v1598
        %v1722 = vunpack.c.h.b16 %v1598
        %v1723 = vunpack.c.l.b16 %v1599
        %v1724 = vunpack.c.h.b16 %v1599
        %v1725 = vunpack.c.l.b16 %v1600
        %v1726 = vunpack.c.h.b16 %v1600
        %v1727 = vunpack.c.l.b16 %v1601
        %v1728 = vunpack.c.h.b16 %v1601
        %v1729 = vunpack.c.l.b16 %v1602
        %v1730 = vunpack.c.h.b16 %v1602
        %v1731 = vunpack.c.l.b16 %v1603
        %v1732 = vunpack.c.h.b16 %v1603
        %v1733 = vunpack.c.l.b16 %v1604
        %v1734 = vunpack.c.h.b16 %v1604
        %v1735 = vunpack.c.l.b16 %v1605
        %v1736 = vunpack.c.h.b16 %v1605
        %v1737 = vunpack.c.l.b16 %v1606
        %v1738 = vunpack.c.h.b16 %v1606
        %v1739 = vunpack.c.l.b16 %v1607
        %v1740 = vunpack.c.h.b16 %v1607
        %v1741 = vunpack.c.l.b16 %v1608
        %v1742 = vunpack.c.h.b16 %v1608
        %v1743 = vunpack.c.l.b16 %v1609
        %v1744 = vunpack.c.h.b16 %v1609
        %v1745 = vpack.c.b16 %v1685, %v1681
        %v1746 = vpack.c.b16 %v1686, %v1682
        %v1747 = vpack.c.b16 %v1687, %v1683
        %v1748 = vpack.c.b16 %v1688, %v1684
        %v1749 = vpack.c.b16 %v1693, %v1689
        %v1750 = vpack.c.b16 %v1694, %v1690
        %v1751 = vpack.c.b16 %v1695, %v1691
        %v1752 = vpack.c.b16 %v1696, %v1692
        %v1753 = vpack.c.b16 %v1701, %v1697
        %v1754 = vpack.c.b16 %v1702, %v1698
        %v1755 = vpack.c.b16 %v1703, %v1699
        %v1756 = vpack.c.b16 %v1704, %v1700
        %v1757 = vpack.c.b16 %v1709, %v1705
        %v1758 = vpack.c.b16 %v1710, %v1706
        %v1759 = vpack.c.b16 %v1711, %v1707
        %v1760 = vpack.c.b16 %v1712, %v1708
        %v1761 = vpack.c.b16 %v1717, %v1713
        %v1762 = vpack.c.b16 %v1718, %v1714
        %v1763 = vpack.c.b16 %v1719, %v1715
        %v1764 = vpack.c.b16 %v1720, %v1716
        %v1765 = vpack.c.b16 %v1725, %v1721
        %v1766 = vpack.c.b16 %v1726, %v1722
        %v1767 = vpack.c.b16 %v1727, %v1723
        %v1768 = vpack.c.b16 %v1728, %v1724
        %v1769 = vpack.c.b16 %v1733, %v1729
        %v1770 = vpack.c.b16 %v1734, %v1730
        %v1771 = vpack.c.b16 %v1735, %v1731
        %v1772 = vpack.c.b16 %v1736, %v1732
        %v1773 = vpack.c.b16 %v1741, %v1737
        %v1774 = vpack.c.b16 %v1742, %v1738
        %v1775 = vpack.c.b16 %v1743, %v1739
        %v1776 = vpack.c.b16 %v1744, %v1740
        %1809 = vmatprep.subr.bf16.mxu0 %v1746
        %1810 = vmatpush1.bf16.msra.mxu0 %v1745
        %1811 = vmatprep.subr.bf16.mxu0 %v1750
        %1812 = vmatpush1.bf16.msra.mxu0 %v1749
        %1813 = vmatprep.subr.bf16.mxu0 %v1754
        %1814 = vmatpush1.bf16.msra.mxu0 %v1753
        %1815 = vmatprep.subr.bf16.mxu0 %v1758
        %1816 = vmatpush1.bf16.msra.mxu0 %v1757
        %1817 = vmatprep.subr.bf16.mxu0 %v1762
        %1818 = vmatpush1.bf16.msra.mxu0 %v1761
        %1819 = vmatprep.subr.bf16.mxu0 %v1766
        %1820 = vmatpush1.bf16.msra.mxu0 %v1765
        %1821 = vmatprep.subr.bf16.mxu0 %v1770
        %1822 = vmatpush1.bf16.msra.mxu0 %v1769
        %1823 = vmatprep.subr.bf16.mxu0 %v1774
        %1824 = vmatpush1.bf16.msra.mxu0 %v1773
        %1825 = vmatprep.subr.bf16.mxu0 0
        %1826 = vmatpush1.bf16.msra.mxu0 0
        %1827 = vmatprep.subr.bf16.mxu0 0
        %1828 = vmatpush1.bf16.msra.mxu0 0
        %1829 = vmatprep.subr.bf16.mxu0 0
        %1830 = vmatpush1.bf16.msra.mxu0 0
        %1831 = vmatprep.subr.bf16.mxu0 0
        %1832 = vmatpush1.bf16.msra.mxu0 0
        %1833 = vmatprep.subr.bf16.mxu0 0
        %1834 = vmatpush1.bf16.msra.mxu0 0
        %1835 = vmatprep.subr.bf16.mxu0 0
        %1836 = vmatpush1.bf16.msra.mxu0 0
        %1837 = vmatprep.subr.bf16.mxu0 0
        %1838 = vmatpush1.bf16.msra.mxu0 0
        %1839 = vmatprep.subr.bf16.mxu0 0
        %1840 = vmatpush1.bf16.msra.mxu0 0
        %1841 = vmatprep.mubr.bf16.mxu0 0
        %1842 = vmatmul.mubr.bf16.gmra.mrb[0].mxu0 %v1612
        %v1843 = vpop.f32.mrb[0].mxu0
        %v1844 = vadd.f32 %v1632, %v1843
        %v1845 = vpop.f32.mrb[0].mxu0
        %v1846 = vadd.f32 %v1636, %v1845
        %v1847 = vpop.f32.mrb[0].mxu0
        %v1848 = vadd.f32 %v1632, %v1847
        %v1849 = vpop.f32.mrb[0].mxu0
        %v1850 = vadd.f32 %v1636, %v1849
        %1851 = vmatprep.mubr.bf16.mxu0 0
        %1852 = vmatmul.mubr.bf16.gmra.mrb[0].mxu0 %v1613
        %v1853 = vpop.f32.mrb[0].mxu0
        %v1854 = vadd.f32 %v1632, %v1853
        %v1855 = vpop.f32.mrb[0].mxu0
        %v1856 = vadd.f32 %v1636, %v1855
        %v1857 = vpop.f32.mrb[0].mxu0
        %v1858 = vadd.f32 %v1632, %v1857
        %v1859 = vpop.f32.mrb[0].mxu0
        %v1860 = vadd.f32 %v1636, %v1859
        %1861 = vmatprep.mubr.bf16.mxu0 0
        %1862 = vmatmul.mubr.bf16.gmra.mrb[0].mxu0 %v1614
        %v1863 = vpop.f32.mrb[0].mxu0
        %v1864 = vadd.f32 %v1632, %v1863
        %v1865 = vpop.f32.mrb[0].mxu0
        %v1866 = vadd.f32 %v1636, %v1865
        %v1867 = vpop.f32.mrb[0].mxu0
        %v1868 = vadd.f32 %v1632, %v1867
        %v1869 = vpop.f32.mrb[0].mxu0
        %v1870 = vadd.f32 %v1636, %v1869
        %1871 = vmatprep.mubr.bf16.mxu0 0
        %1872 = vmatmul.mubr.bf16.gmra.mrb[0].mxu0 %v1615
        %v1873 = vpop.f32.mrb[0].mxu0
        %v1874 = vadd.f32 %v1632, %v1873
        %v1875 = vpop.f32.mrb[0].mxu0
        %v1876 = vadd.f32 %v1636, %v1875
        %v1877 = vpop.f32.mrb[0].mxu0
        %v1878 = vadd.f32 %v1632, %v1877
        %v1879 = vpop.f32.mrb[0].mxu0
        %v1880 = vadd.f32 %v1636, %v1879
        %1881 = vmatprep.mubr.bf16.mxu0 0
        %1882 = vmatmul.mubr.bf16.gmra.mrb[0].mxu0 %v1616
        %v1883 = vpop.f32.mrb[0].mxu0
        %v1884 = vadd.f32 %v1632, %v1883
        %v1885 = vpop.f32.mrb[0].mxu0
        %v1886 = vadd.f32 %v1636, %v1885
        %v1887 = vpop.f32.mrb[0].mxu0
        %v1888 = vadd.f32 %v1632, %v1887
        %v1889 = vpop.f32.mrb[0].mxu0
        %v1890 = vadd.f32 %v1636, %v1889
        %1891 = vmatprep.mubr.bf16.mxu0 0
        %1892 = vmatmul.mubr.bf16.gmra.mrb[0].mxu0 %v1617
        %v1893 = vpop.f32.mrb[0].mxu0
        %v1894 = vadd.f32 %v1632, %v1893
        %v1895 = vpop.f32.mrb[0].mxu0
        %v1896 = vadd.f32 %v1636, %v1895
        %v1897 = vpop.f32.mrb[0].mxu0
        %v1898 = vadd.f32 %v1632, %v1897
        %v1899 = vpop.f32.mrb[0].mxu0
        %v1900 = vadd.f32 %v1636, %v1899
        %1901 = vmatprep.mubr.bf16.mxu0 0
        %1902 = vmatmul.mubr.bf16.gmra.mrb[0].mxu0 %v1618
        %v1903 = vpop.f32.mrb[0].mxu0
        %v1904 = vadd.f32 %v1632, %v1903
        %v1905 = vpop.f32.mrb[0].mxu0
        %v1906 = vadd.f32 %v1636, %v1905
        %v1907 = vpop.f32.mrb[0].mxu0
        %v1908 = vadd.f32 %v1632, %v1907
        %v1909 = vpop.f32.mrb[0].mxu0
        %v1910 = vadd.f32 %v1636, %v1909
        %1911 = vmatprep.mubr.bf16.mxu0 0
        %1912 = vmatmul.mubr.bf16.gmra.mrb[0].mxu0 %v1619
        %v1913 = vpop.f32.mrb[0].mxu0
        %v1914 = vadd.f32 %v1632, %v1913
        %v1915 = vpop.f32.mrb[0].mxu0
        %v1916 = vadd.f32 %v1636, %v1915
        %v1917 = vpop.f32.mrb[0].mxu0
        %v1918 = vadd.f32 %v1632, %v1917
        %v1919 = vpop.f32.mrb[0].mxu0
        %v1920 = vadd.f32 %v1636, %v1919
        %1921 = vmatprep.mubr.bf16.mxu0 0
        %1922 = vmatmul.mubr.bf16.gmra.mrb[0].mxu0 %v1620
        %v1923 = vpop.f32.mrb[0].mxu0
        %v1924 = vadd.f32 %v1632, %v1923
        %v1925 = vpop.f32.mrb[0].mxu0
        %v1926 = vadd.f32 %v1636, %v1925
        %v1927 = vpop.f32.mrb[0].mxu0
        %v1928 = vadd.f32 %v1632, %v1927
        %v1929 = vpop.f32.mrb[0].mxu0
        %v1930 = vadd.f32 %v1636, %v1929
        %1931 = vmatprep.mubr.bf16.mxu0 0
        %1932 = vmatmul.mubr.bf16.gmra.mrb[0].mxu0 %v1621
        %v1933 = vpop.f32.mrb[0].mxu0
        %v1934 = vadd.f32 %v1632, %v1933
        %v1935 = vpop.f32.mrb[0].mxu0
        %v1936 = vadd.f32 %v1636, %v1935
        %v1937 = vpop.f32.mrb[0].mxu0
        %v1938 = vadd.f32 %v1632, %v1937
        %v1939 = vpop.f32.mrb[0].mxu0
        %v1940 = vadd.f32 %v1636, %v1939
        %1941 = vmatprep.mubr.bf16.mxu0 0
        %1942 = vmatmul.mubr.bf16.gmra.mrb[0].mxu0 %v1622
        %v1943 = vpop.f32.mrb[0].mxu0
        %v1944 = vadd.f32 %v1632, %v1943
        %v1945 = vpop.f32.mrb[0].mxu0
        %v1946 = vadd.f32 %v1636, %v1945
        %v1947 = vpop.f32.mrb[0].mxu0
        %v1948 = vadd.f32 %v1632, %v1947
        %v1949 = vpop.f32.mrb[0].mxu0
        %v1950 = vadd.f32 %v1636, %v1949
        %1951 = vmatprep.mubr.bf16.mxu0 0
        %1952 = vmatmul.mubr.bf16.gmra.mrb[0].mxu0 %v1623
        %v1953 = vpop.f32.mrb[0].mxu0
        %v1954 = vadd.f32 %v1632, %v1953
        %v1955 = vpop.f32.mrb[0].mxu0
        %v1956 = vadd.f32 %v1636, %v1955
        %v1957 = vpop.f32.mrb[0].mxu0
        %v1958 = vadd.f32 %v1632, %v1957
        %v1959 = vpop.f32.mrb[0].mxu0
        %v1960 = vadd.f32 %v1636, %v1959
        %1961 = vmatprep.mubr.bf16.mxu0 0
        %1962 = vmatmul.mubr.bf16.gmra.mrb[0].mxu0 %v1624
        %v1963 = vpop.f32.mrb[0].mxu0
        %v1964 = vadd.f32 %v1632, %v1963
        %v1965 = vpop.f32.mrb[0].mxu0
        %v1966 = vadd.f32 %v1636, %v1965
        %v1967 = vpop.f32.mrb[0].mxu0
        %v1968 = vadd.f32 %v1632, %v1967
        %v1969 = vpop.f32.mrb[0].mxu0
        %v1970 = vadd.f32 %v1636, %v1969
        %1971 = vmatprep.mubr.bf16.mxu0 0
        %1972 = vmatmul.mubr.bf16.gmra.mrb[0].mxu0 %v1625
        %v1973 = vpop.f32.mrb[0].mxu0
        %v1974 = vadd.f32 %v1632, %v1973
        %v1975 = vpop.f32.mrb[0].mxu0
        %v1976 = vadd.f32 %v1636, %v1975
        %v1977 = vpop.f32.mrb[0].mxu0
        %v1978 = vadd.f32 %v1632, %v1977
        %v1979 = vpop.f32.mrb[0].mxu0
        %v1980 = vadd.f32 %v1636, %v1979
        %1981 = vmatprep.mubr.bf16.mxu0 0
        %1982 = vmatmul.mubr.bf16.gmra.mrb[0].mxu0 %v1626
        %v1983 = vpop.f32.mrb[0].mxu0
        %v1984 = vadd.f32 %v1632, %v1983
        %v1985 = vpop.f32.mrb[0].mxu0
        %v1986 = vadd.f32 %v1636, %v1985
        %v1987 = vpop.f32.mrb[0].mxu0
        %v1988 = vadd.f32 %v1632, %v1987
        %v1989 = vpop.f32.mrb[0].mxu0
        %v1990 = vadd.f32 %v1636, %v1989
        %1991 = vmatprep.mubr.bf16.mxu0 0
        %1992 = vmatmul.mubr.bf16.gmra.mrb[0].mxu0 %v1627
        %v1993 = vpop.f32.mrb[0].mxu0
        %v1994 = vadd.f32 %v1632, %v1993
        %v1995 = vpop.f32.mrb[0].mxu0
        %v1996 = vadd.f32 %v1636, %v1995
        %v1997 = vpop.f32.mrb[0].mxu0
        %v1998 = vadd.f32 %v1632, %v1997
        %v1999 = vpop.f32.mrb[0].mxu0
        %v2000 = vadd.f32 %v1636, %v1999
        %2001 = vdwg.mxu0
        %2002 = vmatprep.subr.bf16.mxu0 %v1748
        %2003 = vmatpush1.bf16.msra.mxu0 %v1747
        %2004 = vmatprep.subr.bf16.mxu0 %v1752
        %2005 = vmatpush1.bf16.msra.mxu0 %v1751
        %2006 = vmatprep.subr.bf16.mxu0 %v1756
        %2007 = vmatpush1.bf16.msra.mxu0 %v1755
        %2008 = vmatprep.subr.bf16.mxu0 %v1760
        %2009 = vmatpush1.bf16.msra.mxu0 %v1759
        %2010 = vmatprep.subr.bf16.mxu0 %v1764
        %2011 = vmatpush1.bf16.msra.mxu0 %v1763
        %2012 = vmatprep.subr.bf16.mxu0 %v1768
        %2013 = vmatpush1.bf16.msra.mxu0 %v1767
        %2014 = vmatprep.subr.bf16.mxu0 %v1772
        %2015 = vmatpush1.bf16.msra.mxu0 %v1771
        %2016 = vmatprep.subr.bf16.mxu0 %v1776
        %2017 = vmatpush1.bf16.msra.mxu0 %v1775
        %2018 = vmatprep.subr.bf16.mxu0 0
        %2019 = vmatpush1.bf16.msra.mxu0 0
        %2020 = vmatprep.subr.bf16.mxu0 0
        %2021 = vmatpush1.bf16.msra.mxu0 0
        %2022 = vmatprep.subr.bf16.mxu0 0
        %2023 = vmatpush1.bf16.msra.mxu0 0
        %2024 = vmatprep.subr.bf16.mxu0 0
        %2025 = vmatpush1.bf16.msra.mxu0 0
        %2026 = vmatprep.subr.bf16.mxu0 0
        %2027 = vmatpush1.bf16.msra.mxu0 0
        %2028 = vmatprep.subr.bf16.mxu0 0
        %2029 = vmatpush1.bf16.msra.mxu0 0
        %2030 = vmatprep.subr.bf16.mxu0 0
        %2031 = vmatpush1.bf16.msra.mxu0 0
        %2032 = vmatprep.subr.bf16.mxu0 0
        %2033 = vmatpush1.bf16.msra.mxu0 0
        %2034 = vmatprep.mubr.bf16.mxu0 0
        %2035 = vmatmul.mubr.bf16.gmra.mrb[0].mxu0 %v1612
        %v2036 = vpop.f32.mrb[0].mxu0
        %v2037 = vadd.f32 %v1640, %v2036
        %v2038 = vpop.f32.mrb[0].mxu0
        %v2039 = vadd.f32 %v1644, %v2038
        %v2040 = vpop.f32.mrb[0].mxu0
        %v2041 = vadd.f32 %v1640, %v2040
        %v2042 = vpop.f32.mrb[0].mxu0
        %v2043 = vadd.f32 %v1644, %v2042
        %2044 = vmatprep.mubr.bf16.mxu0 0
        %2045 = vmatmul.mubr.bf16.gmra.mrb[0].mxu0 %v1613
        %v2046 = vpop.f32.mrb[0].mxu0
        %v2047 = vadd.f32 %v1640, %v2046
        %v2048 = vpop.f32.mrb[0].mxu0
        %v2049 = vadd.f32 %v1644, %v2048
        %v2050 = vpop.f32.mrb[0].mxu0
        %v2051 = vadd.f32 %v1640, %v2050
        %v2052 = vpop.f32.mrb[0].mxu0
        %v2053 = vadd.f32 %v1644, %v2052
        %2054 = vmatprep.mubr.bf16.mxu0 0
        %2055 = vmatmul.mubr.bf16.gmra.mrb[0].mxu0 %v1614
        %v2056 = vpop.f32.mrb[0].mxu0
        %v2057 = vadd.f32 %v1640, %v2056
        %v2058 = vpop.f32.mrb[0].mxu0
        %v2059 = vadd.f32 %v1644, %v2058
        %v2060 = vpop.f32.mrb[0].mxu0
        %v2061 = vadd.f32 %v1640, %v2060
        %v2062 = vpop.f32.mrb[0].mxu0
        %v2063 = vadd.f32 %v1644, %v2062
        %2064 = vmatprep.mubr.bf16.mxu0 0
        %2065 = vmatmul.mubr.bf16.gmra.mrb[0].mxu0 %v1615
        %v2066 = vpop.f32.mrb[0].mxu0
        %v2067 = vadd.f32 %v1640, %v2066
        %v2068 = vpop.f32.mrb[0].mxu0
        %v2069 = vadd.f32 %v1644, %v2068
        %v2070 = vpop.f32.mrb[0].mxu0
        %v2071 = vadd.f32 %v1640, %v2070
        %v2072 = vpop.f32.mrb[0].mxu0
        %v2073 = vadd.f32 %v1644, %v2072
        %2074 = vmatprep.mubr.bf16.mxu0 0
        %2075 = vmatmul.mubr.bf16.gmra.mrb[0].mxu0 %v1616
        %v2076 = vpop.f32.mrb[0].mxu0
        %v2077 = vadd.f32 %v1640, %v2076
        %v2078 = vpop.f32.mrb[0].mxu0
        %v2079 = vadd.f32 %v1644, %v2078
        %v2080 = vpop.f32.mrb[0].mxu0
        %v2081 = vadd.f32 %v1640, %v2080
        %v2082 = vpop.f32.mrb[0].mxu0
        %v2083 = vadd.f32 %v1644, %v2082
        %2084 = vmatprep.mubr.bf16.mxu0 0
        %2085 = vmatmul.mubr.bf16.gmra.mrb[0].mxu0 %v1617
        %v2086 = vpop.f32.mrb[0].mxu0
        %v2087 = vadd.f32 %v1640, %v2086
        %v2088 = vpop.f32.mrb[0].mxu0
        %v2089 = vadd.f32 %v1644, %v2088
        %v2090 = vpop.f32.mrb[0].mxu0
        %v2091 = vadd.f32 %v1640, %v2090
        %v2092 = vpop.f32.mrb[0].mxu0
        %v2093 = vadd.f32 %v1644, %v2092
        %2094 = vmatprep.mubr.bf16.mxu0 0
        %2095 = vmatmul.mubr.bf16.gmra.mrb[0].mxu0 %v1618
        %v2096 = vpop.f32.mrb[0].mxu0
        %v2097 = vadd.f32 %v1640, %v2096
        %v2098 = vpop.f32.mrb[0].mxu0
        %v2099 = vadd.f32 %v1644, %v2098
        %v2100 = vpop.f32.mrb[0].mxu0
        %v2101 = vadd.f32 %v1640, %v2100
        %v2102 = vpop.f32.mrb[0].mxu0
        %v2103 = vadd.f32 %v1644, %v2102
        %2104 = vmatprep.mubr.bf16.mxu0 0
        %2105 = vmatmul.mubr.bf16.gmra.mrb[0].mxu0 %v1619
        %v2106 = vpop.f32.mrb[0].mxu0
        %v2107 = vadd.f32 %v1640, %v2106
        %v2108 = vpop.f32.mrb[0].mxu0
        %v2109 = vadd.f32 %v1644, %v2108
        %v2110 = vpop.f32.mrb[0].mxu0
        %v2111 = vadd.f32 %v1640, %v2110
        %v2112 = vpop.f32.mrb[0].mxu0
        %v2113 = vadd.f32 %v1644, %v2112
        %2114 = vmatprep.mubr.bf16.mxu0 0
        %2115 = vmatmul.mubr.bf16.gmra.mrb[0].mxu0 %v1620
        %v2116 = vpop.f32.mrb[0].mxu0
        %v2117 = vadd.f32 %v1640, %v2116
        %v2118 = vpop.f32.mrb[0].mxu0
        %v2119 = vadd.f32 %v1644, %v2118
        %v2120 = vpop.f32.mrb[0].mxu0
        %v2121 = vadd.f32 %v1640, %v2120
        %v2122 = vpop.f32.mrb[0].mxu0
        %v2123 = vadd.f32 %v1644, %v2122
        %2124 = vmatprep.mubr.bf16.mxu0 0
        %2125 = vmatmul.mubr.bf16.gmra.mrb[0].mxu0 %v1621
        %v2126 = vpop.f32.mrb[0].mxu0
        %v2127 = vadd.f32 %v1640, %v2126
        %v2128 = vpop.f32.mrb[0].mxu0
        %v2129 = vadd.f32 %v1644, %v2128
        %v2130 = vpop.f32.mrb[0].mxu0
        %v2131 = vadd.f32 %v1640, %v2130
        %v2132 = vpop.f32.mrb[0].mxu0
        %v2133 = vadd.f32 %v1644, %v2132
        %2134 = vmatprep.mubr.bf16.mxu0 0
        %2135 = vmatmul.mubr.bf16.gmra.mrb[0].mxu0 %v1622
        %v2136 = vpop.f32.mrb[0].mxu0
        %v2137 = vadd.f32 %v1640, %v2136
        %v2138 = vpop.f32.mrb[0].mxu0
        %v2139 = vadd.f32 %v1644, %v2138
        %v2140 = vpop.f32.mrb[0].mxu0
        %v2141 = vadd.f32 %v1640, %v2140
        %v2142 = vpop.f32.mrb[0].mxu0
        %v2143 = vadd.f32 %v1644, %v2142
        %2144 = vmatprep.mubr.bf16.mxu0 0
        %2145 = vmatmul.mubr.bf16.gmra.mrb[0].mxu0 %v1623
        %v2146 = vpop.f32.mrb[0].mxu0
        %v2147 = vadd.f32 %v1640, %v2146
        %v2148 = vpop.f32.mrb[0].mxu0
        %v2149 = vadd.f32 %v1644, %v2148
        %v2150 = vpop.f32.mrb[0].mxu0
        %v2151 = vadd.f32 %v1640, %v2150
        %v2152 = vpop.f32.mrb[0].mxu0
        %v2153 = vadd.f32 %v1644, %v2152
        %2154 = vmatprep.mubr.bf16.mxu0 0
        %2155 = vmatmul.mubr.bf16.gmra.mrb[0].mxu0 %v1624
        %v2156 = vpop.f32.mrb[0].mxu0
        %v2157 = vadd.f32 %v1640, %v2156
        %v2158 = vpop.f32.mrb[0].mxu0
        %v2159 = vadd.f32 %v1644, %v2158
        %v2160 = vpop.f32.mrb[0].mxu0
        %v2161 = vadd.f32 %v1640, %v2160
        %v2162 = vpop.f32.mrb[0].mxu0
        %v2163 = vadd.f32 %v1644, %v2162
        %2164 = vmatprep.mubr.bf16.mxu0 0
        %2165 = vmatmul.mubr.bf16.gmra.mrb[0].mxu0 %v1625
        %v2166 = vpop.f32.mrb[0].mxu0
        %v2167 = vadd.f32 %v1640, %v2166
        %v2168 = vpop.f32.mrb[0].mxu0
        %v2169 = vadd.f32 %v1644, %v2168
        %v2170 = vpop.f32.mrb[0].mxu0
        %v2171 = vadd.f32 %v1640, %v2170
        %v2172 = vpop.f32.mrb[0].mxu0
        %v2173 = vadd.f32 %v1644, %v2172
        %2174 = vmatprep.mubr.bf16.mxu0 0
        %2175 = vmatmul.mubr.bf16.gmra.mrb[0].mxu0 %v1626
        %v2176 = vpop.f32.mrb[0].mxu0
        %v2177 = vadd.f32 %v1640, %v2176
        %v2178 = vpop.f32.mrb[0].mxu0
        %v2179 = vadd.f32 %v1644, %v2178
        %v2180 = vpop.f32.mrb[0].mxu0
        %v2181 = vadd.f32 %v1640, %v2180
        %v2182 = vpop.f32.mrb[0].mxu0
        %v2183 = vadd.f32 %v1644, %v2182
        %2184 = vmatprep.mubr.bf16.mxu0 0
        %2185 = vmatmul.mubr.bf16.gmra.mrb[0].mxu0 %v1627
        %v2186 = vpop.f32.mrb[0].mxu0
        %v2187 = vadd.f32 %v1640, %v2186
        %v2188 = vpop.f32.mrb[0].mxu0
        %v2189 = vadd.f32 %v1644, %v2188
        %v2190 = vpop.f32.mrb[0].mxu0
        %v2191 = vadd.f32 %v1640, %v2190
        %v2192 = vpop.f32.mrb[0].mxu0
        %v2193 = vadd.f32 %v1644, %v2192
        %2194 = vdwg.mxu0
        %vm2195 = vcmp.gt.f32.partialorder %v1844, 0.0
        %vm2196 = vcmp.gt.f32.partialorder %v1846, 0.0
        %vm2197 = vcmp.gt.f32.partialorder %v2037, 0.0
        %vm2198 = vcmp.gt.f32.partialorder %v2039, 0.0
        %vm2199 = vcmp.gt.f32.partialorder %v1848, 0.0
        %vm2200 = vcmp.gt.f32.partialorder %v1850, 0.0
        %vm2201 = vcmp.gt.f32.partialorder %v2041, 0.0
        %vm2202 = vcmp.gt.f32.partialorder %v2043, 0.0
        %vm2203 = vcmp.gt.f32.partialorder %v1854, 0.0
        %vm2204 = vcmp.gt.f32.partialorder %v1856, 0.0
        %vm2205 = vcmp.gt.f32.partialorder %v2047, 0.0
        %vm2206 = vcmp.gt.f32.partialorder %v2049, 0.0
        %vm2207 = vcmp.gt.f32.partialorder %v1858, 0.0
        %vm2208 = vcmp.gt.f32.partialorder %v1860, 0.0
        %vm2209 = vcmp.gt.f32.partialorder %v2051, 0.0
        %vm2210 = vcmp.gt.f32.partialorder %v2053, 0.0
        %vm2211 = vcmp.gt.f32.partialorder %v1864, 0.0
        %vm2212 = vcmp.gt.f32.partialorder %v1866, 0.0
        %vm2213 = vcmp.gt.f32.partialorder %v2057, 0.0
        %vm2214 = vcmp.gt.f32.partialorder %v2059, 0.0
        %vm2215 = vcmp.gt.f32.partialorder %v1868, 0.0
        %vm2216 = vcmp.gt.f32.partialorder %v1870, 0.0
        %vm2217 = vcmp.gt.f32.partialorder %v2061, 0.0
        %vm2218 = vcmp.gt.f32.partialorder %v2063, 0.0
        %vm2219 = vcmp.gt.f32.partialorder %v1874, 0.0
        %vm2220 = vcmp.gt.f32.partialorder %v1876, 0.0
        %vm2221 = vcmp.gt.f32.partialorder %v2067, 0.0
        %vm2222 = vcmp.gt.f32.partialorder %v2069, 0.0
        %vm2223 = vcmp.gt.f32.partialorder %v1878, 0.0
        %vm2224 = vcmp.gt.f32.partialorder %v1880, 0.0
        %vm2225 = vcmp.gt.f32.partialorder %v2071, 0.0
        %vm2226 = vcmp.gt.f32.partialorder %v2073, 0.0
        %vm2227 = vcmp.gt.f32.partialorder %v1884, 0.0
        %vm2228 = vcmp.gt.f32.partialorder %v1886, 0.0
        %vm2229 = vcmp.gt.f32.partialorder %v2077, 0.0
        %vm2230 = vcmp.gt.f32.partialorder %v2079, 0.0
        %vm2231 = vcmp.gt.f32.partialorder %v1888, 0.0
        %vm2232 = vcmp.gt.f32.partialorder %v1890, 0.0
        %vm2233 = vcmp.gt.f32.partialorder %v2081, 0.0
        %vm2234 = vcmp.gt.f32.partialorder %v2083, 0.0
        %vm2235 = vcmp.gt.f32.partialorder %v1894, 0.0
        %vm2236 = vcmp.gt.f32.partialorder %v1896, 0.0
        %vm2237 = vcmp.gt.f32.partialorder %v2087, 0.0
        %vm2238 = vcmp.gt.f32.partialorder %v2089, 0.0
        %vm2239 = vcmp.gt.f32.partialorder %v1898, 0.0
        %vm2240 = vcmp.gt.f32.partialorder %v1900, 0.0
        %vm2241 = vcmp.gt.f32.partialorder %v2091, 0.0
        %vm2242 = vcmp.gt.f32.partialorder %v2093, 0.0
        %vm2243 = vcmp.gt.f32.partialorder %v1904, 0.0
        %vm2244 = vcmp.gt.f32.partialorder %v1906, 0.0
        %vm2245 = vcmp.gt.f32.partialorder %v2097, 0.0
        %vm2246 = vcmp.gt.f32.partialorder %v2099, 0.0
        %vm2247 = vcmp.gt.f32.partialorder %v1908, 0.0
        %vm2248 = vcmp.gt.f32.partialorder %v1910, 0.0
        %vm2249 = vcmp.gt.f32.partialorder %v2101, 0.0
        %vm2250 = vcmp.gt.f32.partialorder %v2103, 0.0
        %vm2251 = vcmp.gt.f32.partialorder %v1914, 0.0
        %vm2252 = vcmp.gt.f32.partialorder %v1916, 0.0
        %vm2253 = vcmp.gt.f32.partialorder %v2107, 0.0
        %vm2254 = vcmp.gt.f32.partialorder %v2109, 0.0
        %vm2255 = vcmp.gt.f32.partialorder %v1918, 0.0
        %vm2256 = vcmp.gt.f32.partialorder %v1920, 0.0
        %vm2257 = vcmp.gt.f32.partialorder %v2111, 0.0
        %vm2258 = vcmp.gt.f32.partialorder %v2113, 0.0
        %vm2259 = vcmp.gt.f32.partialorder %v1924, 0.0
        %vm2260 = vcmp.gt.f32.partialorder %v1926, 0.0
        %vm2261 = vcmp.gt.f32.partialorder %v2117, 0.0
        %vm2262 = vcmp.gt.f32.partialorder %v2119, 0.0
        %vm2263 = vcmp.gt.f32.partialorder %v1928, 0.0
        %vm2264 = vcmp.gt.f32.partialorder %v1930, 0.0
        %vm2265 = vcmp.gt.f32.partialorder %v2121, 0.0
        %vm2266 = vcmp.gt.f32.partialorder %v2123, 0.0
        %vm2267 = vcmp.gt.f32.partialorder %v1934, 0.0
        %vm2268 = vcmp.gt.f32.partialorder %v1936, 0.0
        %vm2269 = vcmp.gt.f32.partialorder %v2127, 0.0
        %vm2270 = vcmp.gt.f32.partialorder %v2129, 0.0
        %vm2271 = vcmp.gt.f32.partialorder %v1938, 0.0
        %vm2272 = vcmp.gt.f32.partialorder %v1940, 0.0
        %vm2273 = vcmp.gt.f32.partialorder %v2131, 0.0
        %vm2274 = vcmp.gt.f32.partialorder %v2133, 0.0
        %vm2275 = vcmp.gt.f32.partialorder %v1944, 0.0
        %vm2276 = vcmp.gt.f32.partialorder %v1946, 0.0
        %vm2277 = vcmp.gt.f32.partialorder %v2137, 0.0
        %vm2278 = vcmp.gt.f32.partialorder %v2139, 0.0
        %vm2279 = vcmp.gt.f32.partialorder %v1948, 0.0
        %vm2280 = vcmp.gt.f32.partialorder %v1950, 0.0
        %vm2281 = vcmp.gt.f32.partialorder %v2141, 0.0
        %vm2282 = vcmp.gt.f32.partialorder %v2143, 0.0
        %vm2283 = vcmp.gt.f32.partialorder %v1954, 0.0
        %vm2284 = vcmp.gt.f32.partialorder %v1956, 0.0
        %vm2285 = vcmp.gt.f32.partialorder %v2147, 0.0
        %vm2286 = vcmp.gt.f32.partialorder %v2149, 0.0
        %vm2287 = vcmp.gt.f32.partialorder %v1958, 0.0
        %vm2288 = vcmp.gt.f32.partialorder %v1960, 0.0
        %vm2289 = vcmp.gt.f32.partialorder %v2151, 0.0
        %vm2290 = vcmp.gt.f32.partialorder %v2153, 0.0
        %vm2291 = vcmp.gt.f32.partialorder %v1964, 0.0
        %vm2292 = vcmp.gt.f32.partialorder %v1966, 0.0
        %vm2293 = vcmp.gt.f32.partialorder %v2157, 0.0
        %vm2294 = vcmp.gt.f32.partialorder %v2159, 0.0
        %vm2295 = vcmp.gt.f32.partialorder %v1968, 0.0
        %vm2296 = vcmp.gt.f32.partialorder %v1970, 0.0
        %vm2297 = vcmp.gt.f32.partialorder %v2161, 0.0
        %vm2298 = vcmp.gt.f32.partialorder %v2163, 0.0
        %vm2299 = vcmp.gt.f32.partialorder %v1974, 0.0
        %vm2300 = vcmp.gt.f32.partialorder %v1976, 0.0
        %vm2301 = vcmp.gt.f32.partialorder %v2167, 0.0
        %vm2302 = vcmp.gt.f32.partialorder %v2169, 0.0
        %vm2303 = vcmp.gt.f32.partialorder %v1978, 0.0
        %vm2304 = vcmp.gt.f32.partialorder %v1980, 0.0
        %vm2305 = vcmp.gt.f32.partialorder %v2171, 0.0
        %vm2306 = vcmp.gt.f32.partialorder %v2173, 0.0
        %vm2307 = vcmp.gt.f32.partialorder %v1984, 0.0
        %vm2308 = vcmp.gt.f32.partialorder %v1986, 0.0
        %vm2309 = vcmp.gt.f32.partialorder %v2177, 0.0
        %vm2310 = vcmp.gt.f32.partialorder %v2179, 0.0
        %vm2311 = vcmp.gt.f32.partialorder %v1988, 0.0
        %vm2312 = vcmp.gt.f32.partialorder %v1990, 0.0
        %vm2313 = vcmp.gt.f32.partialorder %v2181, 0.0
        %vm2314 = vcmp.gt.f32.partialorder %v2183, 0.0
        %vm2315 = vcmp.gt.f32.partialorder %v1994, 0.0
        %vm2316 = vcmp.gt.f32.partialorder %v1996, 0.0
        %vm2317 = vcmp.gt.f32.partialorder %v2187, 0.0
        %vm2318 = vcmp.gt.f32.partialorder %v2189, 0.0
        %vm2319 = vcmp.gt.f32.partialorder %v1998, 0.0
        %vm2320 = vcmp.gt.f32.partialorder %v2000, 0.0
        %vm2321 = vcmp.gt.f32.partialorder %v2191, 0.0
        %vm2322 = vcmp.gt.f32.partialorder %v2193, 0.0
        %v2323 = vmul.f32 %v1844, 0.01
        %v2324 = vmul.f32 %v1846, 0.01
        %v2325 = vmul.f32 %v2037, 0.01
        %v2326 = vmul.f32 %v2039, 0.01
        %v2327 = vmul.f32 %v1848, 0.01
        %v2328 = vmul.f32 %v1850, 0.01
        %v2329 = vmul.f32 %v2041, 0.01
        %v2330 = vmul.f32 %v2043, 0.01
        %v2331 = vmul.f32 %v1854, 0.01
        %v2332 = vmul.f32 %v1856, 0.01
        %v2333 = vmul.f32 %v2047, 0.01
        %v2334 = vmul.f32 %v2049, 0.01
        %v2335 = vmul.f32 %v1858, 0.01
        %v2336 = vmul.f32 %v1860, 0.01
        %v2337 = vmul.f32 %v2051, 0.01
        %v2338 = vmul.f32 %v2053, 0.01
        %v2339 = vmul.f32 %v1864, 0.01
        %v2340 = vmul.f32 %v1866, 0.01
        %v2341 = vmul.f32 %v2057, 0.01
        %v2342 = vmul.f32 %v2059, 0.01
        %v2343 = vmul.f32 %v1868, 0.01
        %v2344 = vmul.f32 %v1870, 0.01
        %v2345 = vmul.f32 %v2061, 0.01
        %v2346 = vmul.f32 %v2063, 0.01
        %v2347 = vmul.f32 %v1874, 0.01
        %v2348 = vmul.f32 %v1876, 0.01
        %v2349 = vmul.f32 %v2067, 0.01
        %v2350 = vmul.f32 %v2069, 0.01
        %v2351 = vmul.f32 %v1878, 0.01
        %v2352 = vmul.f32 %v1880, 0.01
        %v2353 = vmul.f32 %v2071, 0.01
        %v2354 = vmul.f32 %v2073, 0.01
        %v2355 = vmul.f32 %v1884, 0.01
        %v2356 = vmul.f32 %v1886, 0.01
        %v2357 = vmul.f32 %v2077, 0.01
        %v2358 = vmul.f32 %v2079, 0.01
        %v2359 = vmul.f32 %v1888, 0.01
        %v2360 = vmul.f32 %v1890, 0.01
        %v2361 = vmul.f32 %v2081, 0.01
        %v2362 = vmul.f32 %v2083, 0.01
        %v2363 = vmul.f32 %v1894, 0.01
        %v2364 = vmul.f32 %v1896, 0.01
        %v2365 = vmul.f32 %v2087, 0.01
        %v2366 = vmul.f32 %v2089, 0.01
        %v2367 = vmul.f32 %v1898, 0.01
        %v2368 = vmul.f32 %v1900, 0.01
        %v2369 = vmul.f32 %v2091, 0.01
        %v2370 = vmul.f32 %v2093, 0.01
        %v2371 = vmul.f32 %v1904, 0.01
        %v2372 = vmul.f32 %v1906, 0.01
        %v2373 = vmul.f32 %v2097, 0.01
        %v2374 = vmul.f32 %v2099, 0.01
        %v2375 = vmul.f32 %v1908, 0.01
        %v2376 = vmul.f32 %v1910, 0.01
        %v2377 = vmul.f32 %v2101, 0.01
        %v2378 = vmul.f32 %v2103, 0.01
        %v2379 = vmul.f32 %v1914, 0.01
        %v2380 = vmul.f32 %v1916, 0.01
        %v2381 = vmul.f32 %v2107, 0.01
        %v2382 = vmul.f32 %v2109, 0.01
        %v2383 = vmul.f32 %v1918, 0.01
        %v2384 = vmul.f32 %v1920, 0.01
        %v2385 = vmul.f32 %v2111, 0.01
        %v2386 = vmul.f32 %v2113, 0.01
        %v2387 = vmul.f32 %v1924, 0.01
        %v2388 = vmul.f32 %v1926, 0.01
        %v2389 = vmul.f32 %v2117, 0.01
        %v2390 = vmul.f32 %v2119, 0.01
        %v2391 = vmul.f32 %v1928, 0.01
        %v2392 = vmul.f32 %v1930, 0.01
        %v2393 = vmul.f32 %v2121, 0.01
        %v2394 = vmul.f32 %v2123, 0.01
        %v2395 = vmul.f32 %v1934, 0.01
        %v2396 = vmul.f32 %v1936, 0.01
        %v2397 = vmul.f32 %v2127, 0.01
        %v2398 = vmul.f32 %v2129, 0.01
        %v2399 = vmul.f32 %v1938, 0.01
        %v2400 = vmul.f32 %v1940, 0.01
        %v2401 = vmul.f32 %v2131, 0.01
        %v2402 = vmul.f32 %v2133, 0.01
        %v2403 = vmul.f32 %v1944, 0.01
        %v2404 = vmul.f32 %v1946, 0.01
        %v2405 = vmul.f32 %v2137, 0.01
        %v2406 = vmul.f32 %v2139, 0.01
        %v2407 = vmul.f32 %v1948, 0.01
        %v2408 = vmul.f32 %v1950, 0.01
        %v2409 = vmul.f32 %v2141, 0.01
        %v2410 = vmul.f32 %v2143, 0.01
        %v2411 = vmul.f32 %v1954, 0.01
        %v2412 = vmul.f32 %v1956, 0.01
        %v2413 = vmul.f32 %v2147, 0.01
        %v2414 = vmul.f32 %v2149, 0.01
        %v2415 = vmul.f32 %v1958, 0.01
        %v2416 = vmul.f32 %v1960, 0.01
        %v2417 = vmul.f32 %v2151, 0.01
        %v2418 = vmul.f32 %v2153, 0.01
        %v2419 = vmul.f32 %v1964, 0.01
        %v2420 = vmul.f32 %v1966, 0.01
        %v2421 = vmul.f32 %v2157, 0.01
        %v2422 = vmul.f32 %v2159, 0.01
        %v2423 = vmul.f32 %v1968, 0.01
        %v2424 = vmul.f32 %v1970, 0.01
        %v2425 = vmul.f32 %v2161, 0.01
        %v2426 = vmul.f32 %v2163, 0.01
        %v2427 = vmul.f32 %v1974, 0.01
        %v2428 = vmul.f32 %v1976, 0.01
        %v2429 = vmul.f32 %v2167, 0.01
        %v2430 = vmul.f32 %v2169, 0.01
        %v2431 = vmul.f32 %v1978, 0.01
        %v2432 = vmul.f32 %v1980, 0.01
        %v2433 = vmul.f32 %v2171, 0.01
        %v2434 = vmul.f32 %v2173, 0.01
        %v2435 = vmul.f32 %v1984, 0.01
        %v2436 = vmul.f32 %v1986, 0.01
        %v2437 = vmul.f32 %v2177, 0.01
        %v2438 = vmul.f32 %v2179, 0.01
        %v2439 = vmul.f32 %v1988, 0.01
        %v2440 = vmul.f32 %v1990, 0.01
        %v2441 = vmul.f32 %v2181, 0.01
        %v2442 = vmul.f32 %v2183, 0.01
        %v2443 = vmul.f32 %v1994, 0.01
        %v2444 = vmul.f32 %v1996, 0.01
        %v2445 = vmul.f32 %v2187, 0.01
        %v2446 = vmul.f32 %v2189, 0.01
        %v2447 = vmul.f32 %v1998, 0.01
        %v2448 = vmul.f32 %v2000, 0.01
        %v2449 = vmul.f32 %v2191, 0.01
        %v2450 = vmul.f32 %v2193, 0.01
        %v2451 = vsel %vm2195, %v1844, %v2323
        %v2452 = vsel %vm2196, %v1846, %v2324
        %v2453 = vsel %vm2197, %v2037, %v2325
        %v2454 = vsel %vm2198, %v2039, %v2326
        %v2455 = vsel %vm2199, %v1848, %v2327
        %v2456 = vsel %vm2200, %v1850, %v2328
        %v2457 = vsel %vm2201, %v2041, %v2329
        %v2458 = vsel %vm2202, %v2043, %v2330
        %v2459 = vsel %vm2203, %v1854, %v2331
        %v2460 = vsel %vm2204, %v1856, %v2332
        %v2461 = vsel %vm2205, %v2047, %v2333
        %v2462 = vsel %vm2206, %v2049, %v2334
        %v2463 = vsel %vm2207, %v1858, %v2335
        %v2464 = vsel %vm2208, %v1860, %v2336
        %v2465 = vsel %vm2209, %v2051, %v2337
        %v2466 = vsel %vm2210, %v2053, %v2338
        %v2467 = vsel %vm2211, %v1864, %v2339
        %v2468 = vsel %vm2212, %v1866, %v2340
        %v2469 = vsel %vm2213, %v2057, %v2341
        %v2470 = vsel %vm2214, %v2059, %v2342
        %v2471 = vsel %vm2215, %v1868, %v2343
        %v2472 = vsel %vm2216, %v1870, %v2344
        %v2473 = vsel %vm2217, %v2061, %v2345
        %v2474 = vsel %vm2218, %v2063, %v2346
        %v2475 = vsel %vm2219, %v1874, %v2347
        %v2476 = vsel %vm2220, %v1876, %v2348
        %v2477 = vsel %vm2221, %v2067, %v2349
        %v2478 = vsel %vm2222, %v2069, %v2350
        %v2479 = vsel %vm2223, %v1878, %v2351
        %v2480 = vsel %vm2224, %v1880, %v2352
        %v2481 = vsel %vm2225, %v2071, %v2353
        %v2482 = vsel %vm2226, %v2073, %v2354
        %v2483 = vsel %vm2227, %v1884, %v2355
        %v2484 = vsel %vm2228, %v1886, %v2356
        %v2485 = vsel %vm2229, %v2077, %v2357
        %v2486 = vsel %vm2230, %v2079, %v2358
        %v2487 = vsel %vm2231, %v1888, %v2359
        %v2488 = vsel %vm2232, %v1890, %v2360
        %v2489 = vsel %vm2233, %v2081, %v2361
        %v2490 = vsel %vm2234, %v2083, %v2362
        %v2491 = vsel %vm2235, %v1894, %v2363
        %v2492 = vsel %vm2236, %v1896, %v2364
        %v2493 = vsel %vm2237, %v2087, %v2365
        %v2494 = vsel %vm2238, %v2089, %v2366
        %v2495 = vsel %vm2239, %v1898, %v2367
        %v2496 = vsel %vm2240, %v1900, %v2368
        %v2497 = vsel %vm2241, %v2091, %v2369
        %v2498 = vsel %vm2242, %v2093, %v2370
        %v2499 = vsel %vm2243, %v1904, %v2371
        %v2500 = vsel %vm2244, %v1906, %v2372
        %v2501 = vsel %vm2245, %v2097, %v2373
        %v2502 = vsel %vm2246, %v2099, %v2374
        %v2503 = vsel %vm2247, %v1908, %v2375
        %v2504 = vsel %vm2248, %v1910, %v2376
        %v2505 = vsel %vm2249, %v2101, %v2377
        %v2506 = vsel %vm2250, %v2103, %v2378
        %v2507 = vsel %vm2251, %v1914, %v2379
        %v2508 = vsel %vm2252, %v1916, %v2380
        %v2509 = vsel %vm2253, %v2107, %v2381
        %v2510 = vsel %vm2254, %v2109, %v2382
        %v2511 = vsel %vm2255, %v1918, %v2383
        %v2512 = vsel %vm2256, %v1920, %v2384
        %v2513 = vsel %vm2257, %v2111, %v2385
        %v2514 = vsel %vm2258, %v2113, %v2386
        %v2515 = vsel %vm2259, %v1924, %v2387
        %v2516 = vsel %vm2260, %v1926, %v2388
        %v2517 = vsel %vm2261, %v2117, %v2389
        %v2518 = vsel %vm2262, %v2119, %v2390
        %v2519 = vsel %vm2263, %v1928, %v2391
        %v2520 = vsel %vm2264, %v1930, %v2392
        %v2521 = vsel %vm2265, %v2121, %v2393
        %v2522 = vsel %vm2266, %v2123, %v2394
        %v2523 = vsel %vm2267, %v1934, %v2395
        %v2524 = vsel %vm2268, %v1936, %v2396
        %v2525 = vsel %vm2269, %v2127, %v2397
        %v2526 = vsel %vm2270, %v2129, %v2398
        %v2527 = vsel %vm2271, %v1938, %v2399
        %v2528 = vsel %vm2272, %v1940, %v2400
        %v2529 = vsel %vm2273, %v2131, %v2401
        %v2530 = vsel %vm2274, %v2133, %v2402
        %v2531 = vsel %vm2275, %v1944, %v2403
        %v2532 = vsel %vm2276, %v1946, %v2404
        %v2533 = vsel %vm2277, %v2137, %v2405
        %v2534 = vsel %vm2278, %v2139, %v2406
        %v2535 = vsel %vm2279, %v1948, %v2407
        %v2536 = vsel %vm2280, %v1950, %v2408
        %v2537 = vsel %vm2281, %v2141, %v2409
        %v2538 = vsel %vm2282, %v2143, %v2410
        %v2539 = vsel %vm2283, %v1954, %v2411
        %v2540 = vsel %vm2284, %v1956, %v2412
        %v2541 = vsel %vm2285, %v2147, %v2413
        %v2542 = vsel %vm2286, %v2149, %v2414
        %v2543 = vsel %vm2287, %v1958, %v2415
        %v2544 = vsel %vm2288, %v1960, %v2416
        %v2545 = vsel %vm2289, %v2151, %v2417
        %v2546 = vsel %vm2290, %v2153, %v2418
        %v2547 = vsel %vm2291, %v1964, %v2419
        %v2548 = vsel %vm2292, %v1966, %v2420
        %v2549 = vsel %vm2293, %v2157, %v2421
        %v2550 = vsel %vm2294, %v2159, %v2422
        %v2551 = vsel %vm2295, %v1968, %v2423
        %v2552 = vsel %vm2296, %v1970, %v2424
        %v2553 = vsel %vm2297, %v2161, %v2425
        %v2554 = vsel %vm2298, %v2163, %v2426
        %v2555 = vsel %vm2299, %v1974, %v2427
        %v2556 = vsel %vm2300, %v1976, %v2428
        %v2557 = vsel %vm2301, %v2167, %v2429
        %v2558 = vsel %vm2302, %v2169, %v2430
        %v2559 = vsel %vm2303, %v1978, %v2431
        %v2560 = vsel %vm2304, %v1980, %v2432
        %v2561 = vsel %vm2305, %v2171, %v2433
        %v2562 = vsel %vm2306, %v2173, %v2434
        %v2563 = vsel %vm2307, %v1984, %v2435
        %v2564 = vsel %vm2308, %v1986, %v2436
        %v2565 = vsel %vm2309, %v2177, %v2437
        %v2566 = vsel %vm2310, %v2179, %v2438
        %v2567 = vsel %vm2311, %v1988, %v2439
        %v2568 = vsel %vm2312, %v1990, %v2440
        %v2569 = vsel %vm2313, %v2181, %v2441
        %v2570 = vsel %vm2314, %v2183, %v2442
        %v2571 = vsel %vm2315, %v1994, %v2443
        %v2572 = vsel %vm2316, %v1996, %v2444
        %v2573 = vsel %vm2317, %v2187, %v2445
        %v2574 = vsel %vm2318, %v2189, %v2446
        %v2575 = vsel %vm2319, %v1998, %v2447
        %v2576 = vsel %vm2320, %v2000, %v2448
        %v2577 = vsel %vm2321, %v2191, %v2449
        %v2578 = vsel %vm2322, %v2193, %v2450
        %v2579 = vld [vmem:[#allocation2 + $0x420] sm:$0xf]
        %v2580 = vld [vmem:[#allocation2 + $0x430] sm:$0xf]
        %v2581 = vld [vmem:[#allocation2 + $0x440] sm:$0xf]
        %v2582 = vld [vmem:[#allocation2 + $0x450] sm:$0xf]
        %v2583 = vld [vmem:[#allocation2 + $0x460] sm:$0xf]
        %v2584 = vld [vmem:[#allocation2 + $0x470] sm:$0xf]
        %v2585 = vld [vmem:[#allocation2 + $0x480] sm:$0xf]
        %v2586 = vld [vmem:[#allocation2 + $0x490] sm:$0xf]
        %v2587 = vld [vmem:[#allocation2 + $0x4a0] sm:$0xf]
        %v2588 = vld [vmem:[#allocation2 + $0x4b0] sm:$0xf]
        %v2589 = vld [vmem:[#allocation2 + $0x4c0] sm:$0xf]
        %v2590 = vld [vmem:[#allocation2 + $0x4d0] sm:$0xf]
        %v2591 = vld [vmem:[#allocation2 + $0x4e0] sm:$0xf]
        %v2592 = vld [vmem:[#allocation2 + $0x4f0] sm:$0xf]
        %v2593 = vld [vmem:[#allocation2 + $0x500] sm:$0xf]
        %v2594 = vld [vmem:[#allocation2 + $0x510] sm:$0xf]
        %v2595 = vld [vmem:[#allocation2 + $0x520] sm:$0xf]
        %v2596 = vld [vmem:[#allocation2 + $0x530] sm:$0xf]
        %v2597 = vld [vmem:[#allocation2 + $0x540] sm:$0xf]
        %v2598 = vld [vmem:[#allocation2 + $0x550] sm:$0xf]
        %v2599 = vld [vmem:[#allocation2 + $0x560] sm:$0xf]
        %v2600 = vld [vmem:[#allocation2 + $0x570] sm:$0xf]
        %v2601 = vld [vmem:[#allocation2 + $0x580] sm:$0xf]
        %v2602 = vld [vmem:[#allocation2 + $0x590] sm:$0xf]
        %v2603 = vld [vmem:[#allocation2 + $0x5a0] sm:$0xf]
        %v2604 = vld [vmem:[#allocation2 + $0x5b0] sm:$0xf]
        %v2605 = vld [vmem:[#allocation2 + $0x5c0] sm:$0xf]
        %v2606 = vld [vmem:[#allocation2 + $0x5d0] sm:$0xf]
        %v2607 = vld [vmem:[#allocation2 + $0x5e0] sm:$0xf]
        %v2608 = vld [vmem:[#allocation2 + $0x5f0] sm:$0xf]
        %v2609 = vld [vmem:[#allocation2 + $0x600] sm:$0xf]
        %v2610 = vld [vmem:[#allocation2 + $0x610] sm:$0xf]
        %v2611 = vld [vmem:[#allocation2 + $0x620] sm:$0xf]
        %v2612 = vld [vmem:[#allocation2 + $0x630] sm:$0xf]
        %v2613 = vld [vmem:[#allocation2 + $0x640] sm:$0xf]
        %v2614 = vld [vmem:[#allocation2 + $0x650] sm:$0xf]
        %v2615 = vld [vmem:[#allocation2 + $0x660] sm:$0xf]
        %v2616 = vld [vmem:[#allocation2 + $0x670] sm:$0xf]
        %v2617 = vld [vmem:[#allocation2 + $0x680] sm:$0xf]
        %v2618 = vld [vmem:[#allocation2 + $0x690] sm:$0xf]
        %v2619 = vld [vmem:[#allocation2 + $0x6a0] sm:$0xf]
        %v2620 = vld [vmem:[#allocation2 + $0x6b0] sm:$0xf]
        %v2621 = vld [vmem:[#allocation2 + $0x6c0] sm:$0xf]
        %v2622 = vld [vmem:[#allocation2 + $0x6d0] sm:$0xf]
        %v2623 = vld [vmem:[#allocation2 + $0x6e0] sm:$0xf]
        %v2624 = vld [vmem:[#allocation2 + $0x6f0] sm:$0xf]
        %v2625 = vld [vmem:[#allocation2 + $0x700] sm:$0xf]
        %v2626 = vld [vmem:[#allocation2 + $0x710] sm:$0xf]
        %v2627 = vld [vmem:[#allocation2 + $0x720] sm:$0xf]
        %v2628 = vld [vmem:[#allocation2 + $0x730] sm:$0xf]
        %v2629 = vld [vmem:[#allocation2 + $0x740] sm:$0xf]
        %v2630 = vld [vmem:[#allocation2 + $0x750] sm:$0xf]
        %v2631 = vld [vmem:[#allocation2 + $0x760] sm:$0xf]
        %v2632 = vld [vmem:[#allocation2 + $0x770] sm:$0xf]
        %v2633 = vld [vmem:[#allocation2 + $0x780] sm:$0xf]
        %v2634 = vld [vmem:[#allocation2 + $0x790] sm:$0xf]
        %v2635 = vld [vmem:[#allocation2 + $0x7a0] sm:$0xf]
        %v2636 = vld [vmem:[#allocation2 + $0x7b0] sm:$0xf]
        %v2637 = vld [vmem:[#allocation2 + $0x7c0] sm:$0xf]
        %v2638 = vld [vmem:[#allocation2 + $0x7d0] sm:$0xf]
        %v2639 = vld [vmem:[#allocation2 + $0x7e0] sm:$0xf]
        %v2640 = vld [vmem:[#allocation2 + $0x7f0] sm:$0xf]
        %v2641 = vld [vmem:[#allocation2 + $0x800] sm:$0xf]
        %v2642 = vld [vmem:[#allocation2 + $0x810] sm:$0xf]
        %v2643 = vld [vmem:[#allocation5 + $0x5] ss:$0 sm:$0xff]
        %v2644 = vpack.c.bf16 %v2455, %v2451
        %v2645 = vpack.c.bf16 %v2456, %v2452
        %v2646 = vpack.c.bf16 %v2457, %v2453
        %v2647 = vpack.c.bf16 %v2458, %v2454
        %v2648 = vpack.c.bf16 %v2463, %v2459
        %v2649 = vpack.c.bf16 %v2464, %v2460
        %v2650 = vpack.c.bf16 %v2465, %v2461
        %v2651 = vpack.c.bf16 %v2466, %v2462
        %v2652 = vpack.c.bf16 %v2471, %v2467
        %v2653 = vpack.c.bf16 %v2472, %v2468
        %v2654 = vpack.c.bf16 %v2473, %v2469
        %v2655 = vpack.c.bf16 %v2474, %v2470
        %v2656 = vpack.c.bf16 %v2479, %v2475
        %v2657 = vpack.c.bf16 %v2480, %v2476
        %v2658 = vpack.c.bf16 %v2481, %v2477
        %v2659 = vpack.c.bf16 %v2482, %v2478
        %v2660 = vpack.c.bf16 %v2487, %v2483
        %v2661 = vpack.c.bf16 %v2488, %v2484
        %v2662 = vpack.c.bf16 %v2489, %v2485
        %v2663 = vpack.c.bf16 %v2490, %v2486
        %v2664 = vpack.c.bf16 %v2495, %v2491
        %v2665 = vpack.c.bf16 %v2496, %v2492
        %v2666 = vpack.c.bf16 %v2497, %v2493
        %v2667 = vpack.c.bf16 %v2498, %v2494
        %v2668 = vpack.c.bf16 %v2503, %v2499
        %v2669 = vpack.c.bf16 %v2504, %v2500
        %v2670 = vpack.c.bf16 %v2505, %v2501
        %v2671 = vpack.c.bf16 %v2506, %v2502
        %v2672 = vpack.c.bf16 %v2511, %v2507
        %v2673 = vpack.c.bf16 %v2512, %v2508
        %v2674 = vpack.c.bf16 %v2513, %v2509
        %v2675 = vpack.c.bf16 %v2514, %v2510
        %v2676 = vpack.c.bf16 %v2519, %v2515
        %v2677 = vpack.c.bf16 %v2520, %v2516
        %v2678 = vpack.c.bf16 %v2521, %v2517
        %v2679 = vpack.c.bf16 %v2522, %v2518
        %v2680 = vpack.c.bf16 %v2527, %v2523
        %v2681 = vpack.c.bf16 %v2528, %v2524
        %v2682 = vpack.c.bf16 %v2529, %v2525
        %v2683 = vpack.c.bf16 %v2530, %v2526
        %v2684 = vpack.c.bf16 %v2535, %v2531
        %v2685 = vpack.c.bf16 %v2536, %v2532
        %v2686 = vpack.c.bf16 %v2537, %v2533
        %v2687 = vpack.c.bf16 %v2538, %v2534
        %v2688 = vpack.c.bf16 %v2543, %v2539
        %v2689 = vpack.c.bf16 %v2544, %v2540
        %v2690 = vpack.c.bf16 %v2545, %v2541
        %v2691 = vpack.c.bf16 %v2546, %v2542
        %v2692 = vpack.c.bf16 %v2551, %v2547
        %v2693 = vpack.c.bf16 %v2552, %v2548
        %v2694 = vpack.c.bf16 %v2553, %v2549
        %v2695 = vpack.c.bf16 %v2554, %v2550
        %v2696 = vpack.c.bf16 %v2559, %v2555
        %v2697 = vpack.c.bf16 %v2560, %v2556
        %v2698 = vpack.c.bf16 %v2561, %v2557
        %v2699 = vpack.c.bf16 %v2562, %v2558
        %v2700 = vpack.c.bf16 %v2567, %v2563
        %v2701 = vpack.c.bf16 %v2568, %v2564
        %v2702 = vpack.c.bf16 %v2569, %v2565
        %v2703 = vpack.c.bf16 %v2570, %v2566
        %v2704 = vpack.c.bf16 %v2575, %v2571
        %v2705 = vpack.c.bf16 %v2576, %v2572
        %v2706 = vpack.c.bf16 %v2577, %v2573
        %v2707 = vpack.c.bf16 %v2578, %v2574
        %v2772 = vunpack.c.l.b16 %v2579
        %v2773 = vunpack.c.l.b16 %v2580
        %v2774 = vunpack.c.l.b16 %v2581
        %v2775 = vunpack.c.l.b16 %v2582
        %v2776 = vunpack.c.l.b16 %v2583
        %v2777 = vunpack.c.l.b16 %v2584
        %v2778 = vunpack.c.l.b16 %v2585
        %v2779 = vunpack.c.l.b16 %v2586
        %v2780 = vunpack.c.l.b16 %v2587
        %v2781 = vunpack.c.l.b16 %v2588
        %v2782 = vunpack.c.l.b16 %v2589
        %v2783 = vunpack.c.l.b16 %v2590
        %v2784 = vunpack.c.l.b16 %v2591
        %v2785 = vunpack.c.l.b16 %v2592
        %v2786 = vunpack.c.l.b16 %v2593
        %v2787 = vunpack.c.l.b16 %v2594
        %v2788 = vunpack.c.l.b16 %v2595
        %v2789 = vunpack.c.l.b16 %v2596
        %v2790 = vunpack.c.l.b16 %v2597
        %v2791 = vunpack.c.l.b16 %v2598
        %v2792 = vunpack.c.l.b16 %v2599
        %v2793 = vunpack.c.l.b16 %v2600
        %v2794 = vunpack.c.l.b16 %v2601
        %v2795 = vunpack.c.l.b16 %v2602
        %v2796 = vunpack.c.l.b16 %v2603
        %v2797 = vunpack.c.l.b16 %v2604
        %v2798 = vunpack.c.l.b16 %v2605
        %v2799 = vunpack.c.l.b16 %v2606
        %v2800 = vunpack.c.l.b16 %v2607
        %v2801 = vunpack.c.l.b16 %v2608
        %v2802 = vunpack.c.l.b16 %v2609
        %v2803 = vunpack.c.l.b16 %v2610
        %v2804 = vunpack.c.l.b16 %v2611
        %v2805 = vunpack.c.l.b16 %v2612
        %v2806 = vunpack.c.l.b16 %v2613
        %v2807 = vunpack.c.l.b16 %v2614
        %v2808 = vunpack.c.l.b16 %v2615
        %v2809 = vunpack.c.l.b16 %v2616
        %v2810 = vunpack.c.l.b16 %v2617
        %v2811 = vunpack.c.l.b16 %v2618
        %v2812 = vunpack.c.l.b16 %v2619
        %v2813 = vunpack.c.l.b16 %v2620
        %v2814 = vunpack.c.l.b16 %v2621
        %v2815 = vunpack.c.l.b16 %v2622
        %v2816 = vunpack.c.l.b16 %v2623
        %v2817 = vunpack.c.l.b16 %v2624
        %v2818 = vunpack.c.l.b16 %v2625
        %v2819 = vunpack.c.l.b16 %v2626
        %v2820 = vunpack.c.l.b16 %v2627
        %v2821 = vunpack.c.l.b16 %v2628
        %v2822 = vunpack.c.l.b16 %v2629
        %v2823 = vunpack.c.l.b16 %v2630
        %v2824 = vunpack.c.l.b16 %v2631
        %v2825 = vunpack.c.l.b16 %v2632
        %v2826 = vunpack.c.l.b16 %v2633
        %v2827 = vunpack.c.l.b16 %v2634
        %v2828 = vunpack.c.l.b16 %v2635
        %v2829 = vunpack.c.l.b16 %v2636
        %v2830 = vunpack.c.l.b16 %v2637
        %v2831 = vunpack.c.l.b16 %v2638
        %v2832 = vunpack.c.l.b16 %v2639
        %v2833 = vunpack.c.l.b16 %v2640
        %v2834 = vunpack.c.l.b16 %v2641
        %v2835 = vunpack.c.l.b16 %v2642
        %v2836 = vpack.c.b16 %v2773, %v2772
        %v2837 = vpack.c.b16 %v2775, %v2774
        %v2838 = vpack.c.b16 %v2777, %v2776
        %v2839 = vpack.c.b16 %v2779, %v2778
        %v2840 = vpack.c.b16 %v2781, %v2780
        %v2841 = vpack.c.b16 %v2783, %v2782
        %v2842 = vpack.c.b16 %v2785, %v2784
        %v2843 = vpack.c.b16 %v2787, %v2786
        %v2844 = vpack.c.b16 %v2789, %v2788
        %v2845 = vpack.c.b16 %v2791, %v2790
        %v2846 = vpack.c.b16 %v2793, %v2792
        %v2847 = vpack.c.b16 %v2795, %v2794
        %v2848 = vpack.c.b16 %v2797, %v2796
        %v2849 = vpack.c.b16 %v2799, %v2798
        %v2850 = vpack.c.b16 %v2801, %v2800
        %v2851 = vpack.c.b16 %v2803, %v2802
        %v2852 = vpack.c.b16 %v2805, %v2804
        %v2853 = vpack.c.b16 %v2807, %v2806
        %v2854 = vpack.c.b16 %v2809, %v2808
        %v2855 = vpack.c.b16 %v2811, %v2810
        %v2856 = vpack.c.b16 %v2813, %v2812
        %v2857 = vpack.c.b16 %v2815, %v2814
        %v2858 = vpack.c.b16 %v2817, %v2816
        %v2859 = vpack.c.b16 %v2819, %v2818
        %v2860 = vpack.c.b16 %v2821, %v2820
        %v2861 = vpack.c.b16 %v2823, %v2822
        %v2862 = vpack.c.b16 %v2825, %v2824
        %v2863 = vpack.c.b16 %v2827, %v2826
        %v2864 = vpack.c.b16 %v2829, %v2828
        %v2865 = vpack.c.b16 %v2831, %v2830
        %v2866 = vpack.c.b16 %v2833, %v2832
        %v2867 = vpack.c.b16 %v2835, %v2834
        %2900 = vmatprep.subr.bf16.mxu0 0
        %2901 = vmatpush1.bf16.msra.mxu0 %v2836
        %2902 = vmatprep.subr.bf16.mxu0 0
        %2903 = vmatpush1.bf16.msra.mxu0 %v2837
        %2904 = vmatprep.subr.bf16.mxu0 0
        %2905 = vmatpush1.bf16.msra.mxu0 %v2838
        %2906 = vmatprep.subr.bf16.mxu0 0
        %2907 = vmatpush1.bf16.msra.mxu0 %v2839
        %2908 = vmatprep.subr.bf16.mxu0 0
        %2909 = vmatpush1.bf16.msra.mxu0 %v2840
        %2910 = vmatprep.subr.bf16.mxu0 0
        %2911 = vmatpush1.bf16.msra.mxu0 %v2841
        %2912 = vmatprep.subr.bf16.mxu0 0
        %2913 = vmatpush1.bf16.msra.mxu0 %v2842
        %2914 = vmatprep.subr.bf16.mxu0 0
        %2915 = vmatpush1.bf16.msra.mxu0 %v2843
        %2916 = vmatprep.subr.bf16.mxu0 0
        %2917 = vmatpush1.bf16.msra.mxu0 %v2844
        %2918 = vmatprep.subr.bf16.mxu0 0
        %2919 = vmatpush1.bf16.msra.mxu0 %v2845
        %2920 = vmatprep.subr.bf16.mxu0 0
        %2921 = vmatpush1.bf16.msra.mxu0 %v2846
        %2922 = vmatprep.subr.bf16.mxu0 0
        %2923 = vmatpush1.bf16.msra.mxu0 %v2847
        %2924 = vmatprep.subr.bf16.mxu0 0
        %2925 = vmatpush1.bf16.msra.mxu0 %v2848
        %2926 = vmatprep.subr.bf16.mxu0 0
        %2927 = vmatpush1.bf16.msra.mxu0 %v2849
        %2928 = vmatprep.subr.bf16.mxu0 0
        %2929 = vmatpush1.bf16.msra.mxu0 %v2850
        %2930 = vmatprep.subr.bf16.mxu0 0
        %2931 = vmatpush1.bf16.msra.mxu0 %v2851
        %2932 = vmatprep.mubr.bf16.mxu0 %v2645
        %2933 = vmatmul.mubr.bf16.gmra.mrb[0].mxu0 %v2644
        %v2934 = vpop.f32.mrb[0].mxu0
        %v2935 = vadd.f32 %v2643, %v2934
        %v2936 = vpop.f32.mrb[0].mxu0
        %v2937 = vpop.f32.mrb[0].mxu0
        %v2938 = vadd.f32 %v2643, %v2937
        %v2939 = vpop.f32.mrb[0].mxu0
        %2940 = vmatprep.mubr.bf16.mxu0 %v2649
        %2941 = vmatmul.mubr.bf16.gmra.mrb[0].mxu0 %v2648
        %v2942 = vpop.f32.mrb[0].mxu0
        %v2943 = vadd.f32 %v2643, %v2942
        %v2944 = vpop.f32.mrb[0].mxu0
        %v2945 = vpop.f32.mrb[0].mxu0
        %v2946 = vadd.f32 %v2643, %v2945
        %v2947 = vpop.f32.mrb[0].mxu0
        %2948 = vmatprep.mubr.bf16.mxu0 %v2653
        %2949 = vmatmul.mubr.bf16.gmra.mrb[0].mxu0 %v2652
        %v2950 = vpop.f32.mrb[0].mxu0
        %v2951 = vadd.f32 %v2643, %v2950
        %v2952 = vpop.f32.mrb[0].mxu0
        %v2953 = vpop.f32.mrb[0].mxu0
        %v2954 = vadd.f32 %v2643, %v2953
        %v2955 = vpop.f32.mrb[0].mxu0
        %2956 = vmatprep.mubr.bf16.mxu0 %v2657
        %2957 = vmatmul.mubr.bf16.gmra.mrb[0].mxu0 %v2656
        %v2958 = vpop.f32.mrb[0].mxu0
        %v2959 = vadd.f32 %v2643, %v2958
        %v2960 = vpop.f32.mrb[0].mxu0
        %v2961 = vpop.f32.mrb[0].mxu0
        %v2962 = vadd.f32 %v2643, %v2961
        %v2963 = vpop.f32.mrb[0].mxu0
        %2964 = vmatprep.mubr.bf16.mxu0 %v2661
        %2965 = vmatmul.mubr.bf16.gmra.mrb[0].mxu0 %v2660
        %v2966 = vpop.f32.mrb[0].mxu0
        %v2967 = vadd.f32 %v2643, %v2966
        %v2968 = vpop.f32.mrb[0].mxu0
        %v2969 = vpop.f32.mrb[0].mxu0
        %v2970 = vadd.f32 %v2643, %v2969
        %v2971 = vpop.f32.mrb[0].mxu0
        %2972 = vmatprep.mubr.bf16.mxu0 %v2665
        %2973 = vmatmul.mubr.bf16.gmra.mrb[0].mxu0 %v2664
        %v2974 = vpop.f32.mrb[0].mxu0
        %v2975 = vadd.f32 %v2643, %v2974
        %v2976 = vpop.f32.mrb[0].mxu0
        %v2977 = vpop.f32.mrb[0].mxu0
        %v2978 = vadd.f32 %v2643, %v2977
        %v2979 = vpop.f32.mrb[0].mxu0
        %2980 = vmatprep.mubr.bf16.mxu0 %v2669
        %2981 = vmatmul.mubr.bf16.gmra.mrb[0].mxu0 %v2668
        %v2982 = vpop.f32.mrb[0].mxu0
        %v2983 = vadd.f32 %v2643, %v2982
        %v2984 = vpop.f32.mrb[0].mxu0
        %v2985 = vpop.f32.mrb[0].mxu0
        %v2986 = vadd.f32 %v2643, %v2985
        %v2987 = vpop.f32.mrb[0].mxu0
        %2988 = vmatprep.mubr.bf16.mxu0 %v2673
        %2989 = vmatmul.mubr.bf16.gmra.mrb[0].mxu0 %v2672
        %v2990 = vpop.f32.mrb[0].mxu0
        %v2991 = vadd.f32 %v2643, %v2990
        %v2992 = vpop.f32.mrb[0].mxu0
        %v2993 = vpop.f32.mrb[0].mxu0
        %v2994 = vadd.f32 %v2643, %v2993
        %v2995 = vpop.f32.mrb[0].mxu0
        %2996 = vmatprep.mubr.bf16.mxu0 %v2677
        %2997 = vmatmul.mubr.bf16.gmra.mrb[0].mxu0 %v2676
        %v2998 = vpop.f32.mrb[0].mxu0
        %v2999 = vadd.f32 %v2643, %v2998
        %v3000 = vpop.f32.mrb[0].mxu0
        %v3001 = vpop.f32.mrb[0].mxu0
        %v3002 = vadd.f32 %v2643, %v3001
        %v3003 = vpop.f32.mrb[0].mxu0
        %3004 = vmatprep.mubr.bf16.mxu0 %v2681
        %3005 = vmatmul.mubr.bf16.gmra.mrb[0].mxu0 %v2680
        %v3006 = vpop.f32.mrb[0].mxu0
        %v3007 = vadd.f32 %v2643, %v3006
        %v3008 = vpop.f32.mrb[0].mxu0
        %v3009 = vpop.f32.mrb[0].mxu0
        %v3010 = vadd.f32 %v2643, %v3009
        %v3011 = vpop.f32.mrb[0].mxu0
        %3012 = vmatprep.mubr.bf16.mxu0 %v2685
        %3013 = vmatmul.mubr.bf16.gmra.mrb[0].mxu0 %v2684
        %v3014 = vpop.f32.mrb[0].mxu0
        %v3015 = vadd.f32 %v2643, %v3014
        %v3016 = vpop.f32.mrb[0].mxu0
        %v3017 = vpop.f32.mrb[0].mxu0
        %v3018 = vadd.f32 %v2643, %v3017
        %v3019 = vpop.f32.mrb[0].mxu0
        %3020 = vmatprep.mubr.bf16.mxu0 %v2689
        %3021 = vmatmul.mubr.bf16.gmra.mrb[0].mxu0 %v2688
        %v3022 = vpop.f32.mrb[0].mxu0
        %v3023 = vadd.f32 %v2643, %v3022
        %v3024 = vpop.f32.mrb[0].mxu0
        %v3025 = vpop.f32.mrb[0].mxu0
        %v3026 = vadd.f32 %v2643, %v3025
        %v3027 = vpop.f32.mrb[0].mxu0
        %3028 = vmatprep.mubr.bf16.mxu0 %v2693
        %3029 = vmatmul.mubr.bf16.gmra.mrb[0].mxu0 %v2692
        %v3030 = vpop.f32.mrb[0].mxu0
        %v3031 = vadd.f32 %v2643, %v3030
        %v3032 = vpop.f32.mrb[0].mxu0
        %v3033 = vpop.f32.mrb[0].mxu0
        %v3034 = vadd.f32 %v2643, %v3033
        %v3035 = vpop.f32.mrb[0].mxu0
        %3036 = vmatprep.mubr.bf16.mxu0 %v2697
        %3037 = vmatmul.mubr.bf16.gmra.mrb[0].mxu0 %v2696
        %v3038 = vpop.f32.mrb[0].mxu0
        %v3039 = vadd.f32 %v2643, %v3038
        %v3040 = vpop.f32.mrb[0].mxu0
        %v3041 = vpop.f32.mrb[0].mxu0
        %v3042 = vadd.f32 %v2643, %v3041
        %v3043 = vpop.f32.mrb[0].mxu0
        %3044 = vmatprep.mubr.bf16.mxu0 %v2701
        %3045 = vmatmul.mubr.bf16.gmra.mrb[0].mxu0 %v2700
        %v3046 = vpop.f32.mrb[0].mxu0
        %v3047 = vadd.f32 %v2643, %v3046
        %v3048 = vpop.f32.mrb[0].mxu0
        %v3049 = vpop.f32.mrb[0].mxu0
        %v3050 = vadd.f32 %v2643, %v3049
        %v3051 = vpop.f32.mrb[0].mxu0
        %3052 = vmatprep.mubr.bf16.mxu0 %v2705
        %3053 = vmatmul.mubr.bf16.gmra.mrb[0].mxu0 %v2704
        %v3054 = vpop.f32.mrb[0].mxu0
        %v3055 = vadd.f32 %v2643, %v3054
        %v3056 = vpop.f32.mrb[0].mxu0
        %v3057 = vpop.f32.mrb[0].mxu0
        %v3058 = vadd.f32 %v2643, %v3057
        %v3059 = vpop.f32.mrb[0].mxu0
        %3060 = vdwg.mxu0
        %3061 = vmatprep.subr.bf16.mxu0 0
        %3062 = vmatpush1.bf16.msra.mxu0 %v2852
        %3063 = vmatprep.subr.bf16.mxu0 0
        %3064 = vmatpush1.bf16.msra.mxu0 %v2853
        %3065 = vmatprep.subr.bf16.mxu0 0
        %3066 = vmatpush1.bf16.msra.mxu0 %v2854
        %3067 = vmatprep.subr.bf16.mxu0 0
        %3068 = vmatpush1.bf16.msra.mxu0 %v2855
        %3069 = vmatprep.subr.bf16.mxu0 0
        %3070 = vmatpush1.bf16.msra.mxu0 %v2856
        %3071 = vmatprep.subr.bf16.mxu0 0
        %3072 = vmatpush1.bf16.msra.mxu0 %v2857
        %3073 = vmatprep.subr.bf16.mxu0 0
        %3074 = vmatpush1.bf16.msra.mxu0 %v2858
        %3075 = vmatprep.subr.bf16.mxu0 0
        %3076 = vmatpush1.bf16.msra.mxu0 %v2859
        %3077 = vmatprep.subr.bf16.mxu0 0
        %3078 = vmatpush1.bf16.msra.mxu0 %v2860
        %3079 = vmatprep.subr.bf16.mxu0 0
        %3080 = vmatpush1.bf16.msra.mxu0 %v2861
        %3081 = vmatprep.subr.bf16.mxu0 0
        %3082 = vmatpush1.bf16.msra.mxu0 %v2862
        %3083 = vmatprep.subr.bf16.mxu0 0
        %3084 = vmatpush1.bf16.msra.mxu0 %v2863
        %3085 = vmatprep.subr.bf16.mxu0 0
        %3086 = vmatpush1.bf16.msra.mxu0 %v2864
        %3087 = vmatprep.subr.bf16.mxu0 0
        %3088 = vmatpush1.bf16.msra.mxu0 %v2865
        %3089 = vmatprep.subr.bf16.mxu0 0
        %3090 = vmatpush1.bf16.msra.mxu0 %v2866
        %3091 = vmatprep.subr.bf16.mxu0 0
        %3092 = vmatpush1.bf16.msra.mxu0 %v2867
        %3093 = vmatprep.mubr.bf16.mxu0 %v2647
        %3094 = vmatmul.mubr.bf16.gmra.mrb[0].mxu0 %v2646
        %v3095 = vpop.f32.mrb[0].mxu0
        %v3096 = vadd.f32 %v2935, %v3095
        %v3097 = vpop.f32.mrb[0].mxu0
        %v3098 = vpop.f32.mrb[0].mxu0
        %v3099 = vadd.f32 %v2938, %v3098
        %v3100 = vpop.f32.mrb[0].mxu0
        %3101 = vmatprep.mubr.bf16.mxu0 %v2651
        %3102 = vmatmul.mubr.bf16.gmra.mrb[0].mxu0 %v2650
        %v3103 = vpop.f32.mrb[0].mxu0
        %v3104 = vadd.f32 %v2943, %v3103
        %v3105 = vpop.f32.mrb[0].mxu0
        %v3106 = vpop.f32.mrb[0].mxu0
        %v3107 = vadd.f32 %v2946, %v3106
        %v3108 = vpop.f32.mrb[0].mxu0
        %3109 = vmatprep.mubr.bf16.mxu0 %v2655
        %3110 = vmatmul.mubr.bf16.gmra.mrb[0].mxu0 %v2654
        %v3111 = vpop.f32.mrb[0].mxu0
        %v3112 = vadd.f32 %v2951, %v3111
        %v3113 = vpop.f32.mrb[0].mxu0
        %v3114 = vpop.f32.mrb[0].mxu0
        %v3115 = vadd.f32 %v2954, %v3114
        %v3116 = vpop.f32.mrb[0].mxu0
        %3117 = vmatprep.mubr.bf16.mxu0 %v2659
        %3118 = vmatmul.mubr.bf16.gmra.mrb[0].mxu0 %v2658
        %v3119 = vpop.f32.mrb[0].mxu0
        %v3120 = vadd.f32 %v2959, %v3119
        %v3121 = vpop.f32.mrb[0].mxu0
        %v3122 = vpop.f32.mrb[0].mxu0
        %v3123 = vadd.f32 %v2962, %v3122
        %v3124 = vpop.f32.mrb[0].mxu0
        %3125 = vmatprep.mubr.bf16.mxu0 %v2663
        %3126 = vmatmul.mubr.bf16.gmra.mrb[0].mxu0 %v2662
        %v3127 = vpop.f32.mrb[0].mxu0
        %v3128 = vadd.f32 %v2967, %v3127
        %v3129 = vpop.f32.mrb[0].mxu0
        %v3130 = vpop.f32.mrb[0].mxu0
        %v3131 = vadd.f32 %v2970, %v3130
        %v3132 = vpop.f32.mrb[0].mxu0
        %3133 = vmatprep.mubr.bf16.mxu0 %v2667
        %3134 = vmatmul.mubr.bf16.gmra.mrb[0].mxu0 %v2666
        %v3135 = vpop.f32.mrb[0].mxu0
        %v3136 = vadd.f32 %v2975, %v3135
        %v3137 = vpop.f32.mrb[0].mxu0
        %v3138 = vpop.f32.mrb[0].mxu0
        %v3139 = vadd.f32 %v2978, %v3138
        %v3140 = vpop.f32.mrb[0].mxu0
        %3141 = vmatprep.mubr.bf16.mxu0 %v2671
        %3142 = vmatmul.mubr.bf16.gmra.mrb[0].mxu0 %v2670
        %v3143 = vpop.f32.mrb[0].mxu0
        %v3144 = vadd.f32 %v2983, %v3143
        %v3145 = vpop.f32.mrb[0].mxu0
        %v3146 = vpop.f32.mrb[0].mxu0
        %v3147 = vadd.f32 %v2986, %v3146
        %v3148 = vpop.f32.mrb[0].mxu0
        %3149 = vmatprep.mubr.bf16.mxu0 %v2675
        %3150 = vmatmul.mubr.bf16.gmra.mrb[0].mxu0 %v2674
        %v3151 = vpop.f32.mrb[0].mxu0
        %v3152 = vadd.f32 %v2991, %v3151
        %v3153 = vpop.f32.mrb[0].mxu0
        %v3154 = vpop.f32.mrb[0].mxu0
        %v3155 = vadd.f32 %v2994, %v3154
        %v3156 = vpop.f32.mrb[0].mxu0
        %3157 = vmatprep.mubr.bf16.mxu0 %v2679
        %3158 = vmatmul.mubr.bf16.gmra.mrb[0].mxu0 %v2678
        %v3159 = vpop.f32.mrb[0].mxu0
        %v3160 = vadd.f32 %v2999, %v3159
        %v3161 = vpop.f32.mrb[0].mxu0
        %v3162 = vpop.f32.mrb[0].mxu0
        %v3163 = vadd.f32 %v3002, %v3162
        %v3164 = vpop.f32.mrb[0].mxu0
        %3165 = vmatprep.mubr.bf16.mxu0 %v2683
        %3166 = vmatmul.mubr.bf16.gmra.mrb[0].mxu0 %v2682
        %v3167 = vpop.f32.mrb[0].mxu0
        %v3168 = vadd.f32 %v3007, %v3167
        %v3169 = vpop.f32.mrb[0].mxu0
        %v3170 = vpop.f32.mrb[0].mxu0
        %v3171 = vadd.f32 %v3010, %v3170
        %v3172 = vpop.f32.mrb[0].mxu0
        %3173 = vmatprep.mubr.bf16.mxu0 %v2687
        %3174 = vmatmul.mubr.bf16.gmra.mrb[0].mxu0 %v2686
        %v3175 = vpop.f32.mrb[0].mxu0
        %v3176 = vadd.f32 %v3015, %v3175
        %v3177 = vpop.f32.mrb[0].mxu0
        %v3178 = vpop.f32.mrb[0].mxu0
        %v3179 = vadd.f32 %v3018, %v3178
        %v3180 = vpop.f32.mrb[0].mxu0
        %3181 = vmatprep.mubr.bf16.mxu0 %v2691
        %3182 = vmatmul.mubr.bf16.gmra.mrb[0].mxu0 %v2690
        %v3183 = vpop.f32.mrb[0].mxu0
        %v3184 = vadd.f32 %v3023, %v3183
        %v3185 = vpop.f32.mrb[0].mxu0
        %v3186 = vpop.f32.mrb[0].mxu0
        %v3187 = vadd.f32 %v3026, %v3186
        %v3188 = vpop.f32.mrb[0].mxu0
        %3189 = vmatprep.mubr.bf16.mxu0 %v2695
        %3190 = vmatmul.mubr.bf16.gmra.mrb[0].mxu0 %v2694
        %v3191 = vpop.f32.mrb[0].mxu0
        %v3192 = vadd.f32 %v3031, %v3191
        %v3193 = vpop.f32.mrb[0].mxu0
        %v3194 = vpop.f32.mrb[0].mxu0
        %v3195 = vadd.f32 %v3034, %v3194
        %v3196 = vpop.f32.mrb[0].mxu0
        %3197 = vmatprep.mubr.bf16.mxu0 %v2699
        %3198 = vmatmul.mubr.bf16.gmra.mrb[0].mxu0 %v2698
        %v3199 = vpop.f32.mrb[0].mxu0
        %v3200 = vadd.f32 %v3039, %v3199
        %v3201 = vpop.f32.mrb[0].mxu0
        %v3202 = vpop.f32.mrb[0].mxu0
        %v3203 = vadd.f32 %v3042, %v3202
        %v3204 = vpop.f32.mrb[0].mxu0
        %3205 = vmatprep.mubr.bf16.mxu0 %v2703
        %3206 = vmatmul.mubr.bf16.gmra.mrb[0].mxu0 %v2702
        %v3207 = vpop.f32.mrb[0].mxu0
        %v3208 = vadd.f32 %v3047, %v3207
        %v3209 = vpop.f32.mrb[0].mxu0
        %v3210 = vpop.f32.mrb[0].mxu0
        %v3211 = vadd.f32 %v3050, %v3210
        %v3212 = vpop.f32.mrb[0].mxu0
        %3213 = vmatprep.mubr.bf16.mxu0 %v2707
        %3214 = vmatmul.mubr.bf16.gmra.mrb[0].mxu0 %v2706
        %v3215 = vpop.f32.mrb[0].mxu0
        %v3216 = vadd.f32 %v3055, %v3215
        %v3217 = vpop.f32.mrb[0].mxu0
        %v3218 = vpop.f32.mrb[0].mxu0
        %v3219 = vadd.f32 %v3058, %v3218
        %v3220 = vpop.f32.mrb[0].mxu0
        %3221 = vdwg.mxu0
        %vm3222 = vcmp.gt.f32.partialorder %v3096, 0.0
        %vm3223 = vcmp.gt.f32.partialorder %v3099, 0.0
        %vm3224 = vcmp.gt.f32.partialorder %v3104, 0.0
        %vm3225 = vcmp.gt.f32.partialorder %v3107, 0.0
        %vm3226 = vcmp.gt.f32.partialorder %v3112, 0.0
        %vm3227 = vcmp.gt.f32.partialorder %v3115, 0.0
        %vm3228 = vcmp.gt.f32.partialorder %v3120, 0.0
        %vm3229 = vcmp.gt.f32.partialorder %v3123, 0.0
        %vm3230 = vcmp.gt.f32.partialorder %v3128, 0.0
        %vm3231 = vcmp.gt.f32.partialorder %v3131, 0.0
        %vm3232 = vcmp.gt.f32.partialorder %v3136, 0.0
        %vm3233 = vcmp.gt.f32.partialorder %v3139, 0.0
        %vm3234 = vcmp.gt.f32.partialorder %v3144, 0.0
        %vm3235 = vcmp.gt.f32.partialorder %v3147, 0.0
        %vm3236 = vcmp.gt.f32.partialorder %v3152, 0.0
        %vm3237 = vcmp.gt.f32.partialorder %v3155, 0.0
        %vm3238 = vcmp.gt.f32.partialorder %v3160, 0.0
        %vm3239 = vcmp.gt.f32.partialorder %v3163, 0.0
        %vm3240 = vcmp.gt.f32.partialorder %v3168, 0.0
        %vm3241 = vcmp.gt.f32.partialorder %v3171, 0.0
        %vm3242 = vcmp.gt.f32.partialorder %v3176, 0.0
        %vm3243 = vcmp.gt.f32.partialorder %v3179, 0.0
        %vm3244 = vcmp.gt.f32.partialorder %v3184, 0.0
        %vm3245 = vcmp.gt.f32.partialorder %v3187, 0.0
        %vm3246 = vcmp.gt.f32.partialorder %v3192, 0.0
        %vm3247 = vcmp.gt.f32.partialorder %v3195, 0.0
        %vm3248 = vcmp.gt.f32.partialorder %v3200, 0.0
        %vm3249 = vcmp.gt.f32.partialorder %v3203, 0.0
        %vm3250 = vcmp.gt.f32.partialorder %v3208, 0.0
        %vm3251 = vcmp.gt.f32.partialorder %v3211, 0.0
        %vm3252 = vcmp.gt.f32.partialorder %v3216, 0.0
        %vm3253 = vcmp.gt.f32.partialorder %v3219, 0.0
        %v3254 = vmul.f32 %v3096, 0.01
        %v3255 = vmul.f32 %v3099, 0.01
        %v3256 = vmul.f32 %v3104, 0.01
        %v3257 = vmul.f32 %v3107, 0.01
        %v3258 = vmul.f32 %v3112, 0.01
        %v3259 = vmul.f32 %v3115, 0.01
        %v3260 = vmul.f32 %v3120, 0.01
        %v3261 = vmul.f32 %v3123, 0.01
        %v3262 = vmul.f32 %v3128, 0.01
        %v3263 = vmul.f32 %v3131, 0.01
        %v3264 = vmul.f32 %v3136, 0.01
        %v3265 = vmul.f32 %v3139, 0.01
        %v3266 = vmul.f32 %v3144, 0.01
        %v3267 = vmul.f32 %v3147, 0.01
        %v3268 = vmul.f32 %v3152, 0.01
        %v3269 = vmul.f32 %v3155, 0.01
        %v3270 = vmul.f32 %v3160, 0.01
        %v3271 = vmul.f32 %v3163, 0.01
        %v3272 = vmul.f32 %v3168, 0.01
        %v3273 = vmul.f32 %v3171, 0.01
        %v3274 = vmul.f32 %v3176, 0.01
        %v3275 = vmul.f32 %v3179, 0.01
        %v3276 = vmul.f32 %v3184, 0.01
        %v3277 = vmul.f32 %v3187, 0.01
        %v3278 = vmul.f32 %v3192, 0.01
        %v3279 = vmul.f32 %v3195, 0.01
        %v3280 = vmul.f32 %v3200, 0.01
        %v3281 = vmul.f32 %v3203, 0.01
        %v3282 = vmul.f32 %v3208, 0.01
        %v3283 = vmul.f32 %v3211, 0.01
        %v3284 = vmul.f32 %v3216, 0.01
        %v3285 = vmul.f32 %v3219, 0.01
        %v3286 = vsel %vm3222, %v3096, %v3254
        %v3287 = vsel %vm3223, %v3099, %v3255
        %v3288 = vsel %vm3224, %v3104, %v3256
        %v3289 = vsel %vm3225, %v3107, %v3257
        %v3290 = vsel %vm3226, %v3112, %v3258
        %v3291 = vsel %vm3227, %v3115, %v3259
        %v3292 = vsel %vm3228, %v3120, %v3260
        %v3293 = vsel %vm3229, %v3123, %v3261
        %v3294 = vsel %vm3230, %v3128, %v3262
        %v3295 = vsel %vm3231, %v3131, %v3263
        %v3296 = vsel %vm3232, %v3136, %v3264
        %v3297 = vsel %vm3233, %v3139, %v3265
        %v3298 = vsel %vm3234, %v3144, %v3266
        %v3299 = vsel %vm3235, %v3147, %v3267
        %v3300 = vsel %vm3236, %v3152, %v3268
        %v3301 = vsel %vm3237, %v3155, %v3269
        %v3302 = vsel %vm3238, %v3160, %v3270
        %v3303 = vsel %vm3239, %v3163, %v3271
        %v3304 = vsel %vm3240, %v3168, %v3272
        %v3305 = vsel %vm3241, %v3171, %v3273
        %v3306 = vsel %vm3242, %v3176, %v3274
        %v3307 = vsel %vm3243, %v3179, %v3275
        %v3308 = vsel %vm3244, %v3184, %v3276
        %v3309 = vsel %vm3245, %v3187, %v3277
        %v3310 = vsel %vm3246, %v3192, %v3278
        %v3311 = vsel %vm3247, %v3195, %v3279
        %v3312 = vsel %vm3248, %v3200, %v3280
        %v3313 = vsel %vm3249, %v3203, %v3281
        %v3314 = vsel %vm3250, %v3208, %v3282
        %v3315 = vsel %vm3251, %v3211, %v3283
        %v3316 = vsel %vm3252, %v3216, %v3284
        %v3317 = vsel %vm3253, %v3219, %v3285
        %v3318 = vld [vmem:[#allocation2 + $0x820] sm:$0xf]
        %v3319 = vld [vmem:[#allocation2 + $0x830] sm:$0xf]
        %v3320 = vld [vmem:[#allocation2 + $0x840] sm:$0xf]
        %v3321 = vld [vmem:[#allocation2 + $0x850] sm:$0xf]
        %v3322 = vld [vmem:[#allocation2 + $0x860] sm:$0xf]
        %v3323 = vld [vmem:[#allocation2 + $0x870] sm:$0xf]
        %v3324 = vld [vmem:[#allocation2 + $0x880] sm:$0xf]
        %v3325 = vld [vmem:[#allocation2 + $0x890] sm:$0xf]
        %v3326 = vld [vmem:[#allocation2 + $0x8a0] sm:$0xf]
        %v3327 = vld [vmem:[#allocation2 + $0x8b0] sm:$0xf]
        %v3328 = vld [vmem:[#allocation2 + $0x8c0] sm:$0xf]
        %v3329 = vld [vmem:[#allocation2 + $0x8d0] sm:$0xf]
        %v3330 = vld [vmem:[#allocation2 + $0x8e0] sm:$0xf]
        %v3331 = vld [vmem:[#allocation2 + $0x8f0] sm:$0xf]
        %v3332 = vld [vmem:[#allocation2 + $0x900] sm:$0xf]
        %v3333 = vld [vmem:[#allocation2 + $0x910] sm:$0xf]
        %v3334 = vld [vmem:[#allocation5 + $0x6] ss:$0 sm:$0xff]
        %v3335 = vpack.c.bf16 %v3287, %v3286
        %v3336 = vpack.c.bf16 %v3289, %v3288
        %v3337 = vpack.c.bf16 %v3291, %v3290
        %v3338 = vpack.c.bf16 %v3293, %v3292
        %v3339 = vpack.c.bf16 %v3295, %v3294
        %v3340 = vpack.c.bf16 %v3297, %v3296
        %v3341 = vpack.c.bf16 %v3299, %v3298
        %v3342 = vpack.c.bf16 %v3301, %v3300
        %v3343 = vpack.c.bf16 %v3303, %v3302
        %v3344 = vpack.c.bf16 %v3305, %v3304
        %v3345 = vpack.c.bf16 %v3307, %v3306
        %v3346 = vpack.c.bf16 %v3309, %v3308
        %v3347 = vpack.c.bf16 %v3311, %v3310
        %v3348 = vpack.c.bf16 %v3313, %v3312
        %v3349 = vpack.c.bf16 %v3315, %v3314
        %v3350 = vpack.c.bf16 %v3317, %v3316
        %v3367 = vunpack.c.l.b16 %v3318
        %v3368 = vunpack.c.l.b16 %v3319
        %v3369 = vunpack.c.l.b16 %v3320
        %v3370 = vunpack.c.l.b16 %v3321
        %v3371 = vunpack.c.l.b16 %v3322
        %v3372 = vunpack.c.l.b16 %v3323
        %v3373 = vunpack.c.l.b16 %v3324
        %v3374 = vunpack.c.l.b16 %v3325
        %v3375 = vunpack.c.l.b16 %v3326
        %v3376 = vunpack.c.l.b16 %v3327
        %v3377 = vunpack.c.l.b16 %v3328
        %v3378 = vunpack.c.l.b16 %v3329
        %v3379 = vunpack.c.l.b16 %v3330
        %v3380 = vunpack.c.l.b16 %v3331
        %v3381 = vunpack.c.l.b16 %v3332
        %v3382 = vunpack.c.l.b16 %v3333
        %v3383 = vpack.c.b16 %v3368, %v3367
        %v3384 = vpack.c.b16 %v3370, %v3369
        %v3385 = vpack.c.b16 %v3372, %v3371
        %v3386 = vpack.c.b16 %v3374, %v3373
        %v3387 = vpack.c.b16 %v3376, %v3375
        %v3388 = vpack.c.b16 %v3378, %v3377
        %v3389 = vpack.c.b16 %v3380, %v3379
        %v3390 = vpack.c.b16 %v3382, %v3381
        %3399 = vmatprep.subr.bf16.mxu0 0
        %3400 = vmatpush1.bf16.msra.mxu0 %v3383
        %3401 = vmatprep.subr.bf16.mxu0 0
        %3402 = vmatpush1.bf16.msra.mxu0 %v3384
        %3403 = vmatprep.subr.bf16.mxu0 0
        %3404 = vmatpush1.bf16.msra.mxu0 %v3385
        %3405 = vmatprep.subr.bf16.mxu0 0
        %3406 = vmatpush1.bf16.msra.mxu0 %v3386
        %3407 = vmatprep.subr.bf16.mxu0 0
        %3408 = vmatpush1.bf16.msra.mxu0 %v3387
        %3409 = vmatprep.subr.bf16.mxu0 0
        %3410 = vmatpush1.bf16.msra.mxu0 %v3388
        %3411 = vmatprep.subr.bf16.mxu0 0
        %3412 = vmatpush1.bf16.msra.mxu0 %v3389
        %3413 = vmatprep.subr.bf16.mxu0 0
        %3414 = vmatpush1.bf16.msra.mxu0 %v3390
        %3415 = vmatprep.subr.bf16.mxu0 0
        %3416 = vmatpush1.bf16.msra.mxu0 0
        %3417 = vmatprep.subr.bf16.mxu0 0
        %3418 = vmatpush1.bf16.msra.mxu0 0
        %3419 = vmatprep.subr.bf16.mxu0 0
        %3420 = vmatpush1.bf16.msra.mxu0 0
        %3421 = vmatprep.subr.bf16.mxu0 0
        %3422 = vmatpush1.bf16.msra.mxu0 0
        %3423 = vmatprep.subr.bf16.mxu0 0
        %3424 = vmatpush1.bf16.msra.mxu0 0
        %3425 = vmatprep.subr.bf16.mxu0 0
        %3426 = vmatpush1.bf16.msra.mxu0 0
        %3427 = vmatprep.subr.bf16.mxu0 0
        %3428 = vmatpush1.bf16.msra.mxu0 0
        %3429 = vmatprep.subr.bf16.mxu0 0
        %3430 = vmatpush1.bf16.msra.mxu0 0
        %3431 = vmatprep.mubr.bf16.mxu0 0
        %3432 = vmatmul.mubr.bf16.gmra.mrb[0].mxu0 %v3335
        %v3433 = vpop.f32.mrb[0].mxu0
        %v3434 = vadd.f32 %v3334, %v3433
        %v3435 = vpop.f32.mrb[0].mxu0
        %v3436 = vpop.f32.mrb[0].mxu0
        %v3437 = vadd.f32 %v3334, %v3436
        %v3438 = vpop.f32.mrb[0].mxu0
        %3439 = vmatprep.mubr.bf16.mxu0 0
        %3440 = vmatmul.mubr.bf16.gmra.mrb[0].mxu0 %v3336
        %v3441 = vpop.f32.mrb[0].mxu0
        %v3442 = vadd.f32 %v3334, %v3441
        %v3443 = vpop.f32.mrb[0].mxu0
        %v3444 = vpop.f32.mrb[0].mxu0
        %v3445 = vadd.f32 %v3334, %v3444
        %v3446 = vpop.f32.mrb[0].mxu0
        %3447 = vmatprep.mubr.bf16.mxu0 0
        %3448 = vmatmul.mubr.bf16.gmra.mrb[0].mxu0 %v3337
        %v3449 = vpop.f32.mrb[0].mxu0
        %v3450 = vadd.f32 %v3334, %v3449
        %v3451 = vpop.f32.mrb[0].mxu0
        %v3452 = vpop.f32.mrb[0].mxu0
        %v3453 = vadd.f32 %v3334, %v3452
        %v3454 = vpop.f32.mrb[0].mxu0
        %3455 = vmatprep.mubr.bf16.mxu0 0
        %3456 = vmatmul.mubr.bf16.gmra.mrb[0].mxu0 %v3338
        %v3457 = vpop.f32.mrb[0].mxu0
        %v3458 = vadd.f32 %v3334, %v3457
        %v3459 = vpop.f32.mrb[0].mxu0
        %v3460 = vpop.f32.mrb[0].mxu0
        %v3461 = vadd.f32 %v3334, %v3460
        %v3462 = vpop.f32.mrb[0].mxu0
        %3463 = vmatprep.mubr.bf16.mxu0 0
        %3464 = vmatmul.mubr.bf16.gmra.mrb[0].mxu0 %v3339
        %v3465 = vpop.f32.mrb[0].mxu0
        %v3466 = vadd.f32 %v3334, %v3465
        %v3467 = vpop.f32.mrb[0].mxu0
        %v3468 = vpop.f32.mrb[0].mxu0
        %v3469 = vadd.f32 %v3334, %v3468
        %v3470 = vpop.f32.mrb[0].mxu0
        %3471 = vmatprep.mubr.bf16.mxu0 0
        %3472 = vmatmul.mubr.bf16.gmra.mrb[0].mxu0 %v3340
        %v3473 = vpop.f32.mrb[0].mxu0
        %v3474 = vadd.f32 %v3334, %v3473
        %v3475 = vpop.f32.mrb[0].mxu0
        %v3476 = vpop.f32.mrb[0].mxu0
        %v3477 = vadd.f32 %v3334, %v3476
        %v3478 = vpop.f32.mrb[0].mxu0
        %3479 = vmatprep.mubr.bf16.mxu0 0
        %3480 = vmatmul.mubr.bf16.gmra.mrb[0].mxu0 %v3341
        %v3481 = vpop.f32.mrb[0].mxu0
        %v3482 = vadd.f32 %v3334, %v3481
        %v3483 = vpop.f32.mrb[0].mxu0
        %v3484 = vpop.f32.mrb[0].mxu0
        %v3485 = vadd.f32 %v3334, %v3484
        %v3486 = vpop.f32.mrb[0].mxu0
        %3487 = vmatprep.mubr.bf16.mxu0 0
        %3488 = vmatmul.mubr.bf16.gmra.mrb[0].mxu0 %v3342
        %v3489 = vpop.f32.mrb[0].mxu0
        %v3490 = vadd.f32 %v3334, %v3489
        %v3491 = vpop.f32.mrb[0].mxu0
        %v3492 = vpop.f32.mrb[0].mxu0
        %v3493 = vadd.f32 %v3334, %v3492
        %v3494 = vpop.f32.mrb[0].mxu0
        %3495 = vmatprep.mubr.bf16.mxu0 0
        %3496 = vmatmul.mubr.bf16.gmra.mrb[0].mxu0 %v3343
        %v3497 = vpop.f32.mrb[0].mxu0
        %v3498 = vadd.f32 %v3334, %v3497
        %v3499 = vpop.f32.mrb[0].mxu0
        %v3500 = vpop.f32.mrb[0].mxu0
        %v3501 = vadd.f32 %v3334, %v3500
        %v3502 = vpop.f32.mrb[0].mxu0
        %3503 = vmatprep.mubr.bf16.mxu0 0
        %3504 = vmatmul.mubr.bf16.gmra.mrb[0].mxu0 %v3344
        %v3505 = vpop.f32.mrb[0].mxu0
        %v3506 = vadd.f32 %v3334, %v3505
        %v3507 = vpop.f32.mrb[0].mxu0
        %v3508 = vpop.f32.mrb[0].mxu0
        %v3509 = vadd.f32 %v3334, %v3508
        %v3510 = vpop.f32.mrb[0].mxu0
        %3511 = vmatprep.mubr.bf16.mxu0 0
        %3512 = vmatmul.mubr.bf16.gmra.mrb[0].mxu0 %v3345
        %v3513 = vpop.f32.mrb[0].mxu0
        %v3514 = vadd.f32 %v3334, %v3513
        %v3515 = vpop.f32.mrb[0].mxu0
        %v3516 = vpop.f32.mrb[0].mxu0
        %v3517 = vadd.f32 %v3334, %v3516
        %v3518 = vpop.f32.mrb[0].mxu0
        %3519 = vmatprep.mubr.bf16.mxu0 0
        %3520 = vmatmul.mubr.bf16.gmra.mrb[0].mxu0 %v3346
        %v3521 = vpop.f32.mrb[0].mxu0
        %v3522 = vadd.f32 %v3334, %v3521
        %v3523 = vpop.f32.mrb[0].mxu0
        %v3524 = vpop.f32.mrb[0].mxu0
        %v3525 = vadd.f32 %v3334, %v3524
        %v3526 = vpop.f32.mrb[0].mxu0
        %3527 = vmatprep.mubr.bf16.mxu0 0
        %3528 = vmatmul.mubr.bf16.gmra.mrb[0].mxu0 %v3347
        %v3529 = vpop.f32.mrb[0].mxu0
        %v3530 = vadd.f32 %v3334, %v3529
        %v3531 = vpop.f32.mrb[0].mxu0
        %v3532 = vpop.f32.mrb[0].mxu0
        %v3533 = vadd.f32 %v3334, %v3532
        %v3534 = vpop.f32.mrb[0].mxu0
        %3535 = vmatprep.mubr.bf16.mxu0 0
        %3536 = vmatmul.mubr.bf16.gmra.mrb[0].mxu0 %v3348
        %v3537 = vpop.f32.mrb[0].mxu0
        %v3538 = vadd.f32 %v3334, %v3537
        %v3539 = vpop.f32.mrb[0].mxu0
        %v3540 = vpop.f32.mrb[0].mxu0
        %v3541 = vadd.f32 %v3334, %v3540
        %v3542 = vpop.f32.mrb[0].mxu0
        %3543 = vmatprep.mubr.bf16.mxu0 0
        %3544 = vmatmul.mubr.bf16.gmra.mrb[0].mxu0 %v3349
        %v3545 = vpop.f32.mrb[0].mxu0
        %v3546 = vadd.f32 %v3334, %v3545
        %v3547 = vpop.f32.mrb[0].mxu0
        %v3548 = vpop.f32.mrb[0].mxu0
        %v3549 = vadd.f32 %v3334, %v3548
        %v3550 = vpop.f32.mrb[0].mxu0
        %3551 = vmatprep.mubr.bf16.mxu0 0
        %3552 = vmatmul.mubr.bf16.gmra.mrb[0].mxu0 %v3350
        %v3553 = vpop.f32.mrb[0].mxu0
        %v3554 = vadd.f32 %v3334, %v3553
        %v3555 = vpop.f32.mrb[0].mxu0
        %v3556 = vpop.f32.mrb[0].mxu0
        %v3557 = vadd.f32 %v3334, %v3556
        %v3558 = vpop.f32.mrb[0].mxu0
        %3559 = vdwg.mxu0
        %3560 = vst [vmem:[%s192] sm:$0xff] %v3434
        %3561 = vst [vmem:[%s192 + $0x8] sm:$0xff] %v3437
        %3562 = vst [vmem:[%s192 + $0x10] sm:$0xff] %v3442
        %3563 = vst [vmem:[%s192 + $0x18] sm:$0xff] %v3445
        %3564 = vst [vmem:[%s192 + $0x20] sm:$0xff] %v3450
        %3565 = vst [vmem:[%s192 + $0x28] sm:$0xff] %v3453
        %3566 = vst [vmem:[%s192 + $0x30] sm:$0xff] %v3458
        %3567 = vst [vmem:[%s192 + $0x38] sm:$0xff] %v3461
        %3568 = vst [vmem:[%s192 + $0x40] sm:$0xff] %v3466
        %3569 = vst [vmem:[%s192 + $0x48] sm:$0xff] %v3469
        %3570 = vst [vmem:[%s192 + $0x50] sm:$0xff] %v3474
        %3571 = vst [vmem:[%s192 + $0x58] sm:$0xff] %v3477
        %3572 = vst [vmem:[%s192 + $0x60] sm:$0xff] %v3482
        %3573 = vst [vmem:[%s192 + $0x68] sm:$0xff] %v3485
        %3574 = vst [vmem:[%s192 + $0x70] sm:$0xff] %v3490
        %3575 = vst [vmem:[%s192 + $0x78] sm:$0xff] %v3493
        %3576 = vst [vmem:[%s192 + $0x80] sm:$0xff] %v3498
        %3577 = vst [vmem:[%s192 + $0x88] sm:$0xff] %v3501
        %3578 = vst [vmem:[%s192 + $0x90] sm:$0xff] %v3506
        %3579 = vst [vmem:[%s192 + $0x98] sm:$0xff] %v3509
        %3580 = vst [vmem:[%s192 + $0xa0] sm:$0xff] %v3514
        %3581 = vst [vmem:[%s192 + $0xa8] sm:$0xff] %v3517
        %3582 = vst [vmem:[%s192 + $0xb0] sm:$0xff] %v3522
        %3583 = vst [vmem:[%s192 + $0xb8] sm:$0xff] %v3525
        %3584 = vst [vmem:[%s192 + $0xc0] sm:$0xff] %v3530
        %3585 = vst [vmem:[%s192 + $0xc8] sm:$0xff] %v3533
        %3586 = vst [vmem:[%s192 + $0xd0] sm:$0xff] %v3538
        %3587 = vst [vmem:[%s192 + $0xd8] sm:$0xff] %v3541
        %3588 = vst [vmem:[%s192 + $0xe0] sm:$0xff] %v3546
        %3589 = vst [vmem:[%s192 + $0xe8] sm:$0xff] %v3549
        %3590 = vst [vmem:[%s192 + $0xf0] sm:$0xff] %v3554
        %3591 = vst [vmem:[%s192 + $0xf8] sm:$0xff] %v3557
        %s3592 = sand.u32 %s95, 1
        %s3593 = scalar_lea.sflag [#allocation4], %s3592
        %s3594 = sand.u32 %s95, 1
        %s3595 = smul.addr %s3594, 256
        %s3596 = scalar_lea.vmem [#allocation7], %s3595
        // Predicated region
        $region41: #{tpu_custom_call.1} parent=31 // pred_check
          %p3597 = pneg %p105
        $region42: #{tpu_custom_call.1} parent=31 // pred_check_branch
          %3599 = sbr.rel (%p3597) target = $region44
        $region43: #{tpu_custom_call.1} parent=31 // pred_region
          %s3600 = smul.u32 32, %s19
          %s3602 = ssub.s32 4096, 4096
          %3603 = vsyncadd %s3593, %s3602
          %s3604 = smul.addr %s3600, 128
          %s3605 = scalar_lea.hbm %s3, %s3604
          %s3606 = sshll.u32 %s3596, 4
          %s3607 = int_to_ptr.vmem [resolvable:$true] %s3606
          %3612 = dma.vmem_to_hbm [thread:$0]  %s3607, 4096, %s3605, %s3593, 128, 128, 8
        $region44: #{tpu_custom_call.1} parent=31 // pred_fallthru
          _
      $region32: #{tpu_custom_call.1} parent=5 // pred_fallthru
        _
      %p3613 = scmp.le.s32.totalorder 2, %s14
      // Predicated region
      $region45: #{tpu_custom_call.1} parent=5 // pred_check
        %p3614 = pneg %p3613
      $region46: #{tpu_custom_call.1} parent=5 // pred_check_branch
        %3616 = sbr.rel (%p3614) target = $region48
      $region47: #{tpu_custom_call.1} parent=5 // pred_region
        %s3617 = ssub.s32 %s14, 2
        // Predicated region
        $region49: #{tpu_custom_call.1} parent=47 // pred_check
          %p3618 = pneg %p111
        $region50: #{tpu_custom_call.1} parent=47 // pred_check_branch
          %3620 = sbr.rel (%p3618) target = $region52
        $region51: #{tpu_custom_call.1} parent=47 // pred_region
          %s3621 = sand.u32 %s96, 1
          %s3622 = scalar_lea.sflag [#allocation4], %s3621
          %s3623 = sand.u32 %s96, 1
          %s3624 = smul.addr %s3623, 256
          %s3625 = scalar_lea.vmem [#allocation7], %s3624
          %3626 = dma.done %s3622, 4096
        $region52: #{tpu_custom_call.1} parent=47 // pred_fallthru
          _
      $region48: #{tpu_custom_call.1} parent=5 // pred_fallthru
        _
    $region6: #{tpu_custom_call.1} parent=1 // loop_footer
      %s18 = sadd.s32 1, %s14
    $region7: #{tpu_custom_call.1} parent=1 // loop_footer_branch
      %13 = sbr.rel target = $region3
    $region8: #{tpu_custom_call.1} parent=1 // loop_exit
      _
    %3627 = vsyncpa [#allocation3], 1
    %s3628 = scalar_lea.sflag [#allocation3], 1
    %3629 = vsyncpa %s3628, 1
    %3630 = vsyncpa [#allocation6], 1
    %3631 = vsyncpa [#allocation4], 1
    %s3632 = scalar_lea.sflag [#allocation4], 1
    %3633 = vsyncpa %s3632, 1

</llo_original>
